<compile_context>
chip_gen: v7x
topology: tpu7x:2x2x1
jax: 0.10.0
libtpu: 0.0.40
codegen_flags: <defaults>
</compile_context>

<pallas_src>
import math
import functools
import numpy as np

import jax
import jax.numpy as jnp
from jax.experimental import pallas as pl
from jax.experimental.pallas import tpu as pltpu

BN_EPS = 1e-5
BN_SCALE = 1.0 / math.sqrt(1.0 + BN_EPS)       # eval-mode BN with default params

_LANE = 128      # lane width / output-channel padding granularity
_SUB = 16        # bf16 sublane packing granularity (K padding granularity)


def _round_up(x, m):
    return -(-x // m) * m


# -----------------------------------------------------------------------------
# Pallas fused matmul + bias (+ relu) kernel
# -----------------------------------------------------------------------------
def _mm_bias_kernel(x_ref, w_ref, b_ref, o_ref, *, relu):
    # Whole contraction dim is a single VMEM block -> no K grid axis, no accumulator
    # scratch, no zero-init / finalize branches.  bf16 in, f32 accumulate.
    y = jnp.dot(x_ref[...], w_ref[...], preferred_element_type=jnp.float32)
    y = y + b_ref[...]
    if relu:
        y = jnp.maximum(y, 0.0)
    o_ref[...] = y.astype(o_ref.dtype)


def _pick_tm(M):
    """Row tile: 512-1024, and >=2 row tiles whenever M allows (v7x megacore)."""
    if M <= 512:
        return _round_up(max(M, 8), _SUB)          # single small tile
    return min(1024, _round_up((M + 1) // 2, 512))


def _pick_tn(Np):
    """Largest lane-dense output tile dividing Np (Np is a multiple of 128)."""
    for tn in (512, 256, 128):
        if Np % tn == 0:
            return tn
    return 128


def matmul_bias(rows, w_pad, b_pad, *, relu, out_dtype):
    """out = [relu](rows @ w_pad + b_pad), returned with M rows and all Np columns.

    rows : (M, K) bf16 activations (K <= Kp; zero-padded here to Kp)
    w_pad: (Kp, Np) bf16, BN-folded / channel-padded at init (Np multiple of 128)
    b_pad: (1, Np) f32
    """
    M, K = rows.shape
    Kp, Np = w_pad.shape

    rows = rows.astype(jnp.bfloat16)               # no-op if already bf16
    if Kp > K:                                     # pad K only to a 16 multiple
        rows = jnp.pad(rows, ((0, 0), (0, Kp - K)))

    tm = _pick_tm(M)
    Mp = _round_up(M, tm)
    if Mp > M:
        rows = jnp.pad(rows, ((0, Mp - M), (0, 0)))
    tn = _pick_tn(Np)

    out = pl.pallas_call(
        functools.partial(_mm_bias_kernel, relu=relu),
        out_shape=jax.ShapeDtypeStruct((Mp, Np), out_dtype),
        grid_spec=pltpu.PrefetchScalarGridSpec(
            num_scalar_prefetch=0,
            grid=(Mp // tm, Np // tn),             # j innermost: rows tile stays resident
            in_specs=[
                pl.BlockSpec((tm, Kp), lambda i, j: (i, 0)),   # K = full extent
                pl.BlockSpec((Kp, tn), lambda i, j: (0, j)),
                pl.BlockSpec((1, tn), lambda i, j: (0, j)),
            ],
            out_specs=pl.BlockSpec((tm, tn), lambda i, j: (i, j)),
        ),
        compiler_params=pltpu.CompilerParams(
            dimension_semantics=("parallel", "parallel")),
    )(rows, w_pad, b_pad)
    return out[:M]                                  # padded rows are zeros; slice kept


# -----------------------------------------------------------------------------
# graph tools (numpy, parameter construction only)
# -----------------------------------------------------------------------------
def k_adjacency(A, k, with_self=False, self_factor=1.0):
    I = np.eye(len(A), dtype=A.dtype)
    if k == 0:
        return I
    Ak = (np.minimum(np.linalg.matrix_power(A + I, k), 1)
          - np.minimum(np.linalg.matrix_power(A + I, k - 1), 1))
    if with_self:
        Ak = Ak + self_factor * I
    return Ak


def normalize_adjacency_matrix(A):
    deg = A.sum(-1)
    deg_inv_sqrt = np.power(deg, -0.5)
    D = np.eye(len(deg)) * deg_inv_sqrt
    return (D @ A @ D).astype(np.float32)


def build_spatial_temporal_graph(A_binary, window_size):
    V = len(A_binary)
    A_with_I = A_binary + np.eye(V, dtype=A_binary.dtype)
    return np.tile(A_with_I, (window_size, window_size)).copy()


def make_ring_graph(V):
    # deterministic synthetic skeleton graph (ring over V joints)
    A = np.zeros((V, V), dtype=np.float32)
    for i in range(V):
        A[i, (i + 1) % V] = 1.0
        A[(i + 1) % V, i] = 1.0
    return A


# -----------------------------------------------------------------------------
# parameter init (deterministic, PyTorch-like uniform(-1/sqrt(fan_in), ..))
# -----------------------------------------------------------------------------
class KeyGen:
    def __init__(self, seed):
        self._key = jax.random.PRNGKey(seed)

    def __call__(self):
        self._key, sub = jax.random.split(self._key)
        return sub


def _uniform(kg, shape, bound):
    return jax.random.uniform(kg(), shape, jnp.float32, -bound, bound)


def init_ms_g3d(kg, in_channels, out_channels, A_binary, num_scales,
                window_size, window_stride, window_dilation):
    # embed_factor == 1 path of MS_G3D: in1x1 = Identity
    C = in_channels
    Ce = out_channels if in_channels == 3 else in_channels
    V = len(A_binary)
    S = num_scales
    WV = window_size * V
    Ce_pad = _round_up(Ce, _LANE)
    Cout = out_channels
    Cout_pad = _round_up(Cout, _LANE)

    A_large = build_spatial_temporal_graph(A_binary, window_size)
    A_scales = np.concatenate(
        [normalize_adjacency_matrix(k_adjacency(A_large, k, with_self=True))
         for k in range(S)])                               # (S*WV, WV)

    # --- SpatialTemporal_MS_GCN.mlp = Conv2d(S*C, Ce, 1) + BN (linear act), folded ---
    bound1 = 1.0 / math.sqrt(S * C)
    w1 = (_uniform(kg, (Ce, S * C), bound1) * BN_SCALE).reshape(Ce, S, C)
    b1 = _uniform(kg, (Ce,), bound1) * BN_SCALE
    # stored as (S, C, Ce_pad) so the combined operator B is a tiny in-forward einsum
    mlp_w = (jnp.zeros((S, C, Ce_pad), jnp.float32)
             .at[:, :, :Ce].set(jnp.transpose(w1, (1, 2, 0))))
    mlp_b_pad = jnp.zeros((Ce_pad,), jnp.float32).at[:Ce].set(b1)
    # bias broadcast across the WV output-vertex groups of the fused matmul
    mlp_b = jnp.tile(mlp_b_pad, (WV,)).reshape(1, WV * Ce_pad)

    # --- out_conv Conv3d(Ce, Cout, (1, w, 1)) + out_bn, folded ---
    # K features ordered (w, ce_pad): zero rows absorb the carried Ce channel padding.
    bound2 = 1.0 / math.sqrt(Ce * window_size)
    w2 = _uniform(kg, (Cout, Ce, window_size), bound2) * BN_SCALE
    b2 = _uniform(kg, (Cout,), bound2) * BN_SCALE
    w2p = (jnp.zeros((window_size, Ce_pad, Cout_pad), jnp.float32)
           .at[:, :Ce, :Cout].set(jnp.transpose(w2, (2, 1, 0))))
    out_w = w2p.reshape(window_size * Ce_pad, Cout_pad).astype(jnp.bfloat16)
    out_b = jnp.zeros((1, Cout_pad), jnp.float32).at[0, :Cout].set(b2)

    params = {
        "A_scales": jnp.asarray(A_scales, jnp.float32),
        "A_res": _uniform(kg, A_scales.shape, 1e-6),       # use_Ares=True
        "mlp_w": mlp_w, "mlp_b": mlp_b,
        "out_w": out_w, "out_b": out_b,
    }
    cfg = dict(window_size=window_size, window_stride=window_stride,
               window_dilation=window_dilation, num_scales=S, V=V,
               embed_in=C, embed_out=Ce, ce_pad=Ce_pad,
               out_channels=Cout, cout_pad=Cout_pad)
    return params, cfg


# -----------------------------------------------------------------------------
# forward pass (whole thing is jitted; Pallas handles the two big matmuls/branch)
# -----------------------------------------------------------------------------
def unfold_temporal(x, window_size, stride, dilation):
    """UnfoldTemporalWindows: (N,C,T,V) -> (N,C,T_out,window*V).  Runs in bf16."""
    N, C, T, V = x.shape
    pad = (window_size + (window_size - 1) * (dilation - 1) - 1) // 2
    xp = jnp.pad(x, ((0, 0), (0, 0), (pad, pad), (0, 0)))
    T_out = (T + 2 * pad - (dilation * (window_size - 1) + 1)) // stride + 1
    taps = [xp[:, :, w * dilation: w * dilation + (T_out - 1) * stride + 1: stride, :]
            for w in range(window_size)]
    xw = jnp.stack(taps, axis=2)                           # (N,C,w,T_out,V)
    xw = jnp.transpose(xw, (0, 1, 3, 2, 4)).reshape(N, C, T_out, window_size * V)
    return xw


def ms_g3d_forward(x, p, cfg):
    wsz = cfg["window_size"]
    wst = cfg["window_stride"]
    wdil = cfg["window_dilation"]
    S = cfg["num_scales"]
    V = cfg["V"]
    C = cfg["embed_in"]
    Ce_pad = cfg["ce_pad"]
    Cout = cfg["out_channels"]
    N = x.shape[0]
    WV = wsz * V

    # in1x1 = Identity (embed_factor == 1); x is already bf16
    xw = unfold_temporal(x, wsz, wst, wdil)                # (N, C, Tw, WV) bf16
    Tw = xw.shape[2]

    # --- fused graph-aggregation ⊗ MLP operator (lane-dense contraction K = C*WV) ---
    # y[n,t,v,ce] = relu( sum_{c,u} xw[n,c,t,u] * B[(c,u),(v,ce)] + b[ce] )
    # with B[(c,u),(v,ce)] = sum_s A[s*WV+v, u] * Wmlp[ce, s*C+c]   (tiny einsum)
    A3 = (p["A_scales"] + p["A_res"]).reshape(S, WV, WV)   # (S, v, u) f32
    B = jnp.einsum("svu,sce->cuve", A3, p["mlp_w"])        # (C, WV, WV, Ce_pad)
    K1 = C * WV
    K1p = _round_up(K1, _SUB)
    Bflat = B.reshape(K1, WV * Ce_pad)
    if K1p > K1:
        Bflat = jnp.pad(Bflat, ((0, K1p - K1), (0, 0)))
    Bflat = Bflat.astype(jnp.bfloat16)

    rows = jnp.transpose(xw, (0, 2, 1, 3)).reshape(N * Tw, K1)     # bf16 glue
    y = matmul_bias(rows, Bflat, p["mlp_b"], relu=True, out_dtype=jnp.bfloat16)
    # y: (N*Tw, WV*Ce_pad) bf16 — padded ce channels (== 0) are carried through,
    # no intermediate slice/copy.  (residual branch is 0 with default residual=False)

    # --- out_conv: Conv3d(Ce, Cout, (1, w, 1)) + out_bn (folded) ---
    y = y.reshape(N, Tw, wsz, V, Ce_pad)                   # WV is window-major
    rows2 = jnp.transpose(y, (0, 1, 3, 2, 4)).reshape(N * Tw * V, wsz * Ce_pad)
    out = matmul_bias(rows2, p["out_w"], p["out_b"], relu=False, out_dtype=jnp.float32)
    out = out[:, :Cout].reshape(N, Tw, V, Cout)
    return jnp.transpose(out, (0, 3, 1, 2))                # (N, Cout, Tw, V)


def build_multiwindow(seed, in_channels, out_channels, A_binary, num_scales,
                      window_sizes=(3, 5), window_stride=1, window_dilations=(1, 1)):
    kg = KeyGen(seed)
    params, cfgs = [], []
    for wsz, wdil in zip(window_sizes, window_dilations):
        p, c = init_ms_g3d(kg, in_channels, out_channels, A_binary, num_scales,
                           wsz, window_stride, wdil)
        params.append(p)
        cfgs.append(c)
    params = tuple(params)
    cfgs = tuple(cfgs)

    @jax.jit
    def forward(x, params):
        xb = x.astype(jnp.bfloat16)            # all layout glue downstream is bf16
        out = None
        for p, c in zip(params, cfgs):
            y = ms_g3d_forward(xb, p, c)
            out = y if out is None else out + y
        return out

    return params, forward


# -----------------------------------------------------------------------------
if __name__ == "__main__":
    N, C_in, T, V = 2, 3, 16, 8
    out_channels = 64
    num_scales = 2
    window_sizes = (3, 5)
    window_stride = 1
    window_dilations = (1, 1)

    A_binary = make_ring_graph(V)                  # deterministic synthetic skeleton
    params, forward = build_multiwindow(1234, C_in, out_channels, A_binary,
                                        num_scales, window_sizes, window_stride,
                                        window_dilations)

    x = jax.random.normal(jax.random.PRNGKey(0), (N, C_in, T, V), jnp.float32)

    out = forward(x, params)
    out = jax.block_until_ready(out)
    assert out.shape == (N, out_channels, T, V), out.shape
    assert bool(jnp.all(jnp.isfinite(out)))
    print("KERNEL_OK")
</pallas_src>

<mosaic_0001>
module attributes {stable_mosaic.version = 11 : i64} {
  func.func @_mm_bias_kernel(%arg0: i32, %arg1: i32, %arg2: memref<32x128xbf16, #tpu.memory_space<vmem>>, %arg3: memref<128x512xbf16, #tpu.memory_space<vmem>>, %arg4: memref<1x512xf32, #tpu.memory_space<vmem>>, %arg5: memref<32x512xbf16, #tpu.memory_space<vmem>>) attributes {dimension_semantics = [#tpu.dimension_semantics<parallel>, #tpu.dimension_semantics<parallel>], iteration_bounds = array<i64: 1, 10>, scalar_prefetch = 0 : i64, scratch_operands = 0 : i64, tpu.core_type = #tpu.core_type<tc>, window_params = [{transform_indices = @transform_0, window_bounds = array<i64: 32, 128>}, {transform_indices = @transform_1, window_bounds = array<i64: 128, 512>}, {transform_indices = @transform_2, window_bounds = array<i64: 1, 512>}, {transform_indices = @transform_3, window_bounds = array<i64: 32, 512>}]} {
    %c0 = arith.constant 0 : index
    %c0_0 = arith.constant 0 : index
    %0 = vector.load %arg2[%c0, %c0_0] : memref<32x128xbf16, #tpu.memory_space<vmem>>, vector<32x128xbf16>
    %c0_1 = arith.constant 0 : index
    %c0_2 = arith.constant 0 : index
    %1 = vector.load %arg3[%c0_1, %c0_2] : memref<128x512xbf16, #tpu.memory_space<vmem>>, vector<128x512xbf16>
    %cst = arith.constant dense<0.000000e+00> : vector<32x512xf32>
    %2 = tpu.matmul %0, %1, %cst {dimension_numbers = #tpu.dot_dimension_numbers<[1], [0], [0], [1], [0, 0, 1, 1], [], []>} : vector<32x128xbf16>, vector<128x512xbf16>, vector<32x512xf32> -> vector<32x512xf32>
    %c0_3 = arith.constant 0 : index
    %c0_4 = arith.constant 0 : index
    %3 = vector.load %arg4[%c0_3, %c0_4] : memref<1x512xf32, #tpu.memory_space<vmem>>, vector<1x512xf32>
    %4 = vector.broadcast %3 : vector<1x512xf32> to vector<32x512xf32>
    %5 = arith.addf %2, %4 : vector<32x512xf32>
    %cst_5 = arith.constant 0.000000e+00 : f32
    %6 = vector.broadcast %cst_5 : f32 to vector<32x512xf32>
    %7 = arith.maximumf %5, %6 : vector<32x512xf32>
    %8 = arith.truncf %7 : vector<32x512xf32> to vector<32x512xbf16>
    %c0_6 = arith.constant 0 : index
    %c0_7 = arith.constant 0 : index
    %9 = vector.load %arg5[%c0_6, %c0_7] : memref<32x512xbf16, #tpu.memory_space<vmem>>, vector<32x512xbf16>
    tpu.vector_store %arg5[%c0_6, %c0_7], %8 {strides = array<i32>} : memref<32x512xbf16, #tpu.memory_space<vmem>>, vector<32x512xbf16>,
    return
  }
  func.func @transform_0(%arg0: i32, %arg1: i32) -> (i32, i32) {
    %c0_i32 = arith.constant 0 : i32
    %c0_i32_0 = arith.constant 0 : i32
    return %arg0, %c0_i32 : i32, i32
  }
  func.func @transform_1(%arg0: i32, %arg1: i32) -> (i32, i32) {
    %c0_i32 = arith.constant 0 : i32
    %c0_i32_0 = arith.constant 0 : i32
    return %c0_i32, %arg1 : i32, i32
  }
  func.func @transform_2(%arg0: i32, %arg1: i32) -> (i32, i32) {
    %c0_i32 = arith.constant 0 : i32
    %c0_i32_0 = arith.constant 0 : i32
    return %c0_i32, %arg1 : i32, i32
  }
  func.func @transform_3(%arg0: i32, %arg1: i32) -> (i32, i32) {
    %c0_i32 = arith.constant 0 : i32
    return %arg0, %arg1 : i32, i32
  }
}

module attributes {stable_mosaic.version = 11 : i64} {
  func.func @_mm_bias_kernel(%arg0: i32, %arg1: i32, %arg2: memref<256x640xbf16, #tpu.memory_space<vmem>>, %arg3: memref<640x128xbf16, #tpu.memory_space<vmem>>, %arg4: memref<1x128xf32, #tpu.memory_space<vmem>>, %arg5: memref<256x128xf32, #tpu.memory_space<vmem>>) attributes {dimension_semantics = [#tpu.dimension_semantics<parallel>, #tpu.dimension_semantics<parallel>], iteration_bounds = array<i64: 1, 1>, scalar_prefetch = 0 : i64, scratch_operands = 0 : i64, tpu.core_type = #tpu.core_type<tc>, window_params = [{transform_indices = @transform_0, window_bounds = array<i64: 256, 640>}, {transform_indices = @transform_1, window_bounds = array<i64: 640, 128>}, {transform_indices = @transform_2, window_bounds = array<i64: 1, 128>}, {transform_indices = @transform_3, window_bounds = array<i64: 256, 128>}]} {
    %c0 = arith.constant 0 : index
    %c0_0 = arith.constant 0 : index
    %0 = vector.load %arg2[%c0, %c0_0] : memref<256x640xbf16, #tpu.memory_space<vmem>>, vector<256x640xbf16>
    %c0_1 = arith.constant 0 : index
    %c0_2 = arith.constant 0 : index
    %1 = vector.load %arg3[%c0_1, %c0_2] : memref<640x128xbf16, #tpu.memory_space<vmem>>, vector<640x128xbf16>
    %cst = arith.constant dense<0.000000e+00> : vector<256x128xf32>
    %2 = tpu.matmul %0, %1, %cst {dimension_numbers = #tpu.dot_dimension_numbers<[1], [0], [0], [1], [0, 0, 1, 1], [], []>} : vector<256x640xbf16>, vector<640x128xbf16>, vector<256x128xf32> -> vector<256x128xf32>
    %c0_3 = arith.constant 0 : index
    %c0_4 = arith.constant 0 : index
    %3 = vector.load %arg4[%c0_3, %c0_4] : memref<1x128xf32, #tpu.memory_space<vmem>>, vector<1x128xf32>
    %4 = vector.broadcast %3 : vector<1x128xf32> to vector<256x128xf32>
    %5 = arith.addf %2, %4 : vector<256x128xf32>
    %c0_5 = arith.constant 0 : index
    %c0_6 = arith.constant 0 : index
    %6 = vector.load %arg5[%c0_5, %c0_6] : memref<256x128xf32, #tpu.memory_space<vmem>>, vector<256x128xf32>
    tpu.vector_store %arg5[%c0_5, %c0_6], %5 {strides = array<i32>} : memref<256x128xf32, #tpu.memory_space<vmem>>, vector<256x128xf32>,
    return
  }
  func.func @transform_0(%arg0: i32, %arg1: i32) -> (i32, i32) {
    %c0_i32 = arith.constant 0 : i32
    %c0_i32_0 = arith.constant 0 : i32
    return %arg0, %c0_i32 : i32, i32
  }
  func.func @transform_1(%arg0: i32, %arg1: i32) -> (i32, i32) {
    %c0_i32 = arith.constant 0 : i32
    %c0_i32_0 = arith.constant 0 : i32
    return %c0_i32, %arg1 : i32, i32
  }
  func.func @transform_2(%arg0: i32, %arg1: i32) -> (i32, i32) {
    %c0_i32 = arith.constant 0 : i32
    %c0_i32_0 = arith.constant 0 : i32
    return %c0_i32, %arg1 : i32, i32
  }
  func.func @transform_3(%arg0: i32, %arg1: i32) -> (i32, i32) {
    %c0_i32 = arith.constant 0 : i32
    return %arg0, %arg1 : i32, i32
  }
}

module attributes {stable_mosaic.version = 11 : i64} {
  func.func @_mm_bias_kernel(%arg0: i32, %arg1: i32, %arg2: memref<32x80xbf16, #tpu.memory_space<vmem>>, %arg3: memref<80x512xbf16, #tpu.memory_space<vmem>>, %arg4: memref<1x512xf32, #tpu.memory_space<vmem>>, %arg5: memref<32x512xbf16, #tpu.memory_space<vmem>>) attributes {dimension_semantics = [#tpu.dimension_semantics<parallel>, #tpu.dimension_semantics<parallel>], iteration_bounds = array<i64: 1, 6>, scalar_prefetch = 0 : i64, scratch_operands = 0 : i64, tpu.core_type = #tpu.core_type<tc>, window_params = [{transform_indices = @transform_0, window_bounds = array<i64: 32, 80>}, {transform_indices = @transform_1, window_bounds = array<i64: 80, 512>}, {transform_indices = @transform_2, window_bounds = array<i64: 1, 512>}, {transform_indices = @transform_3, window_bounds = array<i64: 32, 512>}]} {
    %c0 = arith.constant 0 : index
    %c0_0 = arith.constant 0 : index
    %0 = vector.load %arg2[%c0, %c0_0] : memref<32x80xbf16, #tpu.memory_space<vmem>>, vector<32x80xbf16>
    %c0_1 = arith.constant 0 : index
    %c0_2 = arith.constant 0 : index
    %1 = vector.load %arg3[%c0_1, %c0_2] : memref<80x512xbf16, #tpu.memory_space<vmem>>, vector<80x512xbf16>
    %cst = arith.constant dense<0.000000e+00> : vector<32x512xf32>
    %2 = tpu.matmul %0, %1, %cst {dimension_numbers = #tpu.dot_dimension_numbers<[1], [0], [0], [1], [0, 0, 1, 1], [], []>} : vector<32x80xbf16>, vector<80x512xbf16>, vector<32x512xf32> -> vector<32x512xf32>
    %c0_3 = arith.constant 0 : index
    %c0_4 = arith.constant 0 : index
    %3 = vector.load %arg4[%c0_3, %c0_4] : memref<1x512xf32, #tpu.memory_space<vmem>>, vector<1x512xf32>
    %4 = vector.broadcast %3 : vector<1x512xf32> to vector<32x512xf32>
    %5 = arith.addf %2, %4 : vector<32x512xf32>
    %cst_5 = arith.constant 0.000000e+00 : f32
    %6 = vector.broadcast %cst_5 : f32 to vector<32x512xf32>
    %7 = arith.maximumf %5, %6 : vector<32x512xf32>
    %8 = arith.truncf %7 : vector<32x512xf32> to vector<32x512xbf16>
    %c0_6 = arith.constant 0 : index
    %c0_7 = arith.constant 0 : index
    %9 = vector.load %arg5[%c0_6, %c0_7] : memref<32x512xbf16, #tpu.memory_space<vmem>>, vector<32x512xbf16>
    tpu.vector_store %arg5[%c0_6, %c0_7], %8 {strides = array<i32>} : memref<32x512xbf16, #tpu.memory_space<vmem>>, vector<32x512xbf16>,
    return
  }
  func.func @transform_0(%arg0: i32, %arg1: i32) -> (i32, i32) {
    %c0_i32 = arith.constant 0 : i32
    %c0_i32_0 = arith.constant 0 : i32
    return %arg0, %c0_i32 : i32, i32
  }
  func.func @transform_1(%arg0: i32, %arg1: i32) -> (i32, i32) {
    %c0_i32 = arith.constant 0 : i32
    %c0_i32_0 = arith.constant 0 : i32
    return %c0_i32, %arg1 : i32, i32
  }
  func.func @transform_2(%arg0: i32, %arg1: i32) -> (i32, i32) {
    %c0_i32 = arith.constant 0 : i32
    %c0_i32_0 = arith.constant 0 : i32
    return %c0_i32, %arg1 : i32, i32
  }
  func.func @transform_3(%arg0: i32, %arg1: i32) -> (i32, i32) {
    %c0_i32 = arith.constant 0 : i32
    return %arg0, %arg1 : i32, i32
  }
}

module attributes {stable_mosaic.version = 11 : i64} {
  func.func @_mm_bias_kernel(%arg0: i32, %arg1: i32, %arg2: memref<256x384xbf16, #tpu.memory_space<vmem>>, %arg3: memref<384x128xbf16, #tpu.memory_space<vmem>>, %arg4: memref<1x128xf32, #tpu.memory_space<vmem>>, %arg5: memref<256x128xf32, #tpu.memory_space<vmem>>) attributes {dimension_semantics = [#tpu.dimension_semantics<parallel>, #tpu.dimension_semantics<parallel>], iteration_bounds = array<i64: 1, 1>, scalar_prefetch = 0 : i64, scratch_operands = 0 : i64, tpu.core_type = #tpu.core_type<tc>, window_params = [{transform_indices = @transform_0, window_bounds = array<i64: 256, 384>}, {transform_indices = @transform_1, window_bounds = array<i64: 384, 128>}, {transform_indices = @transform_2, window_bounds = array<i64: 1, 128>}, {transform_indices = @transform_3, window_bounds = array<i64: 256, 128>}]} {
    %c0 = arith.constant 0 : index
    %c0_0 = arith.constant 0 : index
    %0 = vector.load %arg2[%c0, %c0_0] : memref<256x384xbf16, #tpu.memory_space<vmem>>, vector<256x384xbf16>
    %c0_1 = arith.constant 0 : index
    %c0_2 = arith.constant 0 : index
    %1 = vector.load %arg3[%c0_1, %c0_2] : memref<384x128xbf16, #tpu.memory_space<vmem>>, vector<384x128xbf16>
    %cst = arith.constant dense<0.000000e+00> : vector<256x128xf32>
    %2 = tpu.matmul %0, %1, %cst {dimension_numbers = #tpu.dot_dimension_numbers<[1], [0], [0], [1], [0, 0, 1, 1], [], []>} : vector<256x384xbf16>, vector<384x128xbf16>, vector<256x128xf32> -> vector<256x128xf32>
    %c0_3 = arith.constant 0 : index
    %c0_4 = arith.constant 0 : index
    %3 = vector.load %arg4[%c0_3, %c0_4] : memref<1x128xf32, #tpu.memory_space<vmem>>, vector<1x128xf32>
    %4 = vector.broadcast %3 : vector<1x128xf32> to vector<256x128xf32>
    %5 = arith.addf %2, %4 : vector<256x128xf32>
    %c0_5 = arith.constant 0 : index
    %c0_6 = arith.constant 0 : index
    %6 = vector.load %arg5[%c0_5, %c0_6] : memref<256x128xf32, #tpu.memory_space<vmem>>, vector<256x128xf32>
    tpu.vector_store %arg5[%c0_5, %c0_6], %5 {strides = array<i32>} : memref<256x128xf32, #tpu.memory_space<vmem>>, vector<256x128xf32>,
    return
  }
  func.func @transform_0(%arg0: i32, %arg1: i32) -> (i32, i32) {
    %c0_i32 = arith.constant 0 : i32
    %c0_i32_0 = arith.constant 0 : i32
    return %arg0, %c0_i32 : i32, i32
  }
  func.func @transform_1(%arg0: i32, %arg1: i32) -> (i32, i32) {
    %c0_i32 = arith.constant 0 : i32
    %c0_i32_0 = arith.constant 0 : i32
    return %c0_i32, %arg1 : i32, i32
  }
  func.func @transform_2(%arg0: i32, %arg1: i32) -> (i32, i32) {
    %c0_i32 = arith.constant 0 : i32
    %c0_i32_0 = arith.constant 0 : i32
    return %c0_i32, %arg1 : i32, i32
  }
  func.func @transform_3(%arg0: i32, %arg1: i32) -> (i32, i32) {
    %c0_i32 = arith.constant 0 : i32
    return %arg0, %arg1 : i32, i32
  }
}

</mosaic_0001>

<llo_original>
// kernel: forward.6
$region0: #{forward.6}
  #allocation0 [shape = 'u32[]', space=smem, size = 0x4, offset = 0x4, fixed_abs, tag = 'smem constant byte address 0x4 - core index']
  #allocation1 [shape = 'u32[144,128]{1,0:T(1,128)}', space=vmem, size = 0x12000, scoped, tag = 'internal scratch']
  %s0 = inlined_call_operand.vmem [shape: bf16[32,128], index: 0, kind: input, shape index: {}]
  %s1 = inlined_call_operand.vmem [shape: bf16[128,5120], index: 1, kind: input, shape index: {}]
  %s2 = inlined_call_operand.vmem [shape: f32[1,5120], index: 2, kind: input, shape index: {}]
  %s3 = inlined_call_operand.vmem [shape: bf16[32,5120], index: 3, kind: output, shape index: {}]
  %s4 = sld [smem:[#allocation0]]
  $region87: #{forward.6} parent=0
    _
  %s6 = ssub.s32 1, %s4
  %s7 = scalar_select 0, %s6, %s4
  $region1: #{forward.6} parent=0
    #allocation2 [shape = 'u8[262144]{0}', space=vmem, size = 0x40000, scoped, tag = 'input window, operand 1']
    #allocation3 [shape = 'u8[65536]{0}', space=vmem, size = 0x10000, scoped, tag = 'output window, operand 0']
    loop: start=0, step=1, limit=12
    $region2: #{forward.6} parent=1 // loop_pre_header
      _
    $region3: #{forward.6} parent=1 // loop_header
      %s9 = sphi 0, %s13
      %p10 = scmp.ge.s32.totalorder %s9, 12
      %s16 = sphi 0, %s28
      %s17 = sphi 0, %s24
      %s18 = sphi 0, %s16
      %s19 = sphi 0, %s17
      %s20 = sphi 0, %s18
      %s21 = sphi 0, %s19
      %s31 = sphi 0, %s33
      %s34 = sphi 0, %s31
      %s35 = sphi 0, %s34
      %s51 = sphi 0, %s35
      %s57 = sphi 0, %s59
      %s60 = sphi 0, %s57
      %s61 = sphi 0, %s60
      %s77 = sphi 0, %s61
      %s83 = sphi 0, %s85
      %s86 = sphi 0, %s83
      %s87 = sphi 0, %s86
      %s103 = sphi 0, %s87
      %s111 = sphi 0, %s113
      %s114 = sphi 0, %s111
      %s115 = sphi 0, %s114
      %s131 = sphi 0, %s115
    $region4: #{forward.6} parent=1 // loop_header_branch
      %12 = sbr.rel (%p10) target = $region8
    $region5: #{forward.6} parent=1 // loop_body
      %s14 = ssub.s32 %s9, 1
      %s15 = ssub.s32 %s9, 2
      %s22 = sadd.s32 1, %s17
      %p23 = scmp.ge.s32.totalorder %s22, 10
      %s24 = scalar_select %p23, 0, %s22
      %s25 = sadd.s32 1, %s16
      %s26 = scalar_select %p23, %s25, %s16
      %p27 = scmp.ge.s32.totalorder %s26, 1
      %s28 = scalar_select %p27, 0, %s26
      %s29 = ssub.s32 %s16, %s28
      %p30 = scmp.eq.s32.totalorder %s29, 0
      %s32 = sadd.s32 %s31, 1
      %s33 = scalar_select %p30, %s31, %s32
      %p36 = pneg %p30
      %p37 = scmp.eq.s32.totalorder %s9, 9
      %p38 = por %p36, %p37
      %p39 = scmp.ne.s32.totalorder %s31, %s34
      %p40 = scmp.eq.s32.totalorder %s9, 0
      %p41 = por %p39, %p40
      %p42 = scmp.ne.s32.totalorder %s31, %s34
      %p43 = scmp.eq.s32.totalorder %s14, 9
      %p44 = por %p42, %p43
      %p45 = scmp.ne.s32.totalorder %s34, %s35
      %p46 = scmp.eq.s32.totalorder %s14, 0
      %p47 = por %p45, %p46
      %p48 = scmp.ne.s32.totalorder %s34, %s35
      %p49 = scmp.eq.s32.totalorder %s15, 9
      %p50 = por %p48, %p49
      %p52 = scmp.ne.s32.totalorder %s35, %s51
      %p53 = scmp.eq.s32.totalorder %s15, 0
      %p54 = por %p52, %p53
      %s55 = ssub.s32 %s17, %s24
      %p56 = scmp.eq.s32.totalorder %s55, 0
      %s58 = sadd.s32 %s57, 1
      %s59 = scalar_select %p56, %s57, %s58
      %p62 = pneg %p56
      %p63 = scmp.eq.s32.totalorder %s9, 9
      %p64 = por %p62, %p63
      %p65 = scmp.ne.s32.totalorder %s57, %s60
      %p66 = scmp.eq.s32.totalorder %s9, 0
      %p67 = por %p65, %p66
      %p68 = scmp.ne.s32.totalorder %s57, %s60
      %p69 = scmp.eq.s32.totalorder %s14, 9
      %p70 = por %p68, %p69
      %p71 = scmp.ne.s32.totalorder %s60, %s61
      %p72 = scmp.eq.s32.totalorder %s14, 0
      %p73 = por %p71, %p72
      %p74 = scmp.ne.s32.totalorder %s60, %s61
      %p75 = scmp.eq.s32.totalorder %s15, 9
      %p76 = por %p74, %p75
      %p78 = scmp.ne.s32.totalorder %s61, %s77
      %p79 = scmp.eq.s32.totalorder %s15, 0
      %p80 = por %p78, %p79
      %s81 = ssub.s32 %s17, %s24
      %p82 = scmp.eq.s32.totalorder %s81, 0
      %s84 = sadd.s32 %s83, 1
      %s85 = scalar_select %p82, %s83, %s84
      %p88 = pneg %p82
      %p89 = scmp.eq.s32.totalorder %s9, 9
      %p90 = por %p88, %p89
      %p91 = scmp.ne.s32.totalorder %s83, %s86
      %p92 = scmp.eq.s32.totalorder %s9, 0
      %p93 = por %p91, %p92
      %p94 = scmp.ne.s32.totalorder %s83, %s86
      %p95 = scmp.eq.s32.totalorder %s14, 9
      %p96 = por %p94, %p95
      %p97 = scmp.ne.s32.totalorder %s86, %s87
      %p98 = scmp.eq.s32.totalorder %s14, 0
      %p99 = por %p97, %p98
      %p100 = scmp.ne.s32.totalorder %s86, %s87
      %p101 = scmp.eq.s32.totalorder %s15, 9
      %p102 = por %p100, %p101
      %p104 = scmp.ne.s32.totalorder %s87, %s103
      %p105 = scmp.eq.s32.totalorder %s15, 0
      %p106 = por %p104, %p105
      %s107 = ssub.s32 %s16, %s28
      %s108 = ssub.s32 %s17, %s24
      %s109 = sor.u32 %s107, %s108
      %p110 = scmp.eq.s32.totalorder %s109, 0
      %s112 = sadd.s32 %s111, 1
      %s113 = scalar_select %p110, %s111, %s112
      %p116 = pneg %p110
      %p117 = scmp.eq.s32.totalorder %s9, 9
      %p118 = por %p116, %p117
      %p119 = scmp.ne.s32.totalorder %s111, %s114
      %p120 = scmp.eq.s32.totalorder %s9, 0
      %p121 = por %p119, %p120
      %p122 = scmp.ne.s32.totalorder %s111, %s114
      %p123 = scmp.eq.s32.totalorder %s14, 9
      %p124 = por %p122, %p123
      %p125 = scmp.ne.s32.totalorder %s114, %s115
      %p126 = scmp.eq.s32.totalorder %s14, 0
      %p127 = por %p125, %p126
      %p128 = scmp.ne.s32.totalorder %s114, %s115
      %p129 = scmp.eq.s32.totalorder %s15, 9
      %p130 = por %p128, %p129
      %p132 = scmp.ne.s32.totalorder %s115, %s131
      %p133 = scmp.eq.s32.totalorder %s15, 0
      %p134 = por %p132, %p133
      %p135 = scmp.le.s32.totalorder 1, %s9
      %p136 = scmp.lt.s32.totalorder %s9, 11
      %p137 = pnand %p135, %p136
      %p138 = pneg %p137
      // Predicated region
      $region9: #{forward.6} parent=5 // pred_check
        _
      $region10: #{forward.6} parent=5 // pred_check_branch
        %140 = sbr.rel (%p137) target = $region12
      $region11: #{forward.6} parent=5 // pred_region
        %s141 = ssub.s32 %s9, 1
        // Predicated region
        $region13: #{forward.6} parent=11 // pred_check
          %p142 = pneg %p47
        $region14: #{forward.6} parent=11 // pred_check_branch
          %144 = sbr.rel (%p142) target = $region16
        $region15: #{forward.6} parent=11 // pred_region
          %s145 = smul.u32 4, %s18
          %p146 = scmp.lt.s32.totalorder %s145, 3
          %s147 = scalar_select %p146, %s145, 3
          %s148 = smul.addr %s147, 4
          %s149 = scalar_lea.vmem %s0, %s148
          %s150 = smul.u32 4, %s18
        $region16: #{forward.6} parent=11 // pred_fallthru
          _
      $region12: #{forward.6} parent=5 // pred_fallthru
        _
      %p151 = scmp.lt.s32.totalorder %s9, 10
      // Predicated region
      $region17: #{forward.6} parent=5 // pred_check
        %p152 = pneg %p151
      $region18: #{forward.6} parent=5 // pred_check_branch
        %154 = sbr.rel (%p152) target = $region20
      $region19: #{forward.6} parent=5 // pred_region
        // Predicated region
        $region21: #{forward.6} parent=19 // pred_check
          %p155 = pneg %p67
        $region22: #{forward.6} parent=19 // pred_check_branch
          %157 = sbr.rel (%p155) target = $region24
        $region23: #{forward.6} parent=19 // pred_region
          %s158 = sand.u32 %s57, 1
          %s159 = sand.u32 %s57, 1
          %s160 = smul.addr %s159, 256
          %s161 = scalar_lea.vmem [#allocation2], %s160
          %s162 = smul.u32 4, %s17
          %s163 = smul.addr %s162, 4
          %s164 = scalar_lea.vmem %s1, %s163
          // Predicated region
          $region25: #{forward.6} parent=23 // pred_check
            _
          $region26: #{forward.6} parent=23 // pred_check_branch
            %166 = sbr.rel (0) target = $region28
          $region27: #{forward.6} parent=23 // pred_region
            // Predicated region
            $region29: #{forward.6} parent=27 // pred_check
              _
            $region30: #{forward.6} parent=27 // pred_check_branch
              %168 = sbr.rel (0) target = $region32
            $region31: #{forward.6} parent=27 // pred_region
              loop: start=0, step=1, limit=1
              $region33: #{forward.6} parent=31 // loop_pre_header
                _
              $region34: #{forward.6} parent=31 // loop_header
                %s170 = sphi 0, %s174
                %p171 = scmp.ge.s32.totalorder %s170, 1
                %s175 = sphi %s164, %s164
                %s176 = sphi %s161, %s161
              $region35: #{forward.6} parent=31 // loop_header_branch
                %173 = sbr.rel (%p171) target = $region39
              $region36: #{forward.6} parent=31 // loop_body
                %v177 = vld [vmem:[%s175] sm:$0xff]
                %178 = vst [vmem:[%s176] sm:$0xff] %v177
                %v179 = vld [vmem:[%s175 + $0x8] sm:$0xff]
                %180 = vst [vmem:[%s176 + $0x8] sm:$0xff] %v179
                %v181 = vld [vmem:[%s175 + $0xa0] sm:$0xff]
                %182 = vst [vmem:[%s176 + $0x10] sm:$0xff] %v181
                %v183 = vld [vmem:[%s175 + $0xa8] sm:$0xff]
                %184 = vst [vmem:[%s176 + $0x18] sm:$0xff] %v183
                %v185 = vld [vmem:[%s175 + $0x140] sm:$0xff]
                %186 = vst [vmem:[%s176 + $0x20] sm:$0xff] %v185
                %v187 = vld [vmem:[%s175 + $0x148] sm:$0xff]
                %188 = vst [vmem:[%s176 + $0x28] sm:$0xff] %v187
                %v189 = vld [vmem:[%s175 + $0x1e0] sm:$0xff]
                %190 = vst [vmem:[%s176 + $0x30] sm:$0xff] %v189
                %v191 = vld [vmem:[%s175 + $0x1e8] sm:$0xff]
                %192 = vst [vmem:[%s176 + $0x38] sm:$0xff] %v191
                %v193 = vld [vmem:[%s175 + $0x280] sm:$0xff]
                %194 = vst [vmem:[%s176 + $0x40] sm:$0xff] %v193
                %v195 = vld [vmem:[%s175 + $0x288] sm:$0xff]
                %196 = vst [vmem:[%s176 + $0x48] sm:$0xff] %v195
                %v197 = vld [vmem:[%s175 + $0x320] sm:$0xff]
                %198 = vst [vmem:[%s176 + $0x50] sm:$0xff] %v197
                %v199 = vld [vmem:[%s175 + $0x328] sm:$0xff]
                %200 = vst [vmem:[%s176 + $0x58] sm:$0xff] %v199
                %v201 = vld [vmem:[%s175 + $0x3c0] sm:$0xff]
                %202 = vst [vmem:[%s176 + $0x60] sm:$0xff] %v201
                %v203 = vld [vmem:[%s175 + $0x3c8] sm:$0xff]
                %204 = vst [vmem:[%s176 + $0x68] sm:$0xff] %v203
                %v205 = vld [vmem:[%s175 + $0x460] sm:$0xff]
                %206 = vst [vmem:[%s176 + $0x70] sm:$0xff] %v205
                %v207 = vld [vmem:[%s175 + $0x468] sm:$0xff]
                %208 = vst [vmem:[%s176 + $0x78] sm:$0xff] %v207
                %v209 = vld [vmem:[%s175 + $0x500] sm:$0xff]
                %210 = vst [vmem:[%s176 + $0x80] sm:$0xff] %v209
                %v211 = vld [vmem:[%s175 + $0x508] sm:$0xff]
                %212 = vst [vmem:[%s176 + $0x88] sm:$0xff] %v211
                %v213 = vld [vmem:[%s175 + $0x5a0] sm:$0xff]
                %214 = vst [vmem:[%s176 + $0x90] sm:$0xff] %v213
                %v215 = vld [vmem:[%s175 + $0x5a8] sm:$0xff]
                %216 = vst [vmem:[%s176 + $0x98] sm:$0xff] %v215
                %v217 = vld [vmem:[%s175 + $0x640] sm:$0xff]
                %218 = vst [vmem:[%s176 + $0xa0] sm:$0xff] %v217
                %v219 = vld [vmem:[%s175 + $0x648] sm:$0xff]
                %220 = vst [vmem:[%s176 + $0xa8] sm:$0xff] %v219
                %v221 = vld [vmem:[%s175 + $0x6e0] sm:$0xff]
                %222 = vst [vmem:[%s176 + $0xb0] sm:$0xff] %v221
                %v223 = vld [vmem:[%s175 + $0x6e8] sm:$0xff]
                %224 = vst [vmem:[%s176 + $0xb8] sm:$0xff] %v223
                %v225 = vld [vmem:[%s175 + $0x780] sm:$0xff]
                %226 = vst [vmem:[%s176 + $0xc0] sm:$0xff] %v225
                %v227 = vld [vmem:[%s175 + $0x788] sm:$0xff]
                %228 = vst [vmem:[%s176 + $0xc8] sm:$0xff] %v227
                %v229 = vld [vmem:[%s175 + $0x820] sm:$0xff]
                %230 = vst [vmem:[%s176 + $0xd0] sm:$0xff] %v229
                %v231 = vld [vmem:[%s175 + $0x828] sm:$0xff]
                %232 = vst [vmem:[%s176 + $0xd8] sm:$0xff] %v231
                %v233 = vld [vmem:[%s175 + $0x8c0] sm:$0xff]
                %234 = vst [vmem:[%s176 + $0xe0] sm:$0xff] %v233
                %v235 = vld [vmem:[%s175 + $0x8c8] sm:$0xff]
                %236 = vst [vmem:[%s176 + $0xe8] sm:$0xff] %v235
                %v237 = vld [vmem:[%s175 + $0x960] sm:$0xff]
                %238 = vst [vmem:[%s176 + $0xf0] sm:$0xff] %v237
                %v239 = vld [vmem:[%s175 + $0x968] sm:$0xff]
                %240 = vst [vmem:[%s176 + $0xf8] sm:$0xff] %v239
              $region37: #{forward.6} parent=31 // loop_footer
                %s174 = sadd.s32 1, %s170
              $region38: #{forward.6} parent=31 // loop_footer_branch
                %169 = sbr.rel target = $region34
              $region39: #{forward.6} parent=31 // loop_exit
                _
            $region32: #{forward.6} parent=27 // pred_fallthru
              _
            // Predicated region
            $region40: #{forward.6} parent=27 // pred_check
              _
            $region41: #{forward.6} parent=27 // pred_check_branch
              %242 = sbr.rel target = $region43
            $region42: #{forward.6} parent=27 // pred_region
              _
            $region43: #{forward.6} parent=27 // pred_fallthru
              _
          $region28: #{forward.6} parent=23 // pred_fallthru
            _
          %243 = vnop
        $region24: #{forward.6} parent=19 // pred_fallthru
          _
        // Predicated region
        $region44: #{forward.6} parent=19 // pred_check
          %p244 = pneg %p93
        $region45: #{forward.6} parent=19 // pred_check_branch
          %246 = sbr.rel (%p244) target = $region47
        $region46: #{forward.6} parent=19 // pred_region
          %s247 = smul.u32 4, %s17
          %p248 = scmp.lt.s32.totalorder %s247, 39
          %s249 = scalar_select %p248, %s247, 39
          %s250 = scalar_lea.vmem %s2, %s249
          %s251 = smul.u32 4, %s17
        $region47: #{forward.6} parent=19 // pred_fallthru
          _
      $region20: #{forward.6} parent=5 // pred_fallthru
        _
      %p252 = scmp.le.s32.totalorder 1, %s9
      %p253 = scmp.lt.s32.totalorder %s9, 11
      %p254 = pnand %p252, %p253
      %p255 = pneg %p254
      // Predicated region
      $region48: #{forward.6} parent=5 // pred_check
        _
      $region49: #{forward.6} parent=5 // pred_check_branch
        %257 = sbr.rel (%p254) target = $region51
      $region50: #{forward.6} parent=5 // pred_region
        %s258 = ssub.s32 %s9, 1
        %s259 = sand.u32 %s60, 1
        %s260 = sand.u32 %s60, 1
        %s261 = smul.addr %s260, 256
        %s262 = scalar_lea.vmem [#allocation2], %s261
        // Predicated region
        $region52: #{forward.6} parent=50 // pred_check
          %p263 = pneg %p73
        $region53: #{forward.6} parent=50 // pred_check_branch
          %265 = sbr.rel (%p263) target = $region55
        $region54: #{forward.6} parent=50 // pred_region
          _
        $region55: #{forward.6} parent=50 // pred_fallthru
          _
        %s266 = smul.u32 4, %s18
        %p267 = scmp.lt.s32.totalorder %s266, 3
        %s268 = scalar_select %p267, %s266, 3
        %s269 = smul.addr %s268, 4
        %s270 = scalar_lea.vmem %s0, %s269
        %p271 = pneg %p47
        %p272 = pneg %p44
        %s273 = sand.u32 %s60, 1
        %s274 = sand.u32 %s60, 1
        %s275 = smul.addr %s274, 256
        %s276 = scalar_lea.vmem [#allocation2], %s275
        %p277 = pneg %p73
        %p278 = pneg %p70
        %s279 = smul.u32 4, %s19
        %p280 = scmp.lt.s32.totalorder %s279, 39
        %s281 = scalar_select %p280, %s279, 39
        %s282 = scalar_lea.vmem %s2, %s281
        %p283 = pneg %p99
        %p284 = pneg %p96
        %p285 = pneg %p127
        %p286 = pneg %p124
        %s287 = sand.u32 %s114, 1
        %s288 = sand.u32 %s114, 1
        %s289 = smul.addr %s288, 64
        %s290 = scalar_lea.vmem [#allocation3], %s289
        %s291 = smul.u32 4, %s18
        %p292 = scmp.lt.s32.totalorder %s291, 3
        %s293 = scalar_select %p292, %s291, 3
        %s294 = smul.addr %s293, 4
        %s295 = scalar_lea.vmem %s0, %s294
        %s296 = smul.u32 4, %s18
        %s297 = smul.u32 4, %s19
        %s298 = smul.u32 4, %s19
        %p299 = scmp.lt.s32.totalorder %s298, 39
        %s300 = scalar_select %p299, %s298, 39
        %s301 = scalar_lea.vmem %s2, %s300
        %s302 = smul.u32 4, %s19
        %s303 = smul.u32 4, %s18
        %s304 = smul.u32 4, %s19
        %v306 = vld [vmem:[%s295] sm:$0xf]
        %v307 = vld [vmem:[%s295 + $0x4] sm:$0xf]
        %v308 = vld [vmem:[%s295 + $0x8] sm:$0xf]
        %v309 = vld [vmem:[%s295 + $0xc] sm:$0xf]
        %v310 = vld [vmem:[%s262] sm:$0xff]
        %v311 = vld [vmem:[%s262 + $0x8] sm:$0xff]
        %v312 = vld [vmem:[%s262 + $0x10] sm:$0xff]
        %v313 = vld [vmem:[%s262 + $0x18] sm:$0xff]
        %v314 = vld [vmem:[%s262 + $0x20] sm:$0xff]
        %v315 = vld [vmem:[%s262 + $0x28] sm:$0xff]
        %v316 = vld [vmem:[%s262 + $0x30] sm:$0xff]
        %v317 = vld [vmem:[%s262 + $0x38] sm:$0xff]
        %v318 = vld [vmem:[%s262 + $0x40] sm:$0xff]
        %v319 = vld [vmem:[%s262 + $0x48] sm:$0xff]
        %v320 = vld [vmem:[%s262 + $0x50] sm:$0xff]
        %v321 = vld [vmem:[%s262 + $0x58] sm:$0xff]
        %v322 = vld [vmem:[%s262 + $0x60] sm:$0xff]
        %v323 = vld [vmem:[%s262 + $0x68] sm:$0xff]
        %v324 = vld [vmem:[%s262 + $0x70] sm:$0xff]
        %v325 = vld [vmem:[%s262 + $0x78] sm:$0xff]
        %v326 = vld [vmem:[%s262 + $0x80] sm:$0xff]
        %v327 = vld [vmem:[%s262 + $0x88] sm:$0xff]
        %v328 = vld [vmem:[%s262 + $0x90] sm:$0xff]
        %v329 = vld [vmem:[%s262 + $0x98] sm:$0xff]
        %v330 = vld [vmem:[%s262 + $0xa0] sm:$0xff]
        %v331 = vld [vmem:[%s262 + $0xa8] sm:$0xff]
        %v332 = vld [vmem:[%s262 + $0xb0] sm:$0xff]
        %v333 = vld [vmem:[%s262 + $0xb8] sm:$0xff]
        %v334 = vld [vmem:[%s262 + $0xc0] sm:$0xff]
        %v335 = vld [vmem:[%s262 + $0xc8] sm:$0xff]
        %v336 = vld [vmem:[%s262 + $0xd0] sm:$0xff]
        %v337 = vld [vmem:[%s262 + $0xd8] sm:$0xff]
        %v338 = vld [vmem:[%s262 + $0xe0] sm:$0xff]
        %v339 = vld [vmem:[%s262 + $0xe8] sm:$0xff]
        %v340 = vld [vmem:[%s262 + $0xf0] sm:$0xff]
        %v341 = vld [vmem:[%s262 + $0xf8] sm:$0xff]
        %v342 = vld [vmem:[%s301] sm:$0xf]
        %v344 = vlaneseq
        %v345 = vshrl.u32 %v344, 7
        %v346 = vsub.s32 0, %v345
        %v347 = vrot.slane %v342, %v346
        %v348 = vlaneseq
        %v349 = vshrl.u32 %v348, 7
        %v350 = vsub.s32 1, %v349
        %v351 = vrot.slane %v342, %v350
        %v352 = vlaneseq
        %v353 = vshrl.u32 %v352, 7
        %v354 = vsub.s32 2, %v353
        %v355 = vrot.slane %v342, %v354
        %v356 = vlaneseq
        %v357 = vshrl.u32 %v356, 7
        %v358 = vsub.s32 3, %v357
        %v359 = vrot.slane %v342, %v358
        %v368 = vunpack.c.l.b16 %v306
        %v369 = vunpack.c.l.b16 %v307
        %v370 = vunpack.c.l.b16 %v308
        %v371 = vunpack.c.l.b16 %v309
        %v372 = vpack.c.b16 %v369, %v368
        %v373 = vpack.c.b16 %v371, %v370
        %v408 = vunpack.c.l.b16 %v310
        %v409 = vunpack.c.h.b16 %v310
        %v410 = vunpack.c.l.b16 %v311
        %v411 = vunpack.c.h.b16 %v311
        %v412 = vunpack.c.l.b16 %v312
        %v413 = vunpack.c.h.b16 %v312
        %v414 = vunpack.c.l.b16 %v313
        %v415 = vunpack.c.h.b16 %v313
        %v416 = vunpack.c.l.b16 %v314
        %v417 = vunpack.c.h.b16 %v314
        %v418 = vunpack.c.l.b16 %v315
        %v419 = vunpack.c.h.b16 %v315
        %v420 = vunpack.c.l.b16 %v316
        %v421 = vunpack.c.h.b16 %v316
        %v422 = vunpack.c.l.b16 %v317
        %v423 = vunpack.c.h.b16 %v317
        %v424 = vunpack.c.l.b16 %v318
        %v425 = vunpack.c.h.b16 %v318
        %v426 = vunpack.c.l.b16 %v319
        %v427 = vunpack.c.h.b16 %v319
        %v428 = vunpack.c.l.b16 %v320
        %v429 = vunpack.c.h.b16 %v320
        %v430 = vunpack.c.l.b16 %v321
        %v431 = vunpack.c.h.b16 %v321
        %v432 = vunpack.c.l.b16 %v322
        %v433 = vunpack.c.h.b16 %v322
        %v434 = vunpack.c.l.b16 %v323
        %v435 = vunpack.c.h.b16 %v323
        %v436 = vunpack.c.l.b16 %v324
        %v437 = vunpack.c.h.b16 %v324
        %v438 = vunpack.c.l.b16 %v325
        %v439 = vunpack.c.h.b16 %v325
        %v440 = vunpack.c.l.b16 %v326
        %v441 = vunpack.c.h.b16 %v326
        %v442 = vunpack.c.l.b16 %v327
        %v443 = vunpack.c.h.b16 %v327
        %v444 = vunpack.c.l.b16 %v328
        %v445 = vunpack.c.h.b16 %v328
        %v446 = vunpack.c.l.b16 %v329
        %v447 = vunpack.c.h.b16 %v329
        %v448 = vunpack.c.l.b16 %v330
        %v449 = vunpack.c.h.b16 %v330
        %v450 = vunpack.c.l.b16 %v331
        %v451 = vunpack.c.h.b16 %v331
        %v452 = vunpack.c.l.b16 %v332
        %v453 = vunpack.c.h.b16 %v332
        %v454 = vunpack.c.l.b16 %v333
        %v455 = vunpack.c.h.b16 %v333
        %v456 = vunpack.c.l.b16 %v334
        %v457 = vunpack.c.h.b16 %v334
        %v458 = vunpack.c.l.b16 %v335
        %v459 = vunpack.c.h.b16 %v335
        %v460 = vunpack.c.l.b16 %v336
        %v461 = vunpack.c.h.b16 %v336
        %v462 = vunpack.c.l.b16 %v337
        %v463 = vunpack.c.h.b16 %v337
        %v464 = vunpack.c.l.b16 %v338
        %v465 = vunpack.c.h.b16 %v338
        %v466 = vunpack.c.l.b16 %v339
        %v467 = vunpack.c.h.b16 %v339
        %v468 = vunpack.c.l.b16 %v340
        %v469 = vunpack.c.h.b16 %v340
        %v470 = vunpack.c.l.b16 %v341
        %v471 = vunpack.c.h.b16 %v341
        %v472 = vpack.c.b16 %v412, %v408
        %v473 = vpack.c.b16 %v413, %v409
        %v474 = vpack.c.b16 %v414, %v410
        %v475 = vpack.c.b16 %v415, %v411
        %v476 = vpack.c.b16 %v420, %v416
        %v477 = vpack.c.b16 %v421, %v417
        %v478 = vpack.c.b16 %v422, %v418
        %v479 = vpack.c.b16 %v423, %v419
        %v480 = vpack.c.b16 %v428, %v424
        %v481 = vpack.c.b16 %v429, %v425
        %v482 = vpack.c.b16 %v430, %v426
        %v483 = vpack.c.b16 %v431, %v427
        %v484 = vpack.c.b16 %v436, %v432
        %v485 = vpack.c.b16 %v437, %v433
        %v486 = vpack.c.b16 %v438, %v434
        %v487 = vpack.c.b16 %v439, %v435
        %v488 = vpack.c.b16 %v444, %v440
        %v489 = vpack.c.b16 %v445, %v441
        %v490 = vpack.c.b16 %v446, %v442
        %v491 = vpack.c.b16 %v447, %v443
        %v492 = vpack.c.b16 %v452, %v448
        %v493 = vpack.c.b16 %v453, %v449
        %v494 = vpack.c.b16 %v454, %v450
        %v495 = vpack.c.b16 %v455, %v451
        %v496 = vpack.c.b16 %v460, %v456
        %v497 = vpack.c.b16 %v461, %v457
        %v498 = vpack.c.b16 %v462, %v458
        %v499 = vpack.c.b16 %v463, %v459
        %v500 = vpack.c.b16 %v468, %v464
        %v501 = vpack.c.b16 %v469, %v465
        %v502 = vpack.c.b16 %v470, %v466
        %v503 = vpack.c.b16 %v471, %v467
        %536 = vmatprep.subr.bf16.mxu0 %v473
        %537 = vmatpush1.bf16.msra.mxu0 %v472
        %538 = vmatprep.subr.bf16.mxu0 %v477
        %539 = vmatpush1.bf16.msra.mxu0 %v476
        %540 = vmatprep.subr.bf16.mxu0 %v481
        %541 = vmatpush1.bf16.msra.mxu0 %v480
        %542 = vmatprep.subr.bf16.mxu0 %v485
        %543 = vmatpush1.bf16.msra.mxu0 %v484
        %544 = vmatprep.subr.bf16.mxu0 %v489
        %545 = vmatpush1.bf16.msra.mxu0 %v488
        %546 = vmatprep.subr.bf16.mxu0 %v493
        %547 = vmatpush1.bf16.msra.mxu0 %v492
        %548 = vmatprep.subr.bf16.mxu0 %v497
        %549 = vmatpush1.bf16.msra.mxu0 %v496
        %550 = vmatprep.subr.bf16.mxu0 %v501
        %551 = vmatpush1.bf16.msra.mxu0 %v500
        %552 = vmatprep.subr.bf16.mxu0 0
        %553 = vmatpush1.bf16.msra.mxu0 0
        %554 = vmatprep.subr.bf16.mxu0 0
        %555 = vmatpush1.bf16.msra.mxu0 0
        %556 = vmatprep.subr.bf16.mxu0 0
        %557 = vmatpush1.bf16.msra.mxu0 0
        %558 = vmatprep.subr.bf16.mxu0 0
        %559 = vmatpush1.bf16.msra.mxu0 0
        %560 = vmatprep.subr.bf16.mxu0 0
        %561 = vmatpush1.bf16.msra.mxu0 0
        %562 = vmatprep.subr.bf16.mxu0 0
        %563 = vmatpush1.bf16.msra.mxu0 0
        %564 = vmatprep.subr.bf16.mxu0 0
        %565 = vmatpush1.bf16.msra.mxu0 0
        %566 = vmatprep.subr.bf16.mxu0 0
        %567 = vmatpush1.bf16.msra.mxu0 0
        %568 = vmatprep.mubr.bf16.mxu0 0
        %569 = vmatmul.mubr.bf16.gmra.mrb[0].mxu0 %v372
        %v570 = vpop.f32.mrb[0].mxu0
        %v571 = vadd.f32 %v347, %v570
        %v572 = vpop.f32.mrb[0].mxu0
        %v573 = vadd.f32 %v351, %v572
        %v574 = vpop.f32.mrb[0].mxu0
        %v575 = vadd.f32 %v347, %v574
        %v576 = vpop.f32.mrb[0].mxu0
        %v577 = vadd.f32 %v351, %v576
        %578 = vmatprep.mubr.bf16.mxu0 0
        %579 = vmatmul.mubr.bf16.gmra.mrb[0].mxu0 %v373
        %v580 = vpop.f32.mrb[0].mxu0
        %v581 = vadd.f32 %v347, %v580
        %v582 = vpop.f32.mrb[0].mxu0
        %v583 = vadd.f32 %v351, %v582
        %v584 = vpop.f32.mrb[0].mxu0
        %v585 = vadd.f32 %v347, %v584
        %v586 = vpop.f32.mrb[0].mxu0
        %v587 = vadd.f32 %v351, %v586
        %588 = vdwg.mxu0
        %589 = vmatprep.subr.bf16.mxu0 %v475
        %590 = vmatpush1.bf16.msra.mxu0 %v474
        %591 = vmatprep.subr.bf16.mxu0 %v479
        %592 = vmatpush1.bf16.msra.mxu0 %v478
        %593 = vmatprep.subr.bf16.mxu0 %v483
        %594 = vmatpush1.bf16.msra.mxu0 %v482
        %595 = vmatprep.subr.bf16.mxu0 %v487
        %596 = vmatpush1.bf16.msra.mxu0 %v486
        %597 = vmatprep.subr.bf16.mxu0 %v491
        %598 = vmatpush1.bf16.msra.mxu0 %v490
        %599 = vmatprep.subr.bf16.mxu0 %v495
        %600 = vmatpush1.bf16.msra.mxu0 %v494
        %601 = vmatprep.subr.bf16.mxu0 %v499
        %602 = vmatpush1.bf16.msra.mxu0 %v498
        %603 = vmatprep.subr.bf16.mxu0 %v503
        %604 = vmatpush1.bf16.msra.mxu0 %v502
        %605 = vmatprep.subr.bf16.mxu0 0
        %606 = vmatpush1.bf16.msra.mxu0 0
        %607 = vmatprep.subr.bf16.mxu0 0
        %608 = vmatpush1.bf16.msra.mxu0 0
        %609 = vmatprep.subr.bf16.mxu0 0
        %610 = vmatpush1.bf16.msra.mxu0 0
        %611 = vmatprep.subr.bf16.mxu0 0
        %612 = vmatpush1.bf16.msra.mxu0 0
        %613 = vmatprep.subr.bf16.mxu0 0
        %614 = vmatpush1.bf16.msra.mxu0 0
        %615 = vmatprep.subr.bf16.mxu0 0
        %616 = vmatpush1.bf16.msra.mxu0 0
        %617 = vmatprep.subr.bf16.mxu0 0
        %618 = vmatpush1.bf16.msra.mxu0 0
        %619 = vmatprep.subr.bf16.mxu0 0
        %620 = vmatpush1.bf16.msra.mxu0 0
        %621 = vmatprep.mubr.bf16.mxu0 0
        %622 = vmatmul.mubr.bf16.gmra.mrb[0].mxu0 %v372
        %v623 = vpop.f32.mrb[0].mxu0
        %v624 = vadd.f32 %v355, %v623
        %v625 = vpop.f32.mrb[0].mxu0
        %v626 = vadd.f32 %v359, %v625
        %v627 = vpop.f32.mrb[0].mxu0
        %v628 = vadd.f32 %v355, %v627
        %v629 = vpop.f32.mrb[0].mxu0
        %v630 = vadd.f32 %v359, %v629
        %631 = vmatprep.mubr.bf16.mxu0 0
        %632 = vmatmul.mubr.bf16.gmra.mrb[0].mxu0 %v373
        %v633 = vpop.f32.mrb[0].mxu0
        %v634 = vadd.f32 %v355, %v633
        %v635 = vpop.f32.mrb[0].mxu0
        %v636 = vadd.f32 %v359, %v635
        %v637 = vpop.f32.mrb[0].mxu0
        %v638 = vadd.f32 %v355, %v637
        %v639 = vpop.f32.mrb[0].mxu0
        %v640 = vadd.f32 %v359, %v639
        %641 = vdwg.mxu0
        %v642 = vmax.f32 %v571, 0.0
        %v643 = vmax.f32 %v573, 0.0
        %v644 = vmax.f32 %v624, 0.0
        %v645 = vmax.f32 %v626, 0.0
        %v646 = vmax.f32 %v575, 0.0
        %v647 = vmax.f32 %v577, 0.0
        %v648 = vmax.f32 %v628, 0.0
        %v649 = vmax.f32 %v630, 0.0
        %v650 = vmax.f32 %v581, 0.0
        %v651 = vmax.f32 %v583, 0.0
        %v652 = vmax.f32 %v634, 0.0
        %v653 = vmax.f32 %v636, 0.0
        %v654 = vmax.f32 %v585, 0.0
        %v655 = vmax.f32 %v587, 0.0
        %v656 = vmax.f32 %v638, 0.0
        %v657 = vmax.f32 %v640, 0.0
        %v658 = vpack.c.bf16 %v646, %v642
        %v659 = vpack.c.bf16 %v647, %v643
        %v660 = vpack.c.bf16 %v648, %v644
        %v661 = vpack.c.bf16 %v649, %v645
        %v662 = vpack.c.bf16 %v654, %v650
        %v663 = vpack.c.bf16 %v655, %v651
        %v664 = vpack.c.bf16 %v656, %v652
        %v665 = vpack.c.bf16 %v657, %v653
        %v674 = vunpack.c.l.b16 %v658
        %v675 = vunpack.c.l.b16 %v659
        %v676 = vunpack.c.l.b16 %v660
        %v677 = vunpack.c.l.b16 %v661
        %v678 = vunpack.c.h.b16 %v658
        %v679 = vunpack.c.h.b16 %v659
        %v680 = vunpack.c.h.b16 %v660
        %v681 = vunpack.c.h.b16 %v661
        %v682 = vunpack.c.l.b16 %v662
        %v683 = vunpack.c.l.b16 %v663
        %v684 = vunpack.c.l.b16 %v664
        %v685 = vunpack.c.l.b16 %v665
        %v686 = vunpack.c.h.b16 %v662
        %v687 = vunpack.c.h.b16 %v663
        %v688 = vunpack.c.h.b16 %v664
        %v689 = vunpack.c.h.b16 %v665
        %v690 = vpack.c.b16 %v675, %v674
        %v691 = vpack.c.b16 %v677, %v676
        %v692 = vpack.c.b16 %v679, %v678
        %v693 = vpack.c.b16 %v681, %v680
        %v694 = vpack.c.b16 %v683, %v682
        %v695 = vpack.c.b16 %v685, %v684
        %v696 = vpack.c.b16 %v687, %v686
        %v697 = vpack.c.b16 %v689, %v688
        %706 = vst [vmem:[%s290] sm:$0xff] %v690
        %707 = vst [vmem:[%s290 + $0x8] sm:$0xff] %v691
        %708 = vst [vmem:[%s290 + $0x10] sm:$0xff] %v692
        %709 = vst [vmem:[%s290 + $0x18] sm:$0xff] %v693
        %710 = vst [vmem:[%s290 + $0x20] sm:$0xff] %v694
        %711 = vst [vmem:[%s290 + $0x28] sm:$0xff] %v695
        %712 = vst [vmem:[%s290 + $0x30] sm:$0xff] %v696
        %713 = vst [vmem:[%s290 + $0x38] sm:$0xff] %v697
        %s714 = sand.u32 %s114, 1
        %s715 = sand.u32 %s114, 1
        %s716 = smul.addr %s715, 64
        %s717 = scalar_lea.vmem [#allocation3], %s716
        // Predicated region
        $region56: #{forward.6} parent=50 // pred_check
          %p718 = pneg %p124
        $region57: #{forward.6} parent=50 // pred_check_branch
          %720 = sbr.rel (%p718) target = $region59
        $region58: #{forward.6} parent=50 // pred_region
          %s721 = smul.u32 4, %s18
          %s722 = smul.u32 4, %s19
          %s723 = smul.addr %s721, 40
          %s724 = sadd.s32 %s722, %s723
          %s725 = smul.addr %s724, 4
          %s726 = scalar_lea.vmem %s3, %s725
          // Predicated region
          $region60: #{forward.6} parent=58 // pred_check
            _
          $region61: #{forward.6} parent=58 // pred_check_branch
            %728 = sbr.rel (0) target = $region63
          $region62: #{forward.6} parent=58 // pred_region
            // Predicated region
            $region64: #{forward.6} parent=62 // pred_check
              _
            $region65: #{forward.6} parent=62 // pred_check_branch
              %730 = sbr.rel (0) target = $region67
            $region66: #{forward.6} parent=62 // pred_region
              loop: start=0, step=1, limit=1
              $region68: #{forward.6} parent=66 // loop_pre_header
                _
              $region69: #{forward.6} parent=66 // loop_header
                %s732 = sphi 0, %s736
                %p733 = scmp.ge.s32.totalorder %s732, 1
                %s737 = sphi %s717, %s717
                %s738 = sphi %s726, %s726
              $region70: #{forward.6} parent=66 // loop_header_branch
                %735 = sbr.rel (%p733) target = $region74
              $region71: #{forward.6} parent=66 // loop_body
                %v739 = vld [vmem:[%s737] sm:$0xff]
                %740 = vst [vmem:[%s738] sm:$0xff] %v739
                %v741 = vld [vmem:[%s737 + $0x8] sm:$0xff]
                %742 = vst [vmem:[%s738 + $0x8] sm:$0xff] %v741
                %v743 = vld [vmem:[%s737 + $0x10] sm:$0xff]
                %744 = vst [vmem:[%s738 + $0xa0] sm:$0xff] %v743
                %v745 = vld [vmem:[%s737 + $0x18] sm:$0xff]
                %746 = vst [vmem:[%s738 + $0xa8] sm:$0xff] %v745
                %v747 = vld [vmem:[%s737 + $0x20] sm:$0xff]
                %748 = vst [vmem:[%s738 + $0x140] sm:$0xff] %v747
                %v749 = vld [vmem:[%s737 + $0x28] sm:$0xff]
                %750 = vst [vmem:[%s738 + $0x148] sm:$0xff] %v749
                %v751 = vld [vmem:[%s737 + $0x30] sm:$0xff]
                %752 = vst [vmem:[%s738 + $0x1e0] sm:$0xff] %v751
                %v753 = vld [vmem:[%s737 + $0x38] sm:$0xff]
                %754 = vst [vmem:[%s738 + $0x1e8] sm:$0xff] %v753
              $region72: #{forward.6} parent=66 // loop_footer
                %s736 = sadd.s32 1, %s732
              $region73: #{forward.6} parent=66 // loop_footer_branch
                %731 = sbr.rel target = $region69
              $region74: #{forward.6} parent=66 // loop_exit
                _
            $region67: #{forward.6} parent=62 // pred_fallthru
              _
            // Predicated region
            $region75: #{forward.6} parent=62 // pred_check
              _
            $region76: #{forward.6} parent=62 // pred_check_branch
              %756 = sbr.rel target = $region78
            $region77: #{forward.6} parent=62 // pred_region
              _
            $region78: #{forward.6} parent=62 // pred_fallthru
              _
          $region63: #{forward.6} parent=58 // pred_fallthru
            _
          %757 = vnop
        $region59: #{forward.6} parent=50 // pred_fallthru
          _
      $region51: #{forward.6} parent=5 // pred_fallthru
        _
      %p758 = scmp.le.s32.totalorder 2, %s9
      // Predicated region
      $region79: #{forward.6} parent=5 // pred_check
        %p759 = pneg %p758
      $region80: #{forward.6} parent=5 // pred_check_branch
        %761 = sbr.rel (%p759) target = $region82
      $region81: #{forward.6} parent=5 // pred_region
        %s762 = ssub.s32 %s9, 2
        // Predicated region
        $region83: #{forward.6} parent=81 // pred_check
          %p763 = pneg %p130
        $region84: #{forward.6} parent=81 // pred_check_branch
          %765 = sbr.rel (%p763) target = $region86
        $region85: #{forward.6} parent=81 // pred_region
          %s766 = sand.u32 %s115, 1
          %s767 = sand.u32 %s115, 1
          %s768 = smul.addr %s767, 64
          %s769 = scalar_lea.vmem [#allocation3], %s768
        $region86: #{forward.6} parent=81 // pred_fallthru
          _
      $region82: #{forward.6} parent=5 // pred_fallthru
        _
    $region6: #{forward.6} parent=1 // loop_footer
      %s13 = sadd.s32 1, %s9
    $region7: #{forward.6} parent=1 // loop_footer_branch
      %8 = sbr.rel target = $region3
    $region8: #{forward.6} parent=1 // loop_exit
      _

// kernel: forward.7
$region0: #{forward.7}
  #allocation0 [shape = 'u32[]', space=smem, size = 0x4, offset = 0x4, fixed_abs, tag = 'smem constant byte address 0x4 - core index']
  #allocation1 [shape = 'u32[144,128]{1,0:T(1,128)}', space=vmem, size = 0x12000, scoped, tag = 'internal scratch']
  %s0 = inlined_call_operand.vmem [shape: bf16[256,640], index: 0, kind: input, shape index: {}]
  %s1 = inlined_call_operand.vmem [shape: bf16[640,128], index: 1, kind: input, shape index: {}]
  %s2 = inlined_call_operand.vmem [shape: f32[1,128], index: 2, kind: input, shape index: {}]
  %s3 = inlined_call_operand.vmem [shape: f32[256,128], index: 3, kind: output, shape index: {}]
  %s4 = sld [smem:[#allocation0]]
  $region22: #{forward.7} parent=0
    _
  %s6 = ssub.s32 1, %s4
  %s7 = scalar_select 0, %s6, %s4
  // Predicated region
  $region2: #{forward.7} parent=0 // pred_check
    _
  $region3: #{forward.7} parent=0 // pred_check_branch
    %9 = sbr.rel (0) target = $region5
  $region4: #{forward.7} parent=0 // pred_region
    _
  $region5: #{forward.7} parent=0 // pred_fallthru
    _
  // Predicated region
  $region6: #{forward.7} parent=0 // pred_check
    _
  $region7: #{forward.7} parent=0 // pred_check_branch
    %11 = sbr.rel (0) target = $region9
  $region8: #{forward.7} parent=0 // pred_region
    _
  $region9: #{forward.7} parent=0 // pred_fallthru
    _
  // Predicated region
  $region10: #{forward.7} parent=0 // pred_check
    _
  $region11: #{forward.7} parent=0 // pred_check_branch
    %13 = sbr.rel (0) target = $region13
  $region12: #{forward.7} parent=0 // pred_region
    _
  $region13: #{forward.7} parent=0 // pred_fallthru
    _
  %v15 = vld [vmem:[%s0] sm:$0xff]
  %v16 = vld [vmem:[%s0 + $0x8] sm:$0xff]
  %v17 = vld [vmem:[%s0 + $0x10] sm:$0xf]
  %v18 = vld [vmem:[%s0 + $0x14] sm:$0xff]
  %v19 = vld [vmem:[%s0 + $0x1c] sm:$0xff]
  %v20 = vld [vmem:[%s0 + $0x24] sm:$0xf]
  %v21 = vld [vmem:[%s0 + $0x28] sm:$0xff]
  %v22 = vld [vmem:[%s0 + $0x30] sm:$0xff]
  %v23 = vld [vmem:[%s0 + $0x38] sm:$0xf]
  %v24 = vld [vmem:[%s0 + $0x3c] sm:$0xff]
  %v25 = vld [vmem:[%s0 + $0x44] sm:$0xff]
  %v26 = vld [vmem:[%s0 + $0x4c] sm:$0xf]
  %v27 = vld [vmem:[%s0 + $0x50] sm:$0xff]
  %v28 = vld [vmem:[%s0 + $0x58] sm:$0xff]
  %v29 = vld [vmem:[%s0 + $0x60] sm:$0xf]
  %v30 = vld [vmem:[%s0 + $0x64] sm:$0xff]
  %v31 = vld [vmem:[%s0 + $0x6c] sm:$0xff]
  %v32 = vld [vmem:[%s0 + $0x74] sm:$0xf]
  %v33 = vld [vmem:[%s0 + $0x78] sm:$0xff]
  %v34 = vld [vmem:[%s0 + $0x80] sm:$0xff]
  %v35 = vld [vmem:[%s0 + $0x88] sm:$0xf]
  %v36 = vld [vmem:[%s0 + $0x8c] sm:$0xff]
  %v37 = vld [vmem:[%s0 + $0x94] sm:$0xff]
  %v38 = vld [vmem:[%s0 + $0x9c] sm:$0xf]
  %v39 = vld [vmem:[%s0 + $0xa0] sm:$0xff]
  %v40 = vld [vmem:[%s0 + $0xa8] sm:$0xff]
  %v41 = vld [vmem:[%s0 + $0xb0] sm:$0xf]
  %v42 = vld [vmem:[%s0 + $0xb4] sm:$0xff]
  %v43 = vld [vmem:[%s0 + $0xbc] sm:$0xff]
  %v44 = vld [vmem:[%s0 + $0xc4] sm:$0xf]
  %v45 = vld [vmem:[%s0 + $0xc8] sm:$0xff]
  %v46 = vld [vmem:[%s0 + $0xd0] sm:$0xff]
  %v47 = vld [vmem:[%s0 + $0xd8] sm:$0xf]
  %v48 = vld [vmem:[%s0 + $0xdc] sm:$0xff]
  %v49 = vld [vmem:[%s0 + $0xe4] sm:$0xff]
  %v50 = vld [vmem:[%s0 + $0xec] sm:$0xf]
  %v51 = vld [vmem:[%s0 + $0xf0] sm:$0xff]
  %v52 = vld [vmem:[%s0 + $0xf8] sm:$0xff]
  %v53 = vld [vmem:[%s0 + $0x100] sm:$0xf]
  %v54 = vld [vmem:[%s0 + $0x104] sm:$0xff]
  %v55 = vld [vmem:[%s0 + $0x10c] sm:$0xff]
  %v56 = vld [vmem:[%s0 + $0x114] sm:$0xf]
  %v57 = vld [vmem:[%s0 + $0x118] sm:$0xff]
  %v58 = vld [vmem:[%s0 + $0x120] sm:$0xff]
  %v59 = vld [vmem:[%s0 + $0x128] sm:$0xf]
  %v60 = vld [vmem:[%s0 + $0x12c] sm:$0xff]
  %v61 = vld [vmem:[%s0 + $0x134] sm:$0xff]
  %v62 = vld [vmem:[%s0 + $0x13c] sm:$0xf]
  %v63 = vld [vmem:[%s0 + $0x140] sm:$0xff]
  %v64 = vld [vmem:[%s0 + $0x148] sm:$0xff]
  %v65 = vld [vmem:[%s0 + $0x150] sm:$0xf]
  %v66 = vld [vmem:[%s0 + $0x154] sm:$0xff]
  %v67 = vld [vmem:[%s0 + $0x15c] sm:$0xff]
  %v68 = vld [vmem:[%s0 + $0x164] sm:$0xf]
  %v69 = vld [vmem:[%s0 + $0x168] sm:$0xff]
  %v70 = vld [vmem:[%s0 + $0x170] sm:$0xff]
  %v71 = vld [vmem:[%s0 + $0x178] sm:$0xf]
  %v72 = vld [vmem:[%s0 + $0x17c] sm:$0xff]
  %v73 = vld [vmem:[%s0 + $0x184] sm:$0xff]
  %v74 = vld [vmem:[%s0 + $0x18c] sm:$0xf]
  %v75 = vld [vmem:[%s0 + $0x190] sm:$0xff]
  %v76 = vld [vmem:[%s0 + $0x198] sm:$0xff]
  %v77 = vld [vmem:[%s0 + $0x1a0] sm:$0xf]
  %v78 = vld [vmem:[%s0 + $0x1a4] sm:$0xff]
  %v79 = vld [vmem:[%s0 + $0x1ac] sm:$0xff]
  %v80 = vld [vmem:[%s0 + $0x1b4] sm:$0xf]
  %v81 = vld [vmem:[%s0 + $0x1b8] sm:$0xff]
  %v82 = vld [vmem:[%s0 + $0x1c0] sm:$0xff]
  %v83 = vld [vmem:[%s0 + $0x1c8] sm:$0xf]
  %v84 = vld [vmem:[%s0 + $0x1cc] sm:$0xff]
  %v85 = vld [vmem:[%s0 + $0x1d4] sm:$0xff]
  %v86 = vld [vmem:[%s0 + $0x1dc] sm:$0xf]
  %v87 = vld [vmem:[%s0 + $0x1e0] sm:$0xff]
  %v88 = vld [vmem:[%s0 + $0x1e8] sm:$0xff]
  %v89 = vld [vmem:[%s0 + $0x1f0] sm:$0xf]
  %v90 = vld [vmem:[%s0 + $0x1f4] sm:$0xff]
  %v91 = vld [vmem:[%s0 + $0x1fc] sm:$0xff]
  %v92 = vld [vmem:[%s0 + $0x204] sm:$0xf]
  %v93 = vld [vmem:[%s0 + $0x208] sm:$0xff]
  %v94 = vld [vmem:[%s0 + $0x210] sm:$0xff]
  %v95 = vld [vmem:[%s0 + $0x218] sm:$0xf]
  %v96 = vld [vmem:[%s0 + $0x21c] sm:$0xff]
  %v97 = vld [vmem:[%s0 + $0x224] sm:$0xff]
  %v98 = vld [vmem:[%s0 + $0x22c] sm:$0xf]
  %v99 = vld [vmem:[%s0 + $0x230] sm:$0xff]
  %v100 = vld [vmem:[%s0 + $0x238] sm:$0xff]
  %v101 = vld [vmem:[%s0 + $0x240] sm:$0xf]
  %v102 = vld [vmem:[%s0 + $0x244] sm:$0xff]
  %v103 = vld [vmem:[%s0 + $0x24c] sm:$0xff]
  %v104 = vld [vmem:[%s0 + $0x254] sm:$0xf]
  %v105 = vld [vmem:[%s0 + $0x258] sm:$0xff]
  %v106 = vld [vmem:[%s0 + $0x260] sm:$0xff]
  %v107 = vld [vmem:[%s0 + $0x268] sm:$0xf]
  %v108 = vld [vmem:[%s0 + $0x26c] sm:$0xff]
  %v109 = vld [vmem:[%s0 + $0x274] sm:$0xff]
  %v110 = vld [vmem:[%s0 + $0x27c] sm:$0xf]
  %v111 = vld [vmem:[%s1] sm:$0xf]
  %v112 = vld [vmem:[%s1 + $0x4] sm:$0xf]
  %v113 = vld [vmem:[%s1 + $0x8] sm:$0xf]
  %v114 = vld [vmem:[%s1 + $0xc] sm:$0xf]
  %v115 = vld [vmem:[%s1 + $0x10] sm:$0xf]
  %v116 = vld [vmem:[%s1 + $0x14] sm:$0xf]
  %v117 = vld [vmem:[%s1 + $0x18] sm:$0xf]
  %v118 = vld [vmem:[%s1 + $0x1c] sm:$0xf]
  %v119 = vld [vmem:[%s1 + $0x20] sm:$0xf]
  %v120 = vld [vmem:[%s1 + $0x24] sm:$0xf]
  %v121 = vld [vmem:[%s1 + $0x28] sm:$0xf]
  %v122 = vld [vmem:[%s1 + $0x2c] sm:$0xf]
  %v123 = vld [vmem:[%s1 + $0x30] sm:$0xf]
  %v124 = vld [vmem:[%s1 + $0x34] sm:$0xf]
  %v125 = vld [vmem:[%s1 + $0x38] sm:$0xf]
  %v126 = vld [vmem:[%s1 + $0x3c] sm:$0xf]
  %v127 = vld [vmem:[%s1 + $0x40] sm:$0xf]
  %v128 = vld [vmem:[%s1 + $0x44] sm:$0xf]
  %v129 = vld [vmem:[%s1 + $0x48] sm:$0xf]
  %v130 = vld [vmem:[%s1 + $0x4c] sm:$0xf]
  %v131 = vld [vmem:[%s1 + $0x50] sm:$0xf]
  %v132 = vld [vmem:[%s1 + $0x54] sm:$0xf]
  %v133 = vld [vmem:[%s1 + $0x58] sm:$0xf]
  %v134 = vld [vmem:[%s1 + $0x5c] sm:$0xf]
  %v135 = vld [vmem:[%s1 + $0x60] sm:$0xf]
  %v136 = vld [vmem:[%s1 + $0x64] sm:$0xf]
  %v137 = vld [vmem:[%s1 + $0x68] sm:$0xf]
  %v138 = vld [vmem:[%s1 + $0x6c] sm:$0xf]
  %v139 = vld [vmem:[%s1 + $0x70] sm:$0xf]
  %v140 = vld [vmem:[%s1 + $0x74] sm:$0xf]
  %v141 = vld [vmem:[%s1 + $0x78] sm:$0xf]
  %v142 = vld [vmem:[%s1 + $0x7c] sm:$0xf]
  %v143 = vld [vmem:[%s1 + $0x80] sm:$0xf]
  %v144 = vld [vmem:[%s1 + $0x84] sm:$0xf]
  %v145 = vld [vmem:[%s1 + $0x88] sm:$0xf]
  %v146 = vld [vmem:[%s1 + $0x8c] sm:$0xf]
  %v147 = vld [vmem:[%s1 + $0x90] sm:$0xf]
  %v148 = vld [vmem:[%s1 + $0x94] sm:$0xf]
  %v149 = vld [vmem:[%s1 + $0x98] sm:$0xf]
  %v150 = vld [vmem:[%s1 + $0x9c] sm:$0xf]
  %v151 = vld [vmem:[%s1 + $0xa0] sm:$0xf]
  %v152 = vld [vmem:[%s1 + $0xa4] sm:$0xf]
  %v153 = vld [vmem:[%s1 + $0xa8] sm:$0xf]
  %v154 = vld [vmem:[%s1 + $0xac] sm:$0xf]
  %v155 = vld [vmem:[%s1 + $0xb0] sm:$0xf]
  %v156 = vld [vmem:[%s1 + $0xb4] sm:$0xf]
  %v157 = vld [vmem:[%s1 + $0xb8] sm:$0xf]
  %v158 = vld [vmem:[%s1 + $0xbc] sm:$0xf]
  %v159 = vld [vmem:[%s1 + $0xc0] sm:$0xf]
  %v160 = vld [vmem:[%s1 + $0xc4] sm:$0xf]
  %v161 = vld [vmem:[%s1 + $0xc8] sm:$0xf]
  %v162 = vld [vmem:[%s1 + $0xcc] sm:$0xf]
  %v163 = vld [vmem:[%s1 + $0xd0] sm:$0xf]
  %v164 = vld [vmem:[%s1 + $0xd4] sm:$0xf]
  %v165 = vld [vmem:[%s1 + $0xd8] sm:$0xf]
  %v166 = vld [vmem:[%s1 + $0xdc] sm:$0xf]
  %v167 = vld [vmem:[%s1 + $0xe0] sm:$0xf]
  %v168 = vld [vmem:[%s1 + $0xe4] sm:$0xf]
  %v169 = vld [vmem:[%s1 + $0xe8] sm:$0xf]
  %v170 = vld [vmem:[%s1 + $0xec] sm:$0xf]
  %v171 = vld [vmem:[%s1 + $0xf0] sm:$0xf]
  %v172 = vld [vmem:[%s1 + $0xf4] sm:$0xf]
  %v173 = vld [vmem:[%s1 + $0xf8] sm:$0xf]
  %v174 = vld [vmem:[%s1 + $0xfc] sm:$0xf]
  %v175 = vld [vmem:[%s1 + $0x100] sm:$0xf]
  %v176 = vld [vmem:[%s1 + $0x104] sm:$0xf]
  %v177 = vld [vmem:[%s1 + $0x108] sm:$0xf]
  %v178 = vld [vmem:[%s1 + $0x10c] sm:$0xf]
  %v179 = vld [vmem:[%s1 + $0x110] sm:$0xf]
  %v180 = vld [vmem:[%s1 + $0x114] sm:$0xf]
  %v181 = vld [vmem:[%s1 + $0x118] sm:$0xf]
  %v182 = vld [vmem:[%s1 + $0x11c] sm:$0xf]
  %v183 = vld [vmem:[%s1 + $0x120] sm:$0xf]
  %v184 = vld [vmem:[%s1 + $0x124] sm:$0xf]
  %v185 = vld [vmem:[%s1 + $0x128] sm:$0xf]
  %v186 = vld [vmem:[%s1 + $0x12c] sm:$0xf]
  %v187 = vld [vmem:[%s1 + $0x130] sm:$0xf]
  %v188 = vld [vmem:[%s1 + $0x134] sm:$0xf]
  %v189 = vld [vmem:[%s1 + $0x138] sm:$0xf]
  %v190 = vld [vmem:[%s1 + $0x13c] sm:$0xf]
  %v191 = vld [vmem:[%s2] sm:$0x1]
  %v193 = vlaneseq
  %v194 = vshrl.u32 %v193, 7
  %v195 = vsub.s32 0, %v194
  %v196 = vrot.slane %v191, %v195
  %v294 = vunpack.c.l.b16 %v15
  %v295 = vunpack.c.h.b16 %v15
  %v296 = vunpack.c.l.b16 %v16
  %v297 = vunpack.c.h.b16 %v16
  %v298 = vunpack.c.l.b16 %v17
  %v299 = vunpack.c.l.b16 %v18
  %v300 = vunpack.c.h.b16 %v18
  %v301 = vunpack.c.l.b16 %v19
  %v302 = vunpack.c.h.b16 %v19
  %v303 = vunpack.c.l.b16 %v20
  %v304 = vunpack.c.l.b16 %v21
  %v305 = vunpack.c.h.b16 %v21
  %v306 = vunpack.c.l.b16 %v22
  %v307 = vunpack.c.h.b16 %v22
  %v308 = vunpack.c.l.b16 %v23
  %v309 = vunpack.c.l.b16 %v24
  %v310 = vunpack.c.h.b16 %v24
  %v311 = vunpack.c.l.b16 %v25
  %v312 = vunpack.c.h.b16 %v25
  %v313 = vunpack.c.l.b16 %v26
  %v314 = vunpack.c.l.b16 %v27
  %v315 = vunpack.c.h.b16 %v27
  %v316 = vunpack.c.l.b16 %v28
  %v317 = vunpack.c.h.b16 %v28
  %v318 = vunpack.c.l.b16 %v29
  %v319 = vunpack.c.l.b16 %v30
  %v320 = vunpack.c.h.b16 %v30
  %v321 = vunpack.c.l.b16 %v31
  %v322 = vunpack.c.h.b16 %v31
  %v323 = vunpack.c.l.b16 %v32
  %v324 = vunpack.c.l.b16 %v33
  %v325 = vunpack.c.h.b16 %v33
  %v326 = vunpack.c.l.b16 %v34
  %v327 = vunpack.c.h.b16 %v34
  %v328 = vunpack.c.l.b16 %v35
  %v329 = vunpack.c.l.b16 %v36
  %v330 = vunpack.c.h.b16 %v36
  %v331 = vunpack.c.l.b16 %v37
  %v332 = vunpack.c.h.b16 %v37
  %v333 = vunpack.c.l.b16 %v38
  %v334 = vunpack.c.l.b16 %v39
  %v335 = vunpack.c.h.b16 %v39
  %v336 = vunpack.c.l.b16 %v40
  %v337 = vunpack.c.h.b16 %v40
  %v338 = vunpack.c.l.b16 %v41
  %v339 = vunpack.c.l.b16 %v42
  %v340 = vunpack.c.h.b16 %v42
  %v341 = vunpack.c.l.b16 %v43
  %v342 = vunpack.c.h.b16 %v43
  %v343 = vunpack.c.l.b16 %v44
  %v344 = vunpack.c.l.b16 %v45
  %v345 = vunpack.c.h.b16 %v45
  %v346 = vunpack.c.l.b16 %v46
  %v347 = vunpack.c.h.b16 %v46
  %v348 = vunpack.c.l.b16 %v47
  %v349 = vunpack.c.l.b16 %v48
  %v350 = vunpack.c.h.b16 %v48
  %v351 = vunpack.c.l.b16 %v49
  %v352 = vunpack.c.h.b16 %v49
  %v353 = vunpack.c.l.b16 %v50
  %v354 = vunpack.c.l.b16 %v51
  %v355 = vunpack.c.h.b16 %v51
  %v356 = vunpack.c.l.b16 %v52
  %v357 = vunpack.c.h.b16 %v52
  %v358 = vunpack.c.l.b16 %v53
  %v359 = vunpack.c.l.b16 %v54
  %v360 = vunpack.c.h.b16 %v54
  %v361 = vunpack.c.l.b16 %v55
  %v362 = vunpack.c.h.b16 %v55
  %v363 = vunpack.c.l.b16 %v56
  %v364 = vunpack.c.l.b16 %v57
  %v365 = vunpack.c.h.b16 %v57
  %v366 = vunpack.c.l.b16 %v58
  %v367 = vunpack.c.h.b16 %v58
  %v368 = vunpack.c.l.b16 %v59
  %v369 = vunpack.c.l.b16 %v60
  %v370 = vunpack.c.h.b16 %v60
  %v371 = vunpack.c.l.b16 %v61
  %v372 = vunpack.c.h.b16 %v61
  %v373 = vunpack.c.l.b16 %v62
  %v374 = vunpack.c.l.b16 %v63
  %v375 = vunpack.c.h.b16 %v63
  %v376 = vunpack.c.l.b16 %v64
  %v377 = vunpack.c.h.b16 %v64
  %v378 = vunpack.c.l.b16 %v65
  %v379 = vunpack.c.l.b16 %v66
  %v380 = vunpack.c.h.b16 %v66
  %v381 = vunpack.c.l.b16 %v67
  %v382 = vunpack.c.h.b16 %v67
  %v383 = vunpack.c.l.b16 %v68
  %v384 = vunpack.c.l.b16 %v69
  %v385 = vunpack.c.h.b16 %v69
  %v386 = vunpack.c.l.b16 %v70
  %v387 = vunpack.c.h.b16 %v70
  %v388 = vunpack.c.l.b16 %v71
  %v389 = vunpack.c.l.b16 %v72
  %v390 = vunpack.c.h.b16 %v72
  %v391 = vunpack.c.l.b16 %v73
  %v392 = vunpack.c.h.b16 %v73
  %v393 = vunpack.c.l.b16 %v74
  %v394 = vunpack.c.l.b16 %v75
  %v395 = vunpack.c.h.b16 %v75
  %v396 = vunpack.c.l.b16 %v76
  %v397 = vunpack.c.h.b16 %v76
  %v398 = vunpack.c.l.b16 %v77
  %v399 = vunpack.c.l.b16 %v78
  %v400 = vunpack.c.h.b16 %v78
  %v401 = vunpack.c.l.b16 %v79
  %v402 = vunpack.c.h.b16 %v79
  %v403 = vunpack.c.l.b16 %v80
  %v404 = vunpack.c.l.b16 %v81
  %v405 = vunpack.c.h.b16 %v81
  %v406 = vunpack.c.l.b16 %v82
  %v407 = vunpack.c.h.b16 %v82
  %v408 = vunpack.c.l.b16 %v83
  %v409 = vunpack.c.l.b16 %v84
  %v410 = vunpack.c.h.b16 %v84
  %v411 = vunpack.c.l.b16 %v85
  %v412 = vunpack.c.h.b16 %v85
  %v413 = vunpack.c.l.b16 %v86
  %v414 = vunpack.c.l.b16 %v87
  %v415 = vunpack.c.h.b16 %v87
  %v416 = vunpack.c.l.b16 %v88
  %v417 = vunpack.c.h.b16 %v88
  %v418 = vunpack.c.l.b16 %v89
  %v419 = vunpack.c.l.b16 %v90
  %v420 = vunpack.c.h.b16 %v90
  %v421 = vunpack.c.l.b16 %v91
  %v422 = vunpack.c.h.b16 %v91
  %v423 = vunpack.c.l.b16 %v92
  %v424 = vunpack.c.l.b16 %v93
  %v425 = vunpack.c.h.b16 %v93
  %v426 = vunpack.c.l.b16 %v94
  %v427 = vunpack.c.h.b16 %v94
  %v428 = vunpack.c.l.b16 %v95
  %v429 = vunpack.c.l.b16 %v96
  %v430 = vunpack.c.h.b16 %v96
  %v431 = vunpack.c.l.b16 %v97
  %v432 = vunpack.c.h.b16 %v97
  %v433 = vunpack.c.l.b16 %v98
  %v434 = vunpack.c.l.b16 %v99
  %v435 = vunpack.c.h.b16 %v99
  %v436 = vunpack.c.l.b16 %v100
  %v437 = vunpack.c.h.b16 %v100
  %v438 = vunpack.c.l.b16 %v101
  %v439 = vunpack.c.l.b16 %v102
  %v440 = vunpack.c.h.b16 %v102
  %v441 = vunpack.c.l.b16 %v103
  %v442 = vunpack.c.h.b16 %v103
  %v443 = vunpack.c.l.b16 %v104
  %v444 = vunpack.c.l.b16 %v105
  %v445 = vunpack.c.h.b16 %v105
  %v446 = vunpack.c.l.b16 %v106
  %v447 = vunpack.c.h.b16 %v106
  %v448 = vunpack.c.l.b16 %v107
  %v449 = vunpack.c.l.b16 %v108
  %v450 = vunpack.c.h.b16 %v108
  %v451 = vunpack.c.l.b16 %v109
  %v452 = vunpack.c.h.b16 %v109
  %v453 = vunpack.c.l.b16 %v110
  %v454 = vpack.c.b16 %v299, %v294
  %v455 = vpack.c.b16 %v300, %v295
  %v456 = vpack.c.b16 %v301, %v296
  %v457 = vpack.c.b16 %v302, %v297
  %v458 = vpack.c.b16 %v303, %v298
  %v459 = vpack.c.b16 %v309, %v304
  %v460 = vpack.c.b16 %v310, %v305
  %v461 = vpack.c.b16 %v311, %v306
  %v462 = vpack.c.b16 %v312, %v307
  %v463 = vpack.c.b16 %v313, %v308
  %v464 = vpack.c.b16 %v319, %v314
  %v465 = vpack.c.b16 %v320, %v315
  %v466 = vpack.c.b16 %v321, %v316
  %v467 = vpack.c.b16 %v322, %v317
  %v468 = vpack.c.b16 %v323, %v318
  %v469 = vpack.c.b16 %v329, %v324
  %v470 = vpack.c.b16 %v330, %v325
  %v471 = vpack.c.b16 %v331, %v326
  %v472 = vpack.c.b16 %v332, %v327
  %v473 = vpack.c.b16 %v333, %v328
  %v474 = vpack.c.b16 %v339, %v334
  %v475 = vpack.c.b16 %v340, %v335
  %v476 = vpack.c.b16 %v341, %v336
  %v477 = vpack.c.b16 %v342, %v337
  %v478 = vpack.c.b16 %v343, %v338
  %v479 = vpack.c.b16 %v349, %v344
  %v480 = vpack.c.b16 %v350, %v345
  %v481 = vpack.c.b16 %v351, %v346
  %v482 = vpack.c.b16 %v352, %v347
  %v483 = vpack.c.b16 %v353, %v348
  %v484 = vpack.c.b16 %v359, %v354
  %v485 = vpack.c.b16 %v360, %v355
  %v486 = vpack.c.b16 %v361, %v356
  %v487 = vpack.c.b16 %v362, %v357
  %v488 = vpack.c.b16 %v363, %v358
  %v489 = vpack.c.b16 %v369, %v364
  %v490 = vpack.c.b16 %v370, %v365
  %v491 = vpack.c.b16 %v371, %v366
  %v492 = vpack.c.b16 %v372, %v367
  %v493 = vpack.c.b16 %v373, %v368
  %v494 = vpack.c.b16 %v379, %v374
  %v495 = vpack.c.b16 %v380, %v375
  %v496 = vpack.c.b16 %v381, %v376
  %v497 = vpack.c.b16 %v382, %v377
  %v498 = vpack.c.b16 %v383, %v378
  %v499 = vpack.c.b16 %v389, %v384
  %v500 = vpack.c.b16 %v390, %v385
  %v501 = vpack.c.b16 %v391, %v386
  %v502 = vpack.c.b16 %v392, %v387
  %v503 = vpack.c.b16 %v393, %v388
  %v504 = vpack.c.b16 %v399, %v394
  %v505 = vpack.c.b16 %v400, %v395
  %v506 = vpack.c.b16 %v401, %v396
  %v507 = vpack.c.b16 %v402, %v397
  %v508 = vpack.c.b16 %v403, %v398
  %v509 = vpack.c.b16 %v409, %v404
  %v510 = vpack.c.b16 %v410, %v405
  %v511 = vpack.c.b16 %v411, %v406
  %v512 = vpack.c.b16 %v412, %v407
  %v513 = vpack.c.b16 %v413, %v408
  %v514 = vpack.c.b16 %v419, %v414
  %v515 = vpack.c.b16 %v420, %v415
  %v516 = vpack.c.b16 %v421, %v416
  %v517 = vpack.c.b16 %v422, %v417
  %v518 = vpack.c.b16 %v423, %v418
  %v519 = vpack.c.b16 %v429, %v424
  %v520 = vpack.c.b16 %v430, %v425
  %v521 = vpack.c.b16 %v431, %v426
  %v522 = vpack.c.b16 %v432, %v427
  %v523 = vpack.c.b16 %v433, %v428
  %v524 = vpack.c.b16 %v439, %v434
  %v525 = vpack.c.b16 %v440, %v435
  %v526 = vpack.c.b16 %v441, %v436
  %v527 = vpack.c.b16 %v442, %v437
  %v528 = vpack.c.b16 %v443, %v438
  %v529 = vpack.c.b16 %v449, %v444
  %v530 = vpack.c.b16 %v450, %v445
  %v531 = vpack.c.b16 %v451, %v446
  %v532 = vpack.c.b16 %v452, %v447
  %v533 = vpack.c.b16 %v453, %v448
  %v694 = vunpack.c.l.b16 %v111
  %v695 = vunpack.c.l.b16 %v112
  %v696 = vunpack.c.l.b16 %v113
  %v697 = vunpack.c.l.b16 %v114
  %v698 = vunpack.c.l.b16 %v115
  %v699 = vunpack.c.l.b16 %v116
  %v700 = vunpack.c.l.b16 %v117
  %v701 = vunpack.c.l.b16 %v118
  %v702 = vunpack.c.l.b16 %v119
  %v703 = vunpack.c.l.b16 %v120
  %v704 = vunpack.c.l.b16 %v121
  %v705 = vunpack.c.l.b16 %v122
  %v706 = vunpack.c.l.b16 %v123
  %v707 = vunpack.c.l.b16 %v124
  %v708 = vunpack.c.l.b16 %v125
  %v709 = vunpack.c.l.b16 %v126
  %v710 = vunpack.c.l.b16 %v127
  %v711 = vunpack.c.l.b16 %v128
  %v712 = vunpack.c.l.b16 %v129
  %v713 = vunpack.c.l.b16 %v130
  %v714 = vunpack.c.l.b16 %v131
  %v715 = vunpack.c.l.b16 %v132
  %v716 = vunpack.c.l.b16 %v133
  %v717 = vunpack.c.l.b16 %v134
  %v718 = vunpack.c.l.b16 %v135
  %v719 = vunpack.c.l.b16 %v136
  %v720 = vunpack.c.l.b16 %v137
  %v721 = vunpack.c.l.b16 %v138
  %v722 = vunpack.c.l.b16 %v139
  %v723 = vunpack.c.l.b16 %v140
  %v724 = vunpack.c.l.b16 %v141
  %v725 = vunpack.c.l.b16 %v142
  %v726 = vunpack.c.l.b16 %v143
  %v727 = vunpack.c.l.b16 %v144
  %v728 = vunpack.c.l.b16 %v145
  %v729 = vunpack.c.l.b16 %v146
  %v730 = vunpack.c.l.b16 %v147
  %v731 = vunpack.c.l.b16 %v148
  %v732 = vunpack.c.l.b16 %v149
  %v733 = vunpack.c.l.b16 %v150
  %v734 = vunpack.c.l.b16 %v151
  %v735 = vunpack.c.l.b16 %v152
  %v736 = vunpack.c.l.b16 %v153
  %v737 = vunpack.c.l.b16 %v154
  %v738 = vunpack.c.l.b16 %v155
  %v739 = vunpack.c.l.b16 %v156
  %v740 = vunpack.c.l.b16 %v157
  %v741 = vunpack.c.l.b16 %v158
  %v742 = vunpack.c.l.b16 %v159
  %v743 = vunpack.c.l.b16 %v160
  %v744 = vunpack.c.l.b16 %v161
  %v745 = vunpack.c.l.b16 %v162
  %v746 = vunpack.c.l.b16 %v163
  %v747 = vunpack.c.l.b16 %v164
  %v748 = vunpack.c.l.b16 %v165
  %v749 = vunpack.c.l.b16 %v166
  %v750 = vunpack.c.l.b16 %v167
  %v751 = vunpack.c.l.b16 %v168
  %v752 = vunpack.c.l.b16 %v169
  %v753 = vunpack.c.l.b16 %v170
  %v754 = vunpack.c.l.b16 %v171
  %v755 = vunpack.c.l.b16 %v172
  %v756 = vunpack.c.l.b16 %v173
  %v757 = vunpack.c.l.b16 %v174
  %v758 = vunpack.c.l.b16 %v175
  %v759 = vunpack.c.l.b16 %v176
  %v760 = vunpack.c.l.b16 %v177
  %v761 = vunpack.c.l.b16 %v178
  %v762 = vunpack.c.l.b16 %v179
  %v763 = vunpack.c.l.b16 %v180
  %v764 = vunpack.c.l.b16 %v181
  %v765 = vunpack.c.l.b16 %v182
  %v766 = vunpack.c.l.b16 %v183
  %v767 = vunpack.c.l.b16 %v184
  %v768 = vunpack.c.l.b16 %v185
  %v769 = vunpack.c.l.b16 %v186
  %v770 = vunpack.c.l.b16 %v187
  %v771 = vunpack.c.l.b16 %v188
  %v772 = vunpack.c.l.b16 %v189
  %v773 = vunpack.c.l.b16 %v190
  %v774 = vpack.c.b16 %v695, %v694
  %v775 = vpack.c.b16 %v697, %v696
  %v776 = vpack.c.b16 %v699, %v698
  %v777 = vpack.c.b16 %v701, %v700
  %v778 = vpack.c.b16 %v703, %v702
  %v779 = vpack.c.b16 %v705, %v704
  %v780 = vpack.c.b16 %v707, %v706
  %v781 = vpack.c.b16 %v709, %v708
  %v782 = vpack.c.b16 %v711, %v710
  %v783 = vpack.c.b16 %v713, %v712
  %v784 = vpack.c.b16 %v715, %v714
  %v785 = vpack.c.b16 %v717, %v716
  %v786 = vpack.c.b16 %v719, %v718
  %v787 = vpack.c.b16 %v721, %v720
  %v788 = vpack.c.b16 %v723, %v722
  %v789 = vpack.c.b16 %v725, %v724
  %v790 = vpack.c.b16 %v727, %v726
  %v791 = vpack.c.b16 %v729, %v728
  %v792 = vpack.c.b16 %v731, %v730
  %v793 = vpack.c.b16 %v733, %v732
  %v794 = vpack.c.b16 %v735, %v734
  %v795 = vpack.c.b16 %v737, %v736
  %v796 = vpack.c.b16 %v739, %v738
  %v797 = vpack.c.b16 %v741, %v740
  %v798 = vpack.c.b16 %v743, %v742
  %v799 = vpack.c.b16 %v745, %v744
  %v800 = vpack.c.b16 %v747, %v746
  %v801 = vpack.c.b16 %v749, %v748
  %v802 = vpack.c.b16 %v751, %v750
  %v803 = vpack.c.b16 %v753, %v752
  %v804 = vpack.c.b16 %v755, %v754
  %v805 = vpack.c.b16 %v757, %v756
  %v806 = vpack.c.b16 %v759, %v758
  %v807 = vpack.c.b16 %v761, %v760
  %v808 = vpack.c.b16 %v763, %v762
  %v809 = vpack.c.b16 %v765, %v764
  %v810 = vpack.c.b16 %v767, %v766
  %v811 = vpack.c.b16 %v769, %v768
  %v812 = vpack.c.b16 %v771, %v770
  %v813 = vpack.c.b16 %v773, %v772
  %854 = vmatprep.subr.bf16.mxu0 0
  %855 = vmatpush1.bf16.msra.mxu0 %v774
  %856 = vmatprep.subr.bf16.mxu0 0
  %857 = vmatpush1.bf16.msra.mxu0 %v775
  %858 = vmatprep.subr.bf16.mxu0 0
  %859 = vmatpush1.bf16.msra.mxu0 %v776
  %860 = vmatprep.subr.bf16.mxu0 0
  %861 = vmatpush1.bf16.msra.mxu0 %v777
  %862 = vmatprep.subr.bf16.mxu0 0
  %863 = vmatpush1.bf16.msra.mxu0 %v778
  %864 = vmatprep.subr.bf16.mxu0 0
  %865 = vmatpush1.bf16.msra.mxu0 %v779
  %866 = vmatprep.subr.bf16.mxu0 0
  %867 = vmatpush1.bf16.msra.mxu0 %v780
  %868 = vmatprep.subr.bf16.mxu0 0
  %869 = vmatpush1.bf16.msra.mxu0 %v781
  %870 = vmatprep.subr.bf16.mxu0 0
  %871 = vmatpush1.bf16.msra.mxu0 %v782
  %872 = vmatprep.subr.bf16.mxu0 0
  %873 = vmatpush1.bf16.msra.mxu0 %v783
  %874 = vmatprep.subr.bf16.mxu0 0
  %875 = vmatpush1.bf16.msra.mxu0 %v784
  %876 = vmatprep.subr.bf16.mxu0 0
  %877 = vmatpush1.bf16.msra.mxu0 %v785
  %878 = vmatprep.subr.bf16.mxu0 0
  %879 = vmatpush1.bf16.msra.mxu0 %v786
  %880 = vmatprep.subr.bf16.mxu0 0
  %881 = vmatpush1.bf16.msra.mxu0 %v787
  %882 = vmatprep.subr.bf16.mxu0 0
  %883 = vmatpush1.bf16.msra.mxu0 %v788
  %884 = vmatprep.subr.bf16.mxu0 0
  %885 = vmatpush1.bf16.msra.mxu0 %v789
  %886 = vmatprep.mubr.bf16.mxu0 %v455
  %887 = vmatmul.mubr.bf16.gmra.mrb[0].mxu0 %v454
  %v888 = vpop.f32.mrb[0].mxu0
  %v889 = vadd.f32 %v196, %v888
  %v890 = vpop.f32.mrb[0].mxu0
  %v891 = vpop.f32.mrb[0].mxu0
  %v892 = vadd.f32 %v196, %v891
  %v893 = vpop.f32.mrb[0].mxu0
  %894 = vmatprep.mubr.bf16.mxu0 %v460
  %895 = vmatmul.mubr.bf16.gmra.mrb[0].mxu0 %v459
  %v896 = vpop.f32.mrb[0].mxu0
  %v897 = vadd.f32 %v196, %v896
  %v898 = vpop.f32.mrb[0].mxu0
  %v899 = vpop.f32.mrb[0].mxu0
  %v900 = vadd.f32 %v196, %v899
  %v901 = vpop.f32.mrb[0].mxu0
  %902 = vmatprep.mubr.bf16.mxu0 %v465
  %903 = vmatmul.mubr.bf16.gmra.mrb[0].mxu0 %v464
  %v904 = vpop.f32.mrb[0].mxu0
  %v905 = vadd.f32 %v196, %v904
  %v906 = vpop.f32.mrb[0].mxu0
  %v907 = vpop.f32.mrb[0].mxu0
  %v908 = vadd.f32 %v196, %v907
  %v909 = vpop.f32.mrb[0].mxu0
  %910 = vmatprep.mubr.bf16.mxu0 %v470
  %911 = vmatmul.mubr.bf16.gmra.mrb[0].mxu0 %v469
  %v912 = vpop.f32.mrb[0].mxu0
  %v913 = vadd.f32 %v196, %v912
  %v914 = vpop.f32.mrb[0].mxu0
  %v915 = vpop.f32.mrb[0].mxu0
  %v916 = vadd.f32 %v196, %v915
  %v917 = vpop.f32.mrb[0].mxu0
  %918 = vmatprep.mubr.bf16.mxu0 %v475
  %919 = vmatmul.mubr.bf16.gmra.mrb[0].mxu0 %v474
  %v920 = vpop.f32.mrb[0].mxu0
  %v921 = vadd.f32 %v196, %v920
  %v922 = vpop.f32.mrb[0].mxu0
  %v923 = vpop.f32.mrb[0].mxu0
  %v924 = vadd.f32 %v196, %v923
  %v925 = vpop.f32.mrb[0].mxu0
  %926 = vmatprep.mubr.bf16.mxu0 %v480
  %927 = vmatmul.mubr.bf16.gmra.mrb[0].mxu0 %v479
  %v928 = vpop.f32.mrb[0].mxu0
  %v929 = vadd.f32 %v196, %v928
  %v930 = vpop.f32.mrb[0].mxu0
  %v931 = vpop.f32.mrb[0].mxu0
  %v932 = vadd.f32 %v196, %v931
  %v933 = vpop.f32.mrb[0].mxu0
  %934 = vmatprep.mubr.bf16.mxu0 %v485
  %935 = vmatmul.mubr.bf16.gmra.mrb[0].mxu0 %v484
  %v936 = vpop.f32.mrb[0].mxu0
  %v937 = vadd.f32 %v196, %v936
  %v938 = vpop.f32.mrb[0].mxu0
  %v939 = vpop.f32.mrb[0].mxu0
  %v940 = vadd.f32 %v196, %v939
  %v941 = vpop.f32.mrb[0].mxu0
  %942 = vmatprep.mubr.bf16.mxu0 %v490
  %943 = vmatmul.mubr.bf16.gmra.mrb[0].mxu0 %v489
  %v944 = vpop.f32.mrb[0].mxu0
  %v945 = vadd.f32 %v196, %v944
  %v946 = vpop.f32.mrb[0].mxu0
  %v947 = vpop.f32.mrb[0].mxu0
  %v948 = vadd.f32 %v196, %v947
  %v949 = vpop.f32.mrb[0].mxu0
  %950 = vmatprep.mubr.bf16.mxu0 %v495
  %951 = vmatmul.mubr.bf16.gmra.mrb[0].mxu0 %v494
  %v952 = vpop.f32.mrb[0].mxu0
  %v953 = vadd.f32 %v196, %v952
  %v954 = vpop.f32.mrb[0].mxu0
  %v955 = vpop.f32.mrb[0].mxu0
  %v956 = vadd.f32 %v196, %v955
  %v957 = vpop.f32.mrb[0].mxu0
  %958 = vmatprep.mubr.bf16.mxu0 %v500
  %959 = vmatmul.mubr.bf16.gmra.mrb[0].mxu0 %v499
  %v960 = vpop.f32.mrb[0].mxu0
  %v961 = vadd.f32 %v196, %v960
  %v962 = vpop.f32.mrb[0].mxu0
  %v963 = vpop.f32.mrb[0].mxu0
  %v964 = vadd.f32 %v196, %v963
  %v965 = vpop.f32.mrb[0].mxu0
  %966 = vmatprep.mubr.bf16.mxu0 %v505
  %967 = vmatmul.mubr.bf16.gmra.mrb[0].mxu0 %v504
  %v968 = vpop.f32.mrb[0].mxu0
  %v969 = vadd.f32 %v196, %v968
  %v970 = vpop.f32.mrb[0].mxu0
  %v971 = vpop.f32.mrb[0].mxu0
  %v972 = vadd.f32 %v196, %v971
  %v973 = vpop.f32.mrb[0].mxu0
  %974 = vmatprep.mubr.bf16.mxu0 %v510
  %975 = vmatmul.mubr.bf16.gmra.mrb[0].mxu0 %v509
  %v976 = vpop.f32.mrb[0].mxu0
  %v977 = vadd.f32 %v196, %v976
  %v978 = vpop.f32.mrb[0].mxu0
  %v979 = vpop.f32.mrb[0].mxu0
  %v980 = vadd.f32 %v196, %v979
  %v981 = vpop.f32.mrb[0].mxu0
  %982 = vmatprep.mubr.bf16.mxu0 %v515
  %983 = vmatmul.mubr.bf16.gmra.mrb[0].mxu0 %v514
  %v984 = vpop.f32.mrb[0].mxu0
  %v985 = vadd.f32 %v196, %v984
  %v986 = vpop.f32.mrb[0].mxu0
  %v987 = vpop.f32.mrb[0].mxu0
  %v988 = vadd.f32 %v196, %v987
  %v989 = vpop.f32.mrb[0].mxu0
  %990 = vmatprep.mubr.bf16.mxu0 %v520
  %991 = vmatmul.mubr.bf16.gmra.mrb[0].mxu0 %v519
  %v992 = vpop.f32.mrb[0].mxu0
  %v993 = vadd.f32 %v196, %v992
  %v994 = vpop.f32.mrb[0].mxu0
  %v995 = vpop.f32.mrb[0].mxu0
  %v996 = vadd.f32 %v196, %v995
  %v997 = vpop.f32.mrb[0].mxu0
  %998 = vmatprep.mubr.bf16.mxu0 %v525
  %999 = vmatmul.mubr.bf16.gmra.mrb[0].mxu0 %v524
  %v1000 = vpop.f32.mrb[0].mxu0
  %v1001 = vadd.f32 %v196, %v1000
  %v1002 = vpop.f32.mrb[0].mxu0
  %v1003 = vpop.f32.mrb[0].mxu0
  %v1004 = vadd.f32 %v196, %v1003
  %v1005 = vpop.f32.mrb[0].mxu0
  %1006 = vmatprep.mubr.bf16.mxu0 %v530
  %1007 = vmatmul.mubr.bf16.gmra.mrb[0].mxu0 %v529
  %v1008 = vpop.f32.mrb[0].mxu0
  %v1009 = vadd.f32 %v196, %v1008
  %v1010 = vpop.f32.mrb[0].mxu0
  %v1011 = vpop.f32.mrb[0].mxu0
  %v1012 = vadd.f32 %v196, %v1011
  %v1013 = vpop.f32.mrb[0].mxu0
  %1014 = vdwg.mxu0
  %1015 = vmatprep.subr.bf16.mxu0 0
  %1016 = vmatpush1.bf16.msra.mxu0 %v790
  %1017 = vmatprep.subr.bf16.mxu0 0
  %1018 = vmatpush1.bf16.msra.mxu0 %v791
  %1019 = vmatprep.subr.bf16.mxu0 0
  %1020 = vmatpush1.bf16.msra.mxu0 %v792
  %1021 = vmatprep.subr.bf16.mxu0 0
  %1022 = vmatpush1.bf16.msra.mxu0 %v793
  %1023 = vmatprep.subr.bf16.mxu0 0
  %1024 = vmatpush1.bf16.msra.mxu0 %v794
  %1025 = vmatprep.subr.bf16.mxu0 0
  %1026 = vmatpush1.bf16.msra.mxu0 %v795
  %1027 = vmatprep.subr.bf16.mxu0 0
  %1028 = vmatpush1.bf16.msra.mxu0 %v796
  %1029 = vmatprep.subr.bf16.mxu0 0
  %1030 = vmatpush1.bf16.msra.mxu0 %v797
  %1031 = vmatprep.subr.bf16.mxu0 0
  %1032 = vmatpush1.bf16.msra.mxu0 %v798
  %1033 = vmatprep.subr.bf16.mxu0 0
  %1034 = vmatpush1.bf16.msra.mxu0 %v799
  %1035 = vmatprep.subr.bf16.mxu0 0
  %1036 = vmatpush1.bf16.msra.mxu0 %v800
  %1037 = vmatprep.subr.bf16.mxu0 0
  %1038 = vmatpush1.bf16.msra.mxu0 %v801
  %1039 = vmatprep.subr.bf16.mxu0 0
  %1040 = vmatpush1.bf16.msra.mxu0 %v802
  %1041 = vmatprep.subr.bf16.mxu0 0
  %1042 = vmatpush1.bf16.msra.mxu0 %v803
  %1043 = vmatprep.subr.bf16.mxu0 0
  %1044 = vmatpush1.bf16.msra.mxu0 %v804
  %1045 = vmatprep.subr.bf16.mxu0 0
  %1046 = vmatpush1.bf16.msra.mxu0 %v805
  %1047 = vmatprep.mubr.bf16.mxu0 %v457
  %1048 = vmatmul.mubr.bf16.gmra.mrb[0].mxu0 %v456
  %v1049 = vpop.f32.mrb[0].mxu0
  %v1050 = vadd.f32 %v889, %v1049
  %v1051 = vpop.f32.mrb[0].mxu0
  %v1052 = vpop.f32.mrb[0].mxu0
  %v1053 = vadd.f32 %v892, %v1052
  %v1054 = vpop.f32.mrb[0].mxu0
  %1055 = vmatprep.mubr.bf16.mxu0 %v462
  %1056 = vmatmul.mubr.bf16.gmra.mrb[0].mxu0 %v461
  %v1057 = vpop.f32.mrb[0].mxu0
  %v1058 = vadd.f32 %v897, %v1057
  %v1059 = vpop.f32.mrb[0].mxu0
  %v1060 = vpop.f32.mrb[0].mxu0
  %v1061 = vadd.f32 %v900, %v1060
  %v1062 = vpop.f32.mrb[0].mxu0
  %1063 = vmatprep.mubr.bf16.mxu0 %v467
  %1064 = vmatmul.mubr.bf16.gmra.mrb[0].mxu0 %v466
  %v1065 = vpop.f32.mrb[0].mxu0
  %v1066 = vadd.f32 %v905, %v1065
  %v1067 = vpop.f32.mrb[0].mxu0
  %v1068 = vpop.f32.mrb[0].mxu0
  %v1069 = vadd.f32 %v908, %v1068
  %v1070 = vpop.f32.mrb[0].mxu0
  %1071 = vmatprep.mubr.bf16.mxu0 %v472
  %1072 = vmatmul.mubr.bf16.gmra.mrb[0].mxu0 %v471
  %v1073 = vpop.f32.mrb[0].mxu0
  %v1074 = vadd.f32 %v913, %v1073
  %v1075 = vpop.f32.mrb[0].mxu0
  %v1076 = vpop.f32.mrb[0].mxu0
  %v1077 = vadd.f32 %v916, %v1076
  %v1078 = vpop.f32.mrb[0].mxu0
  %1079 = vmatprep.mubr.bf16.mxu0 %v477
  %1080 = vmatmul.mubr.bf16.gmra.mrb[0].mxu0 %v476
  %v1081 = vpop.f32.mrb[0].mxu0
  %v1082 = vadd.f32 %v921, %v1081
  %v1083 = vpop.f32.mrb[0].mxu0
  %v1084 = vpop.f32.mrb[0].mxu0
  %v1085 = vadd.f32 %v924, %v1084
  %v1086 = vpop.f32.mrb[0].mxu0
  %1087 = vmatprep.mubr.bf16.mxu0 %v482
  %1088 = vmatmul.mubr.bf16.gmra.mrb[0].mxu0 %v481
  %v1089 = vpop.f32.mrb[0].mxu0
  %v1090 = vadd.f32 %v929, %v1089
  %v1091 = vpop.f32.mrb[0].mxu0
  %v1092 = vpop.f32.mrb[0].mxu0
  %v1093 = vadd.f32 %v932, %v1092
  %v1094 = vpop.f32.mrb[0].mxu0
  %1095 = vmatprep.mubr.bf16.mxu0 %v487
  %1096 = vmatmul.mubr.bf16.gmra.mrb[0].mxu0 %v486
  %v1097 = vpop.f32.mrb[0].mxu0
  %v1098 = vadd.f32 %v937, %v1097
  %v1099 = vpop.f32.mrb[0].mxu0
  %v1100 = vpop.f32.mrb[0].mxu0
  %v1101 = vadd.f32 %v940, %v1100
  %v1102 = vpop.f32.mrb[0].mxu0
  %1103 = vmatprep.mubr.bf16.mxu0 %v492
  %1104 = vmatmul.mubr.bf16.gmra.mrb[0].mxu0 %v491
  %v1105 = vpop.f32.mrb[0].mxu0
  %v1106 = vadd.f32 %v945, %v1105
  %v1107 = vpop.f32.mrb[0].mxu0
  %v1108 = vpop.f32.mrb[0].mxu0
  %v1109 = vadd.f32 %v948, %v1108
  %v1110 = vpop.f32.mrb[0].mxu0
  %1111 = vmatprep.mubr.bf16.mxu0 %v497
  %1112 = vmatmul.mubr.bf16.gmra.mrb[0].mxu0 %v496
  %v1113 = vpop.f32.mrb[0].mxu0
  %v1114 = vadd.f32 %v953, %v1113
  %v1115 = vpop.f32.mrb[0].mxu0
  %v1116 = vpop.f32.mrb[0].mxu0
  %v1117 = vadd.f32 %v956, %v1116
  %v1118 = vpop.f32.mrb[0].mxu0
  %1119 = vmatprep.mubr.bf16.mxu0 %v502
  %1120 = vmatmul.mubr.bf16.gmra.mrb[0].mxu0 %v501
  %v1121 = vpop.f32.mrb[0].mxu0
  %v1122 = vadd.f32 %v961, %v1121
  %v1123 = vpop.f32.mrb[0].mxu0
  %v1124 = vpop.f32.mrb[0].mxu0
  %v1125 = vadd.f32 %v964, %v1124
  %v1126 = vpop.f32.mrb[0].mxu0
  %1127 = vmatprep.mubr.bf16.mxu0 %v507
  %1128 = vmatmul.mubr.bf16.gmra.mrb[0].mxu0 %v506
  %v1129 = vpop.f32.mrb[0].mxu0
  %v1130 = vadd.f32 %v969, %v1129
  %v1131 = vpop.f32.mrb[0].mxu0
  %v1132 = vpop.f32.mrb[0].mxu0
  %v1133 = vadd.f32 %v972, %v1132
  %v1134 = vpop.f32.mrb[0].mxu0
  %1135 = vmatprep.mubr.bf16.mxu0 %v512
  %1136 = vmatmul.mubr.bf16.gmra.mrb[0].mxu0 %v511
  %v1137 = vpop.f32.mrb[0].mxu0
  %v1138 = vadd.f32 %v977, %v1137
  %v1139 = vpop.f32.mrb[0].mxu0
  %v1140 = vpop.f32.mrb[0].mxu0
  %v1141 = vadd.f32 %v980, %v1140
  %v1142 = vpop.f32.mrb[0].mxu0
  %1143 = vmatprep.mubr.bf16.mxu0 %v517
  %1144 = vmatmul.mubr.bf16.gmra.mrb[0].mxu0 %v516
  %v1145 = vpop.f32.mrb[0].mxu0
  %v1146 = vadd.f32 %v985, %v1145
  %v1147 = vpop.f32.mrb[0].mxu0
  %v1148 = vpop.f32.mrb[0].mxu0
  %v1149 = vadd.f32 %v988, %v1148
  %v1150 = vpop.f32.mrb[0].mxu0
  %1151 = vmatprep.mubr.bf16.mxu0 %v522
  %1152 = vmatmul.mubr.bf16.gmra.mrb[0].mxu0 %v521
  %v1153 = vpop.f32.mrb[0].mxu0
  %v1154 = vadd.f32 %v993, %v1153
  %v1155 = vpop.f32.mrb[0].mxu0
  %v1156 = vpop.f32.mrb[0].mxu0
  %v1157 = vadd.f32 %v996, %v1156
  %v1158 = vpop.f32.mrb[0].mxu0
  %1159 = vmatprep.mubr.bf16.mxu0 %v527
  %1160 = vmatmul.mubr.bf16.gmra.mrb[0].mxu0 %v526
  %v1161 = vpop.f32.mrb[0].mxu0
  %v1162 = vadd.f32 %v1001, %v1161
  %v1163 = vpop.f32.mrb[0].mxu0
  %v1164 = vpop.f32.mrb[0].mxu0
  %v1165 = vadd.f32 %v1004, %v1164
  %v1166 = vpop.f32.mrb[0].mxu0
  %1167 = vmatprep.mubr.bf16.mxu0 %v532
  %1168 = vmatmul.mubr.bf16.gmra.mrb[0].mxu0 %v531
  %v1169 = vpop.f32.mrb[0].mxu0
  %v1170 = vadd.f32 %v1009, %v1169
  %v1171 = vpop.f32.mrb[0].mxu0
  %v1172 = vpop.f32.mrb[0].mxu0
  %v1173 = vadd.f32 %v1012, %v1172
  %v1174 = vpop.f32.mrb[0].mxu0
  %1175 = vdwg.mxu0
  %1176 = vmatprep.subr.bf16.mxu0 0
  %1177 = vmatpush1.bf16.msra.mxu0 %v806
  %1178 = vmatprep.subr.bf16.mxu0 0
  %1179 = vmatpush1.bf16.msra.mxu0 %v807
  %1180 = vmatprep.subr.bf16.mxu0 0
  %1181 = vmatpush1.bf16.msra.mxu0 %v808
  %1182 = vmatprep.subr.bf16.mxu0 0
  %1183 = vmatpush1.bf16.msra.mxu0 %v809
  %1184 = vmatprep.subr.bf16.mxu0 0
  %1185 = vmatpush1.bf16.msra.mxu0 %v810
  %1186 = vmatprep.subr.bf16.mxu0 0
  %1187 = vmatpush1.bf16.msra.mxu0 %v811
  %1188 = vmatprep.subr.bf16.mxu0 0
  %1189 = vmatpush1.bf16.msra.mxu0 %v812
  %1190 = vmatprep.subr.bf16.mxu0 0
  %1191 = vmatpush1.bf16.msra.mxu0 %v813
  %1192 = vmatprep.subr.bf16.mxu0 0
  %1193 = vmatpush1.bf16.msra.mxu0 0
  %1194 = vmatprep.subr.bf16.mxu0 0
  %1195 = vmatpush1.bf16.msra.mxu0 0
  %1196 = vmatprep.subr.bf16.mxu0 0
  %1197 = vmatpush1.bf16.msra.mxu0 0
  %1198 = vmatprep.subr.bf16.mxu0 0
  %1199 = vmatpush1.bf16.msra.mxu0 0
  %1200 = vmatprep.subr.bf16.mxu0 0
  %1201 = vmatpush1.bf16.msra.mxu0 0
  %1202 = vmatprep.subr.bf16.mxu0 0
  %1203 = vmatpush1.bf16.msra.mxu0 0
  %1204 = vmatprep.subr.bf16.mxu0 0
  %1205 = vmatpush1.bf16.msra.mxu0 0
  %1206 = vmatprep.subr.bf16.mxu0 0
  %1207 = vmatpush1.bf16.msra.mxu0 0
  %1208 = vmatprep.mubr.bf16.mxu0 0
  %1209 = vmatmul.mubr.bf16.gmra.mrb[0].mxu0 %v458
  %v1210 = vpop.f32.mrb[0].mxu0
  %v1211 = vadd.f32 %v1050, %v1210
  %v1212 = vpop.f32.mrb[0].mxu0
  %v1213 = vpop.f32.mrb[0].mxu0
  %v1214 = vadd.f32 %v1053, %v1213
  %v1215 = vpop.f32.mrb[0].mxu0
  %1216 = vmatprep.mubr.bf16.mxu0 0
  %1217 = vmatmul.mubr.bf16.gmra.mrb[0].mxu0 %v463
  %v1218 = vpop.f32.mrb[0].mxu0
  %v1219 = vadd.f32 %v1058, %v1218
  %v1220 = vpop.f32.mrb[0].mxu0
  %v1221 = vpop.f32.mrb[0].mxu0
  %v1222 = vadd.f32 %v1061, %v1221
  %v1223 = vpop.f32.mrb[0].mxu0
  %1224 = vmatprep.mubr.bf16.mxu0 0
  %1225 = vmatmul.mubr.bf16.gmra.mrb[0].mxu0 %v468
  %v1226 = vpop.f32.mrb[0].mxu0
  %v1227 = vadd.f32 %v1066, %v1226
  %v1228 = vpop.f32.mrb[0].mxu0
  %v1229 = vpop.f32.mrb[0].mxu0
  %v1230 = vadd.f32 %v1069, %v1229
  %v1231 = vpop.f32.mrb[0].mxu0
  %1232 = vmatprep.mubr.bf16.mxu0 0
  %1233 = vmatmul.mubr.bf16.gmra.mrb[0].mxu0 %v473
  %v1234 = vpop.f32.mrb[0].mxu0
  %v1235 = vadd.f32 %v1074, %v1234
  %v1236 = vpop.f32.mrb[0].mxu0
  %v1237 = vpop.f32.mrb[0].mxu0
  %v1238 = vadd.f32 %v1077, %v1237
  %v1239 = vpop.f32.mrb[0].mxu0
  %1240 = vmatprep.mubr.bf16.mxu0 0
  %1241 = vmatmul.mubr.bf16.gmra.mrb[0].mxu0 %v478
  %v1242 = vpop.f32.mrb[0].mxu0
  %v1243 = vadd.f32 %v1082, %v1242
  %v1244 = vpop.f32.mrb[0].mxu0
  %v1245 = vpop.f32.mrb[0].mxu0
  %v1246 = vadd.f32 %v1085, %v1245
  %v1247 = vpop.f32.mrb[0].mxu0
  %1248 = vmatprep.mubr.bf16.mxu0 0
  %1249 = vmatmul.mubr.bf16.gmra.mrb[0].mxu0 %v483
  %v1250 = vpop.f32.mrb[0].mxu0
  %v1251 = vadd.f32 %v1090, %v1250
  %v1252 = vpop.f32.mrb[0].mxu0
  %v1253 = vpop.f32.mrb[0].mxu0
  %v1254 = vadd.f32 %v1093, %v1253
  %v1255 = vpop.f32.mrb[0].mxu0
  %1256 = vmatprep.mubr.bf16.mxu0 0
  %1257 = vmatmul.mubr.bf16.gmra.mrb[0].mxu0 %v488
  %v1258 = vpop.f32.mrb[0].mxu0
  %v1259 = vadd.f32 %v1098, %v1258
  %v1260 = vpop.f32.mrb[0].mxu0
  %v1261 = vpop.f32.mrb[0].mxu0
  %v1262 = vadd.f32 %v1101, %v1261
  %v1263 = vpop.f32.mrb[0].mxu0
  %1264 = vmatprep.mubr.bf16.mxu0 0
  %1265 = vmatmul.mubr.bf16.gmra.mrb[0].mxu0 %v493
  %v1266 = vpop.f32.mrb[0].mxu0
  %v1267 = vadd.f32 %v1106, %v1266
  %v1268 = vpop.f32.mrb[0].mxu0
  %v1269 = vpop.f32.mrb[0].mxu0
  %v1270 = vadd.f32 %v1109, %v1269
  %v1271 = vpop.f32.mrb[0].mxu0
  %1272 = vmatprep.mubr.bf16.mxu0 0
  %1273 = vmatmul.mubr.bf16.gmra.mrb[0].mxu0 %v498
  %v1274 = vpop.f32.mrb[0].mxu0
  %v1275 = vadd.f32 %v1114, %v1274
  %v1276 = vpop.f32.mrb[0].mxu0
  %v1277 = vpop.f32.mrb[0].mxu0
  %v1278 = vadd.f32 %v1117, %v1277
  %v1279 = vpop.f32.mrb[0].mxu0
  %1280 = vmatprep.mubr.bf16.mxu0 0
  %1281 = vmatmul.mubr.bf16.gmra.mrb[0].mxu0 %v503
  %v1282 = vpop.f32.mrb[0].mxu0
  %v1283 = vadd.f32 %v1122, %v1282
  %v1284 = vpop.f32.mrb[0].mxu0
  %v1285 = vpop.f32.mrb[0].mxu0
  %v1286 = vadd.f32 %v1125, %v1285
  %v1287 = vpop.f32.mrb[0].mxu0
  %1288 = vmatprep.mubr.bf16.mxu0 0
  %1289 = vmatmul.mubr.bf16.gmra.mrb[0].mxu0 %v508
  %v1290 = vpop.f32.mrb[0].mxu0
  %v1291 = vadd.f32 %v1130, %v1290
  %v1292 = vpop.f32.mrb[0].mxu0
  %v1293 = vpop.f32.mrb[0].mxu0
  %v1294 = vadd.f32 %v1133, %v1293
  %v1295 = vpop.f32.mrb[0].mxu0
  %1296 = vmatprep.mubr.bf16.mxu0 0
  %1297 = vmatmul.mubr.bf16.gmra.mrb[0].mxu0 %v513
  %v1298 = vpop.f32.mrb[0].mxu0
  %v1299 = vadd.f32 %v1138, %v1298
  %v1300 = vpop.f32.mrb[0].mxu0
  %v1301 = vpop.f32.mrb[0].mxu0
  %v1302 = vadd.f32 %v1141, %v1301
  %v1303 = vpop.f32.mrb[0].mxu0
  %1304 = vmatprep.mubr.bf16.mxu0 0
  %1305 = vmatmul.mubr.bf16.gmra.mrb[0].mxu0 %v518
  %v1306 = vpop.f32.mrb[0].mxu0
  %v1307 = vadd.f32 %v1146, %v1306
  %v1308 = vpop.f32.mrb[0].mxu0
  %v1309 = vpop.f32.mrb[0].mxu0
  %v1310 = vadd.f32 %v1149, %v1309
  %v1311 = vpop.f32.mrb[0].mxu0
  %1312 = vmatprep.mubr.bf16.mxu0 0
  %1313 = vmatmul.mubr.bf16.gmra.mrb[0].mxu0 %v523
  %v1314 = vpop.f32.mrb[0].mxu0
  %v1315 = vadd.f32 %v1154, %v1314
  %v1316 = vpop.f32.mrb[0].mxu0
  %v1317 = vpop.f32.mrb[0].mxu0
  %v1318 = vadd.f32 %v1157, %v1317
  %v1319 = vpop.f32.mrb[0].mxu0
  %1320 = vmatprep.mubr.bf16.mxu0 0
  %1321 = vmatmul.mubr.bf16.gmra.mrb[0].mxu0 %v528
  %v1322 = vpop.f32.mrb[0].mxu0
  %v1323 = vadd.f32 %v1162, %v1322
  %v1324 = vpop.f32.mrb[0].mxu0
  %v1325 = vpop.f32.mrb[0].mxu0
  %v1326 = vadd.f32 %v1165, %v1325
  %v1327 = vpop.f32.mrb[0].mxu0
  %1328 = vmatprep.mubr.bf16.mxu0 0
  %1329 = vmatmul.mubr.bf16.gmra.mrb[0].mxu0 %v533
  %v1330 = vpop.f32.mrb[0].mxu0
  %v1331 = vadd.f32 %v1170, %v1330
  %v1332 = vpop.f32.mrb[0].mxu0
  %v1333 = vpop.f32.mrb[0].mxu0
  %v1334 = vadd.f32 %v1173, %v1333
  %v1335 = vpop.f32.mrb[0].mxu0
  %1336 = vdwg.mxu0
  %1337 = vst [vmem:[%s3] sm:$0xff] %v1211
  %1338 = vst [vmem:[%s3 + $0x8] sm:$0xff] %v1214
  %1339 = vst [vmem:[%s3 + $0x10] sm:$0xff] %v1219
  %1340 = vst [vmem:[%s3 + $0x18] sm:$0xff] %v1222
  %1341 = vst [vmem:[%s3 + $0x20] sm:$0xff] %v1227
  %1342 = vst [vmem:[%s3 + $0x28] sm:$0xff] %v1230
  %1343 = vst [vmem:[%s3 + $0x30] sm:$0xff] %v1235
  %1344 = vst [vmem:[%s3 + $0x38] sm:$0xff] %v1238
  %1345 = vst [vmem:[%s3 + $0x40] sm:$0xff] %v1243
  %1346 = vst [vmem:[%s3 + $0x48] sm:$0xff] %v1246
  %1347 = vst [vmem:[%s3 + $0x50] sm:$0xff] %v1251
  %1348 = vst [vmem:[%s3 + $0x58] sm:$0xff] %v1254
  %1349 = vst [vmem:[%s3 + $0x60] sm:$0xff] %v1259
  %1350 = vst [vmem:[%s3 + $0x68] sm:$0xff] %v1262
  %1351 = vst [vmem:[%s3 + $0x70] sm:$0xff] %v1267
  %1352 = vst [vmem:[%s3 + $0x78] sm:$0xff] %v1270
  %1353 = vst [vmem:[%s3 + $0x80] sm:$0xff] %v1275
  %1354 = vst [vmem:[%s3 + $0x88] sm:$0xff] %v1278
  %1355 = vst [vmem:[%s3 + $0x90] sm:$0xff] %v1283
  %1356 = vst [vmem:[%s3 + $0x98] sm:$0xff] %v1286
  %1357 = vst [vmem:[%s3 + $0xa0] sm:$0xff] %v1291
  %1358 = vst [vmem:[%s3 + $0xa8] sm:$0xff] %v1294
  %1359 = vst [vmem:[%s3 + $0xb0] sm:$0xff] %v1299
  %1360 = vst [vmem:[%s3 + $0xb8] sm:$0xff] %v1302
  %1361 = vst [vmem:[%s3 + $0xc0] sm:$0xff] %v1307
  %1362 = vst [vmem:[%s3 + $0xc8] sm:$0xff] %v1310
  %1363 = vst [vmem:[%s3 + $0xd0] sm:$0xff] %v1315
  %1364 = vst [vmem:[%s3 + $0xd8] sm:$0xff] %v1318
  %1365 = vst [vmem:[%s3 + $0xe0] sm:$0xff] %v1323
  %1366 = vst [vmem:[%s3 + $0xe8] sm:$0xff] %v1326
  %1367 = vst [vmem:[%s3 + $0xf0] sm:$0xff] %v1331
  %1368 = vst [vmem:[%s3 + $0xf8] sm:$0xff] %v1334
  // Predicated region
  $region14: #{forward.7} parent=0 // pred_check
    _
  $region15: #{forward.7} parent=0 // pred_check_branch
    %1370 = sbr.rel (0) target = $region17
  $region16: #{forward.7} parent=0 // pred_region
    _
  $region17: #{forward.7} parent=0 // pred_fallthru
    _
  // Predicated region
  $region18: #{forward.7} parent=0 // pred_check
    _
  $region19: #{forward.7} parent=0 // pred_check_branch
    %1372 = sbr.rel (0) target = $region21
  $region20: #{forward.7} parent=0 // pred_region
    _
  $region21: #{forward.7} parent=0 // pred_fallthru
    _

// kernel: forward.4
$region0: #{forward.4}
  #allocation0 [shape = 'u32[]', space=smem, size = 0x4, offset = 0x4, fixed_abs, tag = 'smem constant byte address 0x4 - core index']
  #allocation1 [shape = 'u32[144,128]{1,0:T(1,128)}', space=vmem, size = 0x12000, scoped, tag = 'internal scratch']
  %s0 = inlined_call_operand.vmem [shape: bf16[32,80], index: 0, kind: input, shape index: {}]
  %s1 = inlined_call_operand.vmem [shape: bf16[80,3072], index: 1, kind: input, shape index: {}]
  %s2 = inlined_call_operand.vmem [shape: f32[1,3072], index: 2, kind: input, shape index: {}]
  %s3 = inlined_call_operand.vmem [shape: bf16[32,3072], index: 3, kind: output, shape index: {}]
  %s4 = sld [smem:[#allocation0]]
  $region87: #{forward.4} parent=0
    _
  %s6 = ssub.s32 1, %s4
  %s7 = scalar_select 0, %s6, %s4
  $region1: #{forward.4} parent=0
    #allocation2 [shape = 'u8[163840]{0}', space=vmem, size = 0x28000, scoped, tag = 'input window, operand 1']
    #allocation3 [shape = 'u8[65536]{0}', space=vmem, size = 0x10000, scoped, tag = 'output window, operand 0']
    loop: start=0, step=1, limit=8
    $region2: #{forward.4} parent=1 // loop_pre_header
      _
    $region3: #{forward.4} parent=1 // loop_header
      %s9 = sphi 0, %s13
      %p10 = scmp.ge.s32.totalorder %s9, 8
      %s16 = sphi 0, %s28
      %s17 = sphi 0, %s24
      %s18 = sphi 0, %s16
      %s19 = sphi 0, %s17
      %s20 = sphi 0, %s18
      %s21 = sphi 0, %s19
      %s31 = sphi 0, %s33
      %s34 = sphi 0, %s31
      %s35 = sphi 0, %s34
      %s51 = sphi 0, %s35
      %s57 = sphi 0, %s59
      %s60 = sphi 0, %s57
      %s61 = sphi 0, %s60
      %s77 = sphi 0, %s61
      %s83 = sphi 0, %s85
      %s86 = sphi 0, %s83
      %s87 = sphi 0, %s86
      %s103 = sphi 0, %s87
      %s111 = sphi 0, %s113
      %s114 = sphi 0, %s111
      %s115 = sphi 0, %s114
      %s131 = sphi 0, %s115
    $region4: #{forward.4} parent=1 // loop_header_branch
      %12 = sbr.rel (%p10) target = $region8
    $region5: #{forward.4} parent=1 // loop_body
      %s14 = ssub.s32 %s9, 1
      %s15 = ssub.s32 %s9, 2
      %s22 = sadd.s32 1, %s17
      %p23 = scmp.ge.s32.totalorder %s22, 6
      %s24 = scalar_select %p23, 0, %s22
      %s25 = sadd.s32 1, %s16
      %s26 = scalar_select %p23, %s25, %s16
      %p27 = scmp.ge.s32.totalorder %s26, 1
      %s28 = scalar_select %p27, 0, %s26
      %s29 = ssub.s32 %s16, %s28
      %p30 = scmp.eq.s32.totalorder %s29, 0
      %s32 = sadd.s32 %s31, 1
      %s33 = scalar_select %p30, %s31, %s32
      %p36 = pneg %p30
      %p37 = scmp.eq.s32.totalorder %s9, 5
      %p38 = por %p36, %p37
      %p39 = scmp.ne.s32.totalorder %s31, %s34
      %p40 = scmp.eq.s32.totalorder %s9, 0
      %p41 = por %p39, %p40
      %p42 = scmp.ne.s32.totalorder %s31, %s34
      %p43 = scmp.eq.s32.totalorder %s14, 5
      %p44 = por %p42, %p43
      %p45 = scmp.ne.s32.totalorder %s34, %s35
      %p46 = scmp.eq.s32.totalorder %s14, 0
      %p47 = por %p45, %p46
      %p48 = scmp.ne.s32.totalorder %s34, %s35
      %p49 = scmp.eq.s32.totalorder %s15, 5
      %p50 = por %p48, %p49
      %p52 = scmp.ne.s32.totalorder %s35, %s51
      %p53 = scmp.eq.s32.totalorder %s15, 0
      %p54 = por %p52, %p53
      %s55 = ssub.s32 %s17, %s24
      %p56 = scmp.eq.s32.totalorder %s55, 0
      %s58 = sadd.s32 %s57, 1
      %s59 = scalar_select %p56, %s57, %s58
      %p62 = pneg %p56
      %p63 = scmp.eq.s32.totalorder %s9, 5
      %p64 = por %p62, %p63
      %p65 = scmp.ne.s32.totalorder %s57, %s60
      %p66 = scmp.eq.s32.totalorder %s9, 0
      %p67 = por %p65, %p66
      %p68 = scmp.ne.s32.totalorder %s57, %s60
      %p69 = scmp.eq.s32.totalorder %s14, 5
      %p70 = por %p68, %p69
      %p71 = scmp.ne.s32.totalorder %s60, %s61
      %p72 = scmp.eq.s32.totalorder %s14, 0
      %p73 = por %p71, %p72
      %p74 = scmp.ne.s32.totalorder %s60, %s61
      %p75 = scmp.eq.s32.totalorder %s15, 5
      %p76 = por %p74, %p75
      %p78 = scmp.ne.s32.totalorder %s61, %s77
      %p79 = scmp.eq.s32.totalorder %s15, 0
      %p80 = por %p78, %p79
      %s81 = ssub.s32 %s17, %s24
      %p82 = scmp.eq.s32.totalorder %s81, 0
      %s84 = sadd.s32 %s83, 1
      %s85 = scalar_select %p82, %s83, %s84
      %p88 = pneg %p82
      %p89 = scmp.eq.s32.totalorder %s9, 5
      %p90 = por %p88, %p89
      %p91 = scmp.ne.s32.totalorder %s83, %s86
      %p92 = scmp.eq.s32.totalorder %s9, 0
      %p93 = por %p91, %p92
      %p94 = scmp.ne.s32.totalorder %s83, %s86
      %p95 = scmp.eq.s32.totalorder %s14, 5
      %p96 = por %p94, %p95
      %p97 = scmp.ne.s32.totalorder %s86, %s87
      %p98 = scmp.eq.s32.totalorder %s14, 0
      %p99 = por %p97, %p98
      %p100 = scmp.ne.s32.totalorder %s86, %s87
      %p101 = scmp.eq.s32.totalorder %s15, 5
      %p102 = por %p100, %p101
      %p104 = scmp.ne.s32.totalorder %s87, %s103
      %p105 = scmp.eq.s32.totalorder %s15, 0
      %p106 = por %p104, %p105
      %s107 = ssub.s32 %s16, %s28
      %s108 = ssub.s32 %s17, %s24
      %s109 = sor.u32 %s107, %s108
      %p110 = scmp.eq.s32.totalorder %s109, 0
      %s112 = sadd.s32 %s111, 1
      %s113 = scalar_select %p110, %s111, %s112
      %p116 = pneg %p110
      %p117 = scmp.eq.s32.totalorder %s9, 5
      %p118 = por %p116, %p117
      %p119 = scmp.ne.s32.totalorder %s111, %s114
      %p120 = scmp.eq.s32.totalorder %s9, 0
      %p121 = por %p119, %p120
      %p122 = scmp.ne.s32.totalorder %s111, %s114
      %p123 = scmp.eq.s32.totalorder %s14, 5
      %p124 = por %p122, %p123
      %p125 = scmp.ne.s32.totalorder %s114, %s115
      %p126 = scmp.eq.s32.totalorder %s14, 0
      %p127 = por %p125, %p126
      %p128 = scmp.ne.s32.totalorder %s114, %s115
      %p129 = scmp.eq.s32.totalorder %s15, 5
      %p130 = por %p128, %p129
      %p132 = scmp.ne.s32.totalorder %s115, %s131
      %p133 = scmp.eq.s32.totalorder %s15, 0
      %p134 = por %p132, %p133
      %p135 = scmp.le.s32.totalorder 1, %s9
      %p136 = scmp.lt.s32.totalorder %s9, 7
      %p137 = pnand %p135, %p136
      %p138 = pneg %p137
      // Predicated region
      $region9: #{forward.4} parent=5 // pred_check
        _
      $region10: #{forward.4} parent=5 // pred_check_branch
        %140 = sbr.rel (%p137) target = $region12
      $region11: #{forward.4} parent=5 // pred_region
        %s141 = ssub.s32 %s9, 1
        // Predicated region
        $region13: #{forward.4} parent=11 // pred_check
          %p142 = pneg %p47
        $region14: #{forward.4} parent=11 // pred_check_branch
          %144 = sbr.rel (%p142) target = $region16
        $region15: #{forward.4} parent=11 // pred_region
          %s145 = smul.u32 4, %s18
          %p146 = scmp.lt.s32.totalorder %s145, 3
          %s147 = scalar_select %p146, %s145, 3
          %s148 = smul.addr %s147, 4
          %s149 = scalar_lea.vmem %s0, %s148
          %s150 = smul.u32 4, %s18
        $region16: #{forward.4} parent=11 // pred_fallthru
          _
      $region12: #{forward.4} parent=5 // pred_fallthru
        _
      %p151 = scmp.lt.s32.totalorder %s9, 6
      // Predicated region
      $region17: #{forward.4} parent=5 // pred_check
        %p152 = pneg %p151
      $region18: #{forward.4} parent=5 // pred_check_branch
        %154 = sbr.rel (%p152) target = $region20
      $region19: #{forward.4} parent=5 // pred_region
        // Predicated region
        $region21: #{forward.4} parent=19 // pred_check
          %p155 = pneg %p67
        $region22: #{forward.4} parent=19 // pred_check_branch
          %157 = sbr.rel (%p155) target = $region24
        $region23: #{forward.4} parent=19 // pred_region
          %s158 = sand.u32 %s57, 1
          %s159 = sand.u32 %s57, 1
          %s160 = smul.addr %s159, 160
          %s161 = scalar_lea.vmem [#allocation2], %s160
          %s162 = smul.u32 4, %s17
          %s163 = smul.addr %s162, 4
          %s164 = scalar_lea.vmem %s1, %s163
          // Predicated region
          $region25: #{forward.4} parent=23 // pred_check
            _
          $region26: #{forward.4} parent=23 // pred_check_branch
            %166 = sbr.rel (0) target = $region28
          $region27: #{forward.4} parent=23 // pred_region
            // Predicated region
            $region29: #{forward.4} parent=27 // pred_check
              _
            $region30: #{forward.4} parent=27 // pred_check_branch
              %168 = sbr.rel (0) target = $region32
            $region31: #{forward.4} parent=27 // pred_region
              loop: start=0, step=1, limit=1
              $region33: #{forward.4} parent=31 // loop_pre_header
                _
              $region34: #{forward.4} parent=31 // loop_header
                %s170 = sphi 0, %s174
                %p171 = scmp.ge.s32.totalorder %s170, 1
                %s175 = sphi %s164, %s164
                %s176 = sphi %s161, %s161
              $region35: #{forward.4} parent=31 // loop_header_branch
                %173 = sbr.rel (%p171) target = $region39
              $region36: #{forward.4} parent=31 // loop_body
                %v177 = vld [vmem:[%s175] sm:$0xff]
                %178 = vst [vmem:[%s176] sm:$0xff] %v177
                %v179 = vld [vmem:[%s175 + $0x8] sm:$0xff]
                %180 = vst [vmem:[%s176 + $0x8] sm:$0xff] %v179
                %v181 = vld [vmem:[%s175 + $0x60] sm:$0xff]
                %182 = vst [vmem:[%s176 + $0x10] sm:$0xff] %v181
                %v183 = vld [vmem:[%s175 + $0x68] sm:$0xff]
                %184 = vst [vmem:[%s176 + $0x18] sm:$0xff] %v183
                %v185 = vld [vmem:[%s175 + $0xc0] sm:$0xff]
                %186 = vst [vmem:[%s176 + $0x20] sm:$0xff] %v185
                %v187 = vld [vmem:[%s175 + $0xc8] sm:$0xff]
                %188 = vst [vmem:[%s176 + $0x28] sm:$0xff] %v187
                %v189 = vld [vmem:[%s175 + $0x120] sm:$0xff]
                %190 = vst [vmem:[%s176 + $0x30] sm:$0xff] %v189
                %v191 = vld [vmem:[%s175 + $0x128] sm:$0xff]
                %192 = vst [vmem:[%s176 + $0x38] sm:$0xff] %v191
                %v193 = vld [vmem:[%s175 + $0x180] sm:$0xff]
                %194 = vst [vmem:[%s176 + $0x40] sm:$0xff] %v193
                %v195 = vld [vmem:[%s175 + $0x188] sm:$0xff]
                %196 = vst [vmem:[%s176 + $0x48] sm:$0xff] %v195
                %v197 = vld [vmem:[%s175 + $0x1e0] sm:$0xff]
                %198 = vst [vmem:[%s176 + $0x50] sm:$0xff] %v197
                %v199 = vld [vmem:[%s175 + $0x1e8] sm:$0xff]
                %200 = vst [vmem:[%s176 + $0x58] sm:$0xff] %v199
                %v201 = vld [vmem:[%s175 + $0x240] sm:$0xff]
                %202 = vst [vmem:[%s176 + $0x60] sm:$0xff] %v201
                %v203 = vld [vmem:[%s175 + $0x248] sm:$0xff]
                %204 = vst [vmem:[%s176 + $0x68] sm:$0xff] %v203
                %v205 = vld [vmem:[%s175 + $0x2a0] sm:$0xff]
                %206 = vst [vmem:[%s176 + $0x70] sm:$0xff] %v205
                %v207 = vld [vmem:[%s175 + $0x2a8] sm:$0xff]
                %208 = vst [vmem:[%s176 + $0x78] sm:$0xff] %v207
                %v209 = vld [vmem:[%s175 + $0x300] sm:$0xff]
                %210 = vst [vmem:[%s176 + $0x80] sm:$0xff] %v209
                %v211 = vld [vmem:[%s175 + $0x308] sm:$0xff]
                %212 = vst [vmem:[%s176 + $0x88] sm:$0xff] %v211
                %v213 = vld [vmem:[%s175 + $0x360] sm:$0xff]
                %214 = vst [vmem:[%s176 + $0x90] sm:$0xff] %v213
                %v215 = vld [vmem:[%s175 + $0x368] sm:$0xff]
                %216 = vst [vmem:[%s176 + $0x98] sm:$0xff] %v215
              $region37: #{forward.4} parent=31 // loop_footer
                %s174 = sadd.s32 1, %s170
              $region38: #{forward.4} parent=31 // loop_footer_branch
                %169 = sbr.rel target = $region34
              $region39: #{forward.4} parent=31 // loop_exit
                _
            $region32: #{forward.4} parent=27 // pred_fallthru
              _
            // Predicated region
            $region40: #{forward.4} parent=27 // pred_check
              _
            $region41: #{forward.4} parent=27 // pred_check_branch
              %218 = sbr.rel target = $region43
            $region42: #{forward.4} parent=27 // pred_region
              _
            $region43: #{forward.4} parent=27 // pred_fallthru
              _
          $region28: #{forward.4} parent=23 // pred_fallthru
            _
          %219 = vnop
        $region24: #{forward.4} parent=19 // pred_fallthru
          _
        // Predicated region
        $region44: #{forward.4} parent=19 // pred_check
          %p220 = pneg %p93
        $region45: #{forward.4} parent=19 // pred_check_branch
          %222 = sbr.rel (%p220) target = $region47
        $region46: #{forward.4} parent=19 // pred_region
          %s223 = smul.u32 4, %s17
          %p224 = scmp.lt.s32.totalorder %s223, 23
          %s225 = scalar_select %p224, %s223, 23
          %s226 = scalar_lea.vmem %s2, %s225
          %s227 = smul.u32 4, %s17
        $region47: #{forward.4} parent=19 // pred_fallthru
          _
      $region20: #{forward.4} parent=5 // pred_fallthru
        _
      %p228 = scmp.le.s32.totalorder 1, %s9
      %p229 = scmp.lt.s32.totalorder %s9, 7
      %p230 = pnand %p228, %p229
      %p231 = pneg %p230
      // Predicated region
      $region48: #{forward.4} parent=5 // pred_check
        _
      $region49: #{forward.4} parent=5 // pred_check_branch
        %233 = sbr.rel (%p230) target = $region51
      $region50: #{forward.4} parent=5 // pred_region
        %s234 = ssub.s32 %s9, 1
        %s235 = sand.u32 %s60, 1
        %s236 = sand.u32 %s60, 1
        %s237 = smul.addr %s236, 160
        %s238 = scalar_lea.vmem [#allocation2], %s237
        // Predicated region
        $region52: #{forward.4} parent=50 // pred_check
          %p239 = pneg %p73
        $region53: #{forward.4} parent=50 // pred_check_branch
          %241 = sbr.rel (%p239) target = $region55
        $region54: #{forward.4} parent=50 // pred_region
          _
        $region55: #{forward.4} parent=50 // pred_fallthru
          _
        %s242 = smul.u32 4, %s18
        %p243 = scmp.lt.s32.totalorder %s242, 3
        %s244 = scalar_select %p243, %s242, 3
        %s245 = smul.addr %s244, 4
        %s246 = scalar_lea.vmem %s0, %s245
        %p247 = pneg %p47
        %p248 = pneg %p44
        %s249 = sand.u32 %s60, 1
        %s250 = sand.u32 %s60, 1
        %s251 = smul.addr %s250, 160
        %s252 = scalar_lea.vmem [#allocation2], %s251
        %p253 = pneg %p73
        %p254 = pneg %p70
        %s255 = smul.u32 4, %s19
        %p256 = scmp.lt.s32.totalorder %s255, 23
        %s257 = scalar_select %p256, %s255, 23
        %s258 = scalar_lea.vmem %s2, %s257
        %p259 = pneg %p99
        %p260 = pneg %p96
        %p261 = pneg %p127
        %p262 = pneg %p124
        %s263 = sand.u32 %s114, 1
        %s264 = sand.u32 %s114, 1
        %s265 = smul.addr %s264, 64
        %s266 = scalar_lea.vmem [#allocation3], %s265
        %s267 = smul.u32 4, %s18
        %p268 = scmp.lt.s32.totalorder %s267, 3
        %s269 = scalar_select %p268, %s267, 3
        %s270 = smul.addr %s269, 4
        %s271 = scalar_lea.vmem %s0, %s270
        %s272 = smul.u32 4, %s18
        %s273 = smul.u32 4, %s19
        %s274 = smul.u32 4, %s19
        %p275 = scmp.lt.s32.totalorder %s274, 23
        %s276 = scalar_select %p275, %s274, 23
        %s277 = scalar_lea.vmem %s2, %s276
        %s278 = smul.u32 4, %s19
        %s279 = smul.u32 4, %s18
        %s280 = smul.u32 4, %s19
        %v282 = vld [vmem:[%s271] sm:$0xf]
        %v283 = vld [vmem:[%s271 + $0x4] sm:$0xf]
        %v284 = vld [vmem:[%s271 + $0x8] sm:$0xf]
        %v285 = vld [vmem:[%s271 + $0xc] sm:$0xf]
        %v286 = vld [vmem:[%s238] sm:$0xff]
        %v287 = vld [vmem:[%s238 + $0x8] sm:$0xff]
        %v288 = vld [vmem:[%s238 + $0x10] sm:$0xff]
        %v289 = vld [vmem:[%s238 + $0x18] sm:$0xff]
        %v290 = vld [vmem:[%s238 + $0x20] sm:$0xff]
        %v291 = vld [vmem:[%s238 + $0x28] sm:$0xff]
        %v292 = vld [vmem:[%s238 + $0x30] sm:$0xff]
        %v293 = vld [vmem:[%s238 + $0x38] sm:$0xff]
        %v294 = vld [vmem:[%s238 + $0x40] sm:$0xff]
        %v295 = vld [vmem:[%s238 + $0x48] sm:$0xff]
        %v296 = vld [vmem:[%s238 + $0x50] sm:$0xff]
        %v297 = vld [vmem:[%s238 + $0x58] sm:$0xff]
        %v298 = vld [vmem:[%s238 + $0x60] sm:$0xff]
        %v299 = vld [vmem:[%s238 + $0x68] sm:$0xff]
        %v300 = vld [vmem:[%s238 + $0x70] sm:$0xff]
        %v301 = vld [vmem:[%s238 + $0x78] sm:$0xff]
        %v302 = vld [vmem:[%s238 + $0x80] sm:$0xff]
        %v303 = vld [vmem:[%s238 + $0x88] sm:$0xff]
        %v304 = vld [vmem:[%s238 + $0x90] sm:$0xff]
        %v305 = vld [vmem:[%s238 + $0x98] sm:$0xff]
        %v306 = vld [vmem:[%s277] sm:$0xf]
        %v308 = vlaneseq
        %v309 = vshrl.u32 %v308, 7
        %v310 = vsub.s32 0, %v309
        %v311 = vrot.slane %v306, %v310
        %v312 = vlaneseq
        %v313 = vshrl.u32 %v312, 7
        %v314 = vsub.s32 1, %v313
        %v315 = vrot.slane %v306, %v314
        %v316 = vlaneseq
        %v317 = vshrl.u32 %v316, 7
        %v318 = vsub.s32 2, %v317
        %v319 = vrot.slane %v306, %v318
        %v320 = vlaneseq
        %v321 = vshrl.u32 %v320, 7
        %v322 = vsub.s32 3, %v321
        %v323 = vrot.slane %v306, %v322
        %v332 = vunpack.c.l.b16 %v282
        %v333 = vunpack.c.l.b16 %v283
        %v334 = vunpack.c.l.b16 %v284
        %v335 = vunpack.c.l.b16 %v285
        %v336 = vpack.c.b16 %v333, %v332
        %v337 = vpack.c.b16 %v335, %v334
        %v358 = vunpack.c.l.b16 %v286
        %v359 = vunpack.c.h.b16 %v286
        %v360 = vunpack.c.l.b16 %v287
        %v361 = vunpack.c.h.b16 %v287
        %v362 = vunpack.c.l.b16 %v288
        %v363 = vunpack.c.h.b16 %v288
        %v364 = vunpack.c.l.b16 %v289
        %v365 = vunpack.c.h.b16 %v289
        %v366 = vunpack.c.l.b16 %v290
        %v367 = vunpack.c.h.b16 %v290
        %v368 = vunpack.c.l.b16 %v291
        %v369 = vunpack.c.h.b16 %v291
        %v370 = vunpack.c.l.b16 %v292
        %v371 = vunpack.c.h.b16 %v292
        %v372 = vunpack.c.l.b16 %v293
        %v373 = vunpack.c.h.b16 %v293
        %v374 = vunpack.c.l.b16 %v294
        %v375 = vunpack.c.h.b16 %v294
        %v376 = vunpack.c.l.b16 %v295
        %v377 = vunpack.c.h.b16 %v295
        %v378 = vunpack.c.l.b16 %v296
        %v379 = vunpack.c.h.b16 %v296
        %v380 = vunpack.c.l.b16 %v297
        %v381 = vunpack.c.h.b16 %v297
        %v382 = vunpack.c.l.b16 %v298
        %v383 = vunpack.c.h.b16 %v298
        %v384 = vunpack.c.l.b16 %v299
        %v385 = vunpack.c.h.b16 %v299
        %v386 = vunpack.c.l.b16 %v300
        %v387 = vunpack.c.h.b16 %v300
        %v388 = vunpack.c.l.b16 %v301
        %v389 = vunpack.c.h.b16 %v301
        %v390 = vunpack.c.l.b16 %v302
        %v391 = vunpack.c.h.b16 %v302
        %v392 = vunpack.c.l.b16 %v303
        %v393 = vunpack.c.h.b16 %v303
        %v394 = vunpack.c.l.b16 %v304
        %v395 = vunpack.c.h.b16 %v304
        %v396 = vunpack.c.l.b16 %v305
        %v397 = vunpack.c.h.b16 %v305
        %v398 = vpack.c.b16 %v362, %v358
        %v399 = vpack.c.b16 %v363, %v359
        %v400 = vpack.c.b16 %v364, %v360
        %v401 = vpack.c.b16 %v365, %v361
        %v402 = vpack.c.b16 %v370, %v366
        %v403 = vpack.c.b16 %v371, %v367
        %v404 = vpack.c.b16 %v372, %v368
        %v405 = vpack.c.b16 %v373, %v369
        %v406 = vpack.c.b16 %v378, %v374
        %v407 = vpack.c.b16 %v379, %v375
        %v408 = vpack.c.b16 %v380, %v376
        %v409 = vpack.c.b16 %v381, %v377
        %v410 = vpack.c.b16 %v386, %v382
        %v411 = vpack.c.b16 %v387, %v383
        %v412 = vpack.c.b16 %v388, %v384
        %v413 = vpack.c.b16 %v389, %v385
        %v414 = vpack.c.b16 %v394, %v390
        %v415 = vpack.c.b16 %v395, %v391
        %v416 = vpack.c.b16 %v396, %v392
        %v417 = vpack.c.b16 %v397, %v393
        %vm438 = vcmask 654336
        %v440 = vsel %vm438, %v336, 0
        %v443 = vsel %vm438, %v337, 0
        %445 = vmatprep.subr.bf16.mxu0 %v399
        %446 = vmatpush1.bf16.msra.mxu0 %v398
        %447 = vmatprep.subr.bf16.mxu0 %v403
        %448 = vmatpush1.bf16.msra.mxu0 %v402
        %449 = vmatprep.subr.bf16.mxu0 %v407
        %450 = vmatpush1.bf16.msra.mxu0 %v406
        %451 = vmatprep.subr.bf16.mxu0 %v411
        %452 = vmatpush1.bf16.msra.mxu0 %v410
        %453 = vmatprep.subr.bf16.mxu0 %v415
        %454 = vmatpush1.bf16.msra.mxu0 %v414
        %455 = vmatprep.subr.bf16.mxu0 0
        %456 = vmatpush1.bf16.msra.mxu0 0
        %457 = vmatprep.subr.bf16.mxu0 0
        %458 = vmatpush1.bf16.msra.mxu0 0
        %459 = vmatprep.subr.bf16.mxu0 0
        %460 = vmatpush1.bf16.msra.mxu0 0
        %461 = vmatprep.subr.bf16.mxu0 0
        %462 = vmatpush1.bf16.msra.mxu0 0
        %463 = vmatprep.subr.bf16.mxu0 0
        %464 = vmatpush1.bf16.msra.mxu0 0
        %465 = vmatprep.subr.bf16.mxu0 0
        %466 = vmatpush1.bf16.msra.mxu0 0
        %467 = vmatprep.subr.bf16.mxu0 0
        %468 = vmatpush1.bf16.msra.mxu0 0
        %469 = vmatprep.subr.bf16.mxu0 0
        %470 = vmatpush1.bf16.msra.mxu0 0
        %471 = vmatprep.subr.bf16.mxu0 0
        %472 = vmatpush1.bf16.msra.mxu0 0
        %473 = vmatprep.subr.bf16.mxu0 0
        %474 = vmatpush1.bf16.msra.mxu0 0
        %475 = vmatprep.subr.bf16.mxu0 0
        %476 = vmatpush1.bf16.msra.mxu0 0
        %477 = vmatprep.mubr.bf16.mxu0 0
        %478 = vmatmul.mubr.bf16.gmra.mrb[0].mxu0 %v440
        %v479 = vpop.f32.mrb[0].mxu0
        %v480 = vadd.f32 %v311, %v479
        %v481 = vpop.f32.mrb[0].mxu0
        %v482 = vadd.f32 %v315, %v481
        %v483 = vpop.f32.mrb[0].mxu0
        %v484 = vadd.f32 %v311, %v483
        %v485 = vpop.f32.mrb[0].mxu0
        %v486 = vadd.f32 %v315, %v485
        %487 = vmatprep.mubr.bf16.mxu0 0
        %488 = vmatmul.mubr.bf16.gmra.mrb[0].mxu0 %v443
        %v489 = vpop.f32.mrb[0].mxu0
        %v490 = vadd.f32 %v311, %v489
        %v491 = vpop.f32.mrb[0].mxu0
        %v492 = vadd.f32 %v315, %v491
        %v493 = vpop.f32.mrb[0].mxu0
        %v494 = vadd.f32 %v311, %v493
        %v495 = vpop.f32.mrb[0].mxu0
        %v496 = vadd.f32 %v315, %v495
        %497 = vdwg.mxu0
        %498 = vmatprep.subr.bf16.mxu0 %v401
        %499 = vmatpush1.bf16.msra.mxu0 %v400
        %500 = vmatprep.subr.bf16.mxu0 %v405
        %501 = vmatpush1.bf16.msra.mxu0 %v404
        %502 = vmatprep.subr.bf16.mxu0 %v409
        %503 = vmatpush1.bf16.msra.mxu0 %v408
        %504 = vmatprep.subr.bf16.mxu0 %v413
        %505 = vmatpush1.bf16.msra.mxu0 %v412
        %506 = vmatprep.subr.bf16.mxu0 %v417
        %507 = vmatpush1.bf16.msra.mxu0 %v416
        %508 = vmatprep.subr.bf16.mxu0 0
        %509 = vmatpush1.bf16.msra.mxu0 0
        %510 = vmatprep.subr.bf16.mxu0 0
        %511 = vmatpush1.bf16.msra.mxu0 0
        %512 = vmatprep.subr.bf16.mxu0 0
        %513 = vmatpush1.bf16.msra.mxu0 0
        %514 = vmatprep.subr.bf16.mxu0 0
        %515 = vmatpush1.bf16.msra.mxu0 0
        %516 = vmatprep.subr.bf16.mxu0 0
        %517 = vmatpush1.bf16.msra.mxu0 0
        %518 = vmatprep.subr.bf16.mxu0 0
        %519 = vmatpush1.bf16.msra.mxu0 0
        %520 = vmatprep.subr.bf16.mxu0 0
        %521 = vmatpush1.bf16.msra.mxu0 0
        %522 = vmatprep.subr.bf16.mxu0 0
        %523 = vmatpush1.bf16.msra.mxu0 0
        %524 = vmatprep.subr.bf16.mxu0 0
        %525 = vmatpush1.bf16.msra.mxu0 0
        %526 = vmatprep.subr.bf16.mxu0 0
        %527 = vmatpush1.bf16.msra.mxu0 0
        %528 = vmatprep.subr.bf16.mxu0 0
        %529 = vmatpush1.bf16.msra.mxu0 0
        %530 = vmatprep.mubr.bf16.mxu0 0
        %531 = vmatmul.mubr.bf16.gmra.mrb[0].mxu0 %v440
        %v532 = vpop.f32.mrb[0].mxu0
        %v533 = vadd.f32 %v319, %v532
        %v534 = vpop.f32.mrb[0].mxu0
        %v535 = vadd.f32 %v323, %v534
        %v536 = vpop.f32.mrb[0].mxu0
        %v537 = vadd.f32 %v319, %v536
        %v538 = vpop.f32.mrb[0].mxu0
        %v539 = vadd.f32 %v323, %v538
        %540 = vmatprep.mubr.bf16.mxu0 0
        %541 = vmatmul.mubr.bf16.gmra.mrb[0].mxu0 %v443
        %v542 = vpop.f32.mrb[0].mxu0
        %v543 = vadd.f32 %v319, %v542
        %v544 = vpop.f32.mrb[0].mxu0
        %v545 = vadd.f32 %v323, %v544
        %v546 = vpop.f32.mrb[0].mxu0
        %v547 = vadd.f32 %v319, %v546
        %v548 = vpop.f32.mrb[0].mxu0
        %v549 = vadd.f32 %v323, %v548
        %550 = vdwg.mxu0
        %v551 = vmax.f32 %v480, 0.0
        %v552 = vmax.f32 %v482, 0.0
        %v553 = vmax.f32 %v533, 0.0
        %v554 = vmax.f32 %v535, 0.0
        %v555 = vmax.f32 %v484, 0.0
        %v556 = vmax.f32 %v486, 0.0
        %v557 = vmax.f32 %v537, 0.0
        %v558 = vmax.f32 %v539, 0.0
        %v559 = vmax.f32 %v490, 0.0
        %v560 = vmax.f32 %v492, 0.0
        %v561 = vmax.f32 %v543, 0.0
        %v562 = vmax.f32 %v545, 0.0
        %v563 = vmax.f32 %v494, 0.0
        %v564 = vmax.f32 %v496, 0.0
        %v565 = vmax.f32 %v547, 0.0
        %v566 = vmax.f32 %v549, 0.0
        %v567 = vpack.c.bf16 %v555, %v551
        %v568 = vpack.c.bf16 %v556, %v552
        %v569 = vpack.c.bf16 %v557, %v553
        %v570 = vpack.c.bf16 %v558, %v554
        %v571 = vpack.c.bf16 %v563, %v559
        %v572 = vpack.c.bf16 %v564, %v560
        %v573 = vpack.c.bf16 %v565, %v561
        %v574 = vpack.c.bf16 %v566, %v562
        %v583 = vunpack.c.l.b16 %v567
        %v584 = vunpack.c.l.b16 %v568
        %v585 = vunpack.c.l.b16 %v569
        %v586 = vunpack.c.l.b16 %v570
        %v587 = vunpack.c.h.b16 %v567
        %v588 = vunpack.c.h.b16 %v568
        %v589 = vunpack.c.h.b16 %v569
        %v590 = vunpack.c.h.b16 %v570
        %v591 = vunpack.c.l.b16 %v571
        %v592 = vunpack.c.l.b16 %v572
        %v593 = vunpack.c.l.b16 %v573
        %v594 = vunpack.c.l.b16 %v574
        %v595 = vunpack.c.h.b16 %v571
        %v596 = vunpack.c.h.b16 %v572
        %v597 = vunpack.c.h.b16 %v573
        %v598 = vunpack.c.h.b16 %v574
        %v599 = vpack.c.b16 %v584, %v583
        %v600 = vpack.c.b16 %v586, %v585
        %v601 = vpack.c.b16 %v588, %v587
        %v602 = vpack.c.b16 %v590, %v589
        %v603 = vpack.c.b16 %v592, %v591
        %v604 = vpack.c.b16 %v594, %v593
        %v605 = vpack.c.b16 %v596, %v595
        %v606 = vpack.c.b16 %v598, %v597
        %615 = vst [vmem:[%s266] sm:$0xff] %v599
        %616 = vst [vmem:[%s266 + $0x8] sm:$0xff] %v600
        %617 = vst [vmem:[%s266 + $0x10] sm:$0xff] %v601
        %618 = vst [vmem:[%s266 + $0x18] sm:$0xff] %v602
        %619 = vst [vmem:[%s266 + $0x20] sm:$0xff] %v603
        %620 = vst [vmem:[%s266 + $0x28] sm:$0xff] %v604
        %621 = vst [vmem:[%s266 + $0x30] sm:$0xff] %v605
        %622 = vst [vmem:[%s266 + $0x38] sm:$0xff] %v606
        %s623 = sand.u32 %s114, 1
        %s624 = sand.u32 %s114, 1
        %s625 = smul.addr %s624, 64
        %s626 = scalar_lea.vmem [#allocation3], %s625
        // Predicated region
        $region56: #{forward.4} parent=50 // pred_check
          %p627 = pneg %p124
        $region57: #{forward.4} parent=50 // pred_check_branch
          %629 = sbr.rel (%p627) target = $region59
        $region58: #{forward.4} parent=50 // pred_region
          %s630 = smul.u32 4, %s18
          %s631 = smul.u32 4, %s19
          %s632 = smul.addr %s630, 24
          %s633 = sadd.s32 %s631, %s632
          %s634 = smul.addr %s633, 4
          %s635 = scalar_lea.vmem %s3, %s634
          // Predicated region
          $region60: #{forward.4} parent=58 // pred_check
            _
          $region61: #{forward.4} parent=58 // pred_check_branch
            %637 = sbr.rel (0) target = $region63
          $region62: #{forward.4} parent=58 // pred_region
            // Predicated region
            $region64: #{forward.4} parent=62 // pred_check
              _
            $region65: #{forward.4} parent=62 // pred_check_branch
              %639 = sbr.rel (0) target = $region67
            $region66: #{forward.4} parent=62 // pred_region
              loop: start=0, step=1, limit=1
              $region68: #{forward.4} parent=66 // loop_pre_header
                _
              $region69: #{forward.4} parent=66 // loop_header
                %s641 = sphi 0, %s645
                %p642 = scmp.ge.s32.totalorder %s641, 1
                %s646 = sphi %s626, %s626
                %s647 = sphi %s635, %s635
              $region70: #{forward.4} parent=66 // loop_header_branch
                %644 = sbr.rel (%p642) target = $region74
              $region71: #{forward.4} parent=66 // loop_body
                %v648 = vld [vmem:[%s646] sm:$0xff]
                %649 = vst [vmem:[%s647] sm:$0xff] %v648
                %v650 = vld [vmem:[%s646 + $0x8] sm:$0xff]
                %651 = vst [vmem:[%s647 + $0x8] sm:$0xff] %v650
                %v652 = vld [vmem:[%s646 + $0x10] sm:$0xff]
                %653 = vst [vmem:[%s647 + $0x60] sm:$0xff] %v652
                %v654 = vld [vmem:[%s646 + $0x18] sm:$0xff]
                %655 = vst [vmem:[%s647 + $0x68] sm:$0xff] %v654
                %v656 = vld [vmem:[%s646 + $0x20] sm:$0xff]
                %657 = vst [vmem:[%s647 + $0xc0] sm:$0xff] %v656
                %v658 = vld [vmem:[%s646 + $0x28] sm:$0xff]
                %659 = vst [vmem:[%s647 + $0xc8] sm:$0xff] %v658
                %v660 = vld [vmem:[%s646 + $0x30] sm:$0xff]
                %661 = vst [vmem:[%s647 + $0x120] sm:$0xff] %v660
                %v662 = vld [vmem:[%s646 + $0x38] sm:$0xff]
                %663 = vst [vmem:[%s647 + $0x128] sm:$0xff] %v662
              $region72: #{forward.4} parent=66 // loop_footer
                %s645 = sadd.s32 1, %s641
              $region73: #{forward.4} parent=66 // loop_footer_branch
                %640 = sbr.rel target = $region69
              $region74: #{forward.4} parent=66 // loop_exit
                _
            $region67: #{forward.4} parent=62 // pred_fallthru
              _
            // Predicated region
            $region75: #{forward.4} parent=62 // pred_check
              _
            $region76: #{forward.4} parent=62 // pred_check_branch
              %665 = sbr.rel target = $region78
            $region77: #{forward.4} parent=62 // pred_region
              _
            $region78: #{forward.4} parent=62 // pred_fallthru
              _
          $region63: #{forward.4} parent=58 // pred_fallthru
            _
          %666 = vnop
        $region59: #{forward.4} parent=50 // pred_fallthru
          _
      $region51: #{forward.4} parent=5 // pred_fallthru
        _
      %p667 = scmp.le.s32.totalorder 2, %s9
      // Predicated region
      $region79: #{forward.4} parent=5 // pred_check
        %p668 = pneg %p667
      $region80: #{forward.4} parent=5 // pred_check_branch
        %670 = sbr.rel (%p668) target = $region82
      $region81: #{forward.4} parent=5 // pred_region
        %s671 = ssub.s32 %s9, 2
        // Predicated region
        $region83: #{forward.4} parent=81 // pred_check
          %p672 = pneg %p130
        $region84: #{forward.4} parent=81 // pred_check_branch
          %674 = sbr.rel (%p672) target = $region86
        $region85: #{forward.4} parent=81 // pred_region
          %s675 = sand.u32 %s115, 1
          %s676 = sand.u32 %s115, 1
          %s677 = smul.addr %s676, 64
          %s678 = scalar_lea.vmem [#allocation3], %s677
        $region86: #{forward.4} parent=81 // pred_fallthru
          _
      $region82: #{forward.4} parent=5 // pred_fallthru
        _
    $region6: #{forward.4} parent=1 // loop_footer
      %s13 = sadd.s32 1, %s9
    $region7: #{forward.4} parent=1 // loop_footer_branch
      %8 = sbr.rel target = $region3
    $region8: #{forward.4} parent=1 // loop_exit
      _

// kernel: forward.5
$region0: #{forward.5}
  #allocation0 [shape = 'u32[]', space=smem, size = 0x4, offset = 0x4, fixed_abs, tag = 'smem constant byte address 0x4 - core index']
  #allocation1 [shape = 'u32[144,128]{1,0:T(1,128)}', space=vmem, size = 0x12000, scoped, tag = 'internal scratch']
  %s0 = inlined_call_operand.vmem [shape: bf16[256,384], index: 0, kind: input, shape index: {}]
  %s1 = inlined_call_operand.vmem [shape: bf16[384,128], index: 1, kind: input, shape index: {}]
  %s2 = inlined_call_operand.vmem [shape: f32[1,128], index: 2, kind: input, shape index: {}]
  %s3 = inlined_call_operand.vmem [shape: f32[256,128], index: 3, kind: output, shape index: {}]
  %s4 = sld [smem:[#allocation0]]
  $region22: #{forward.5} parent=0
    _
  %s6 = ssub.s32 1, %s4
  %s7 = scalar_select 0, %s6, %s4
  // Predicated region
  $region2: #{forward.5} parent=0 // pred_check
    _
  $region3: #{forward.5} parent=0 // pred_check_branch
    %9 = sbr.rel (0) target = $region5
  $region4: #{forward.5} parent=0 // pred_region
    _
  $region5: #{forward.5} parent=0 // pred_fallthru
    _
  // Predicated region
  $region6: #{forward.5} parent=0 // pred_check
    _
  $region7: #{forward.5} parent=0 // pred_check_branch
    %11 = sbr.rel (0) target = $region9
  $region8: #{forward.5} parent=0 // pred_region
    _
  $region9: #{forward.5} parent=0 // pred_fallthru
    _
  // Predicated region
  $region10: #{forward.5} parent=0 // pred_check
    _
  $region11: #{forward.5} parent=0 // pred_check_branch
    %13 = sbr.rel (0) target = $region13
  $region12: #{forward.5} parent=0 // pred_region
    _
  $region13: #{forward.5} parent=0 // pred_fallthru
    _
  %v15 = vld [vmem:[%s0] sm:$0xff]
  %v16 = vld [vmem:[%s0 + $0x8] sm:$0xf]
  %v17 = vld [vmem:[%s0 + $0xc] sm:$0xff]
  %v18 = vld [vmem:[%s0 + $0x14] sm:$0xf]
  %v19 = vld [vmem:[%s0 + $0x18] sm:$0xff]
  %v20 = vld [vmem:[%s0 + $0x20] sm:$0xf]
  %v21 = vld [vmem:[%s0 + $0x24] sm:$0xff]
  %v22 = vld [vmem:[%s0 + $0x2c] sm:$0xf]
  %v23 = vld [vmem:[%s0 + $0x30] sm:$0xff]
  %v24 = vld [vmem:[%s0 + $0x38] sm:$0xf]
  %v25 = vld [vmem:[%s0 + $0x3c] sm:$0xff]
  %v26 = vld [vmem:[%s0 + $0x44] sm:$0xf]
  %v27 = vld [vmem:[%s0 + $0x48] sm:$0xff]
  %v28 = vld [vmem:[%s0 + $0x50] sm:$0xf]
  %v29 = vld [vmem:[%s0 + $0x54] sm:$0xff]
  %v30 = vld [vmem:[%s0 + $0x5c] sm:$0xf]
  %v31 = vld [vmem:[%s0 + $0x60] sm:$0xff]
  %v32 = vld [vmem:[%s0 + $0x68] sm:$0xf]
  %v33 = vld [vmem:[%s0 + $0x6c] sm:$0xff]
  %v34 = vld [vmem:[%s0 + $0x74] sm:$0xf]
  %v35 = vld [vmem:[%s0 + $0x78] sm:$0xff]
  %v36 = vld [vmem:[%s0 + $0x80] sm:$0xf]
  %v37 = vld [vmem:[%s0 + $0x84] sm:$0xff]
  %v38 = vld [vmem:[%s0 + $0x8c] sm:$0xf]
  %v39 = vld [vmem:[%s0 + $0x90] sm:$0xff]
  %v40 = vld [vmem:[%s0 + $0x98] sm:$0xf]
  %v41 = vld [vmem:[%s0 + $0x9c] sm:$0xff]
  %v42 = vld [vmem:[%s0 + $0xa4] sm:$0xf]
  %v43 = vld [vmem:[%s0 + $0xa8] sm:$0xff]
  %v44 = vld [vmem:[%s0 + $0xb0] sm:$0xf]
  %v45 = vld [vmem:[%s0 + $0xb4] sm:$0xff]
  %v46 = vld [vmem:[%s0 + $0xbc] sm:$0xf]
  %v47 = vld [vmem:[%s0 + $0xc0] sm:$0xff]
  %v48 = vld [vmem:[%s0 + $0xc8] sm:$0xf]
  %v49 = vld [vmem:[%s0 + $0xcc] sm:$0xff]
  %v50 = vld [vmem:[%s0 + $0xd4] sm:$0xf]
  %v51 = vld [vmem:[%s0 + $0xd8] sm:$0xff]
  %v52 = vld [vmem:[%s0 + $0xe0] sm:$0xf]
  %v53 = vld [vmem:[%s0 + $0xe4] sm:$0xff]
  %v54 = vld [vmem:[%s0 + $0xec] sm:$0xf]
  %v55 = vld [vmem:[%s0 + $0xf0] sm:$0xff]
  %v56 = vld [vmem:[%s0 + $0xf8] sm:$0xf]
  %v57 = vld [vmem:[%s0 + $0xfc] sm:$0xff]
  %v58 = vld [vmem:[%s0 + $0x104] sm:$0xf]
  %v59 = vld [vmem:[%s0 + $0x108] sm:$0xff]
  %v60 = vld [vmem:[%s0 + $0x110] sm:$0xf]
  %v61 = vld [vmem:[%s0 + $0x114] sm:$0xff]
  %v62 = vld [vmem:[%s0 + $0x11c] sm:$0xf]
  %v63 = vld [vmem:[%s0 + $0x120] sm:$0xff]
  %v64 = vld [vmem:[%s0 + $0x128] sm:$0xf]
  %v65 = vld [vmem:[%s0 + $0x12c] sm:$0xff]
  %v66 = vld [vmem:[%s0 + $0x134] sm:$0xf]
  %v67 = vld [vmem:[%s0 + $0x138] sm:$0xff]
  %v68 = vld [vmem:[%s0 + $0x140] sm:$0xf]
  %v69 = vld [vmem:[%s0 + $0x144] sm:$0xff]
  %v70 = vld [vmem:[%s0 + $0x14c] sm:$0xf]
  %v71 = vld [vmem:[%s0 + $0x150] sm:$0xff]
  %v72 = vld [vmem:[%s0 + $0x158] sm:$0xf]
  %v73 = vld [vmem:[%s0 + $0x15c] sm:$0xff]
  %v74 = vld [vmem:[%s0 + $0x164] sm:$0xf]
  %v75 = vld [vmem:[%s0 + $0x168] sm:$0xff]
  %v76 = vld [vmem:[%s0 + $0x170] sm:$0xf]
  %v77 = vld [vmem:[%s0 + $0x174] sm:$0xff]
  %v78 = vld [vmem:[%s0 + $0x17c] sm:$0xf]
  %v79 = vld [vmem:[%s1] sm:$0xf]
  %v80 = vld [vmem:[%s1 + $0x4] sm:$0xf]
  %v81 = vld [vmem:[%s1 + $0x8] sm:$0xf]
  %v82 = vld [vmem:[%s1 + $0xc] sm:$0xf]
  %v83 = vld [vmem:[%s1 + $0x10] sm:$0xf]
  %v84 = vld [vmem:[%s1 + $0x14] sm:$0xf]
  %v85 = vld [vmem:[%s1 + $0x18] sm:$0xf]
  %v86 = vld [vmem:[%s1 + $0x1c] sm:$0xf]
  %v87 = vld [vmem:[%s1 + $0x20] sm:$0xf]
  %v88 = vld [vmem:[%s1 + $0x24] sm:$0xf]
  %v89 = vld [vmem:[%s1 + $0x28] sm:$0xf]
  %v90 = vld [vmem:[%s1 + $0x2c] sm:$0xf]
  %v91 = vld [vmem:[%s1 + $0x30] sm:$0xf]
  %v92 = vld [vmem:[%s1 + $0x34] sm:$0xf]
  %v93 = vld [vmem:[%s1 + $0x38] sm:$0xf]
  %v94 = vld [vmem:[%s1 + $0x3c] sm:$0xf]
  %v95 = vld [vmem:[%s1 + $0x40] sm:$0xf]
  %v96 = vld [vmem:[%s1 + $0x44] sm:$0xf]
  %v97 = vld [vmem:[%s1 + $0x48] sm:$0xf]
  %v98 = vld [vmem:[%s1 + $0x4c] sm:$0xf]
  %v99 = vld [vmem:[%s1 + $0x50] sm:$0xf]
  %v100 = vld [vmem:[%s1 + $0x54] sm:$0xf]
  %v101 = vld [vmem:[%s1 + $0x58] sm:$0xf]
  %v102 = vld [vmem:[%s1 + $0x5c] sm:$0xf]
  %v103 = vld [vmem:[%s1 + $0x60] sm:$0xf]
  %v104 = vld [vmem:[%s1 + $0x64] sm:$0xf]
  %v105 = vld [vmem:[%s1 + $0x68] sm:$0xf]
  %v106 = vld [vmem:[%s1 + $0x6c] sm:$0xf]
  %v107 = vld [vmem:[%s1 + $0x70] sm:$0xf]
  %v108 = vld [vmem:[%s1 + $0x74] sm:$0xf]
  %v109 = vld [vmem:[%s1 + $0x78] sm:$0xf]
  %v110 = vld [vmem:[%s1 + $0x7c] sm:$0xf]
  %v111 = vld [vmem:[%s1 + $0x80] sm:$0xf]
  %v112 = vld [vmem:[%s1 + $0x84] sm:$0xf]
  %v113 = vld [vmem:[%s1 + $0x88] sm:$0xf]
  %v114 = vld [vmem:[%s1 + $0x8c] sm:$0xf]
  %v115 = vld [vmem:[%s1 + $0x90] sm:$0xf]
  %v116 = vld [vmem:[%s1 + $0x94] sm:$0xf]
  %v117 = vld [vmem:[%s1 + $0x98] sm:$0xf]
  %v118 = vld [vmem:[%s1 + $0x9c] sm:$0xf]
  %v119 = vld [vmem:[%s1 + $0xa0] sm:$0xf]
  %v120 = vld [vmem:[%s1 + $0xa4] sm:$0xf]
  %v121 = vld [vmem:[%s1 + $0xa8] sm:$0xf]
  %v122 = vld [vmem:[%s1 + $0xac] sm:$0xf]
  %v123 = vld [vmem:[%s1 + $0xb0] sm:$0xf]
  %v124 = vld [vmem:[%s1 + $0xb4] sm:$0xf]
  %v125 = vld [vmem:[%s1 + $0xb8] sm:$0xf]
  %v126 = vld [vmem:[%s1 + $0xbc] sm:$0xf]
  %v127 = vld [vmem:[%s2] sm:$0x1]
  %v129 = vlaneseq
  %v130 = vshrl.u32 %v129, 7
  %v131 = vsub.s32 0, %v130
  %v132 = vrot.slane %v127, %v131
  %v198 = vunpack.c.l.b16 %v15
  %v199 = vunpack.c.h.b16 %v15
  %v200 = vunpack.c.l.b16 %v16
  %v201 = vunpack.c.l.b16 %v17
  %v202 = vunpack.c.h.b16 %v17
  %v203 = vunpack.c.l.b16 %v18
  %v204 = vunpack.c.l.b16 %v19
  %v205 = vunpack.c.h.b16 %v19
  %v206 = vunpack.c.l.b16 %v20
  %v207 = vunpack.c.l.b16 %v21
  %v208 = vunpack.c.h.b16 %v21
  %v209 = vunpack.c.l.b16 %v22
  %v210 = vunpack.c.l.b16 %v23
  %v211 = vunpack.c.h.b16 %v23
  %v212 = vunpack.c.l.b16 %v24
  %v213 = vunpack.c.l.b16 %v25
  %v214 = vunpack.c.h.b16 %v25
  %v215 = vunpack.c.l.b16 %v26
  %v216 = vunpack.c.l.b16 %v27
  %v217 = vunpack.c.h.b16 %v27
  %v218 = vunpack.c.l.b16 %v28
  %v219 = vunpack.c.l.b16 %v29
  %v220 = vunpack.c.h.b16 %v29
  %v221 = vunpack.c.l.b16 %v30
  %v222 = vunpack.c.l.b16 %v31
  %v223 = vunpack.c.h.b16 %v31
  %v224 = vunpack.c.l.b16 %v32
  %v225 = vunpack.c.l.b16 %v33
  %v226 = vunpack.c.h.b16 %v33
  %v227 = vunpack.c.l.b16 %v34
  %v228 = vunpack.c.l.b16 %v35
  %v229 = vunpack.c.h.b16 %v35
  %v230 = vunpack.c.l.b16 %v36
  %v231 = vunpack.c.l.b16 %v37
  %v232 = vunpack.c.h.b16 %v37
  %v233 = vunpack.c.l.b16 %v38
  %v234 = vunpack.c.l.b16 %v39
  %v235 = vunpack.c.h.b16 %v39
  %v236 = vunpack.c.l.b16 %v40
  %v237 = vunpack.c.l.b16 %v41
  %v238 = vunpack.c.h.b16 %v41
  %v239 = vunpack.c.l.b16 %v42
  %v240 = vunpack.c.l.b16 %v43
  %v241 = vunpack.c.h.b16 %v43
  %v242 = vunpack.c.l.b16 %v44
  %v243 = vunpack.c.l.b16 %v45
  %v244 = vunpack.c.h.b16 %v45
  %v245 = vunpack.c.l.b16 %v46
  %v246 = vunpack.c.l.b16 %v47
  %v247 = vunpack.c.h.b16 %v47
  %v248 = vunpack.c.l.b16 %v48
  %v249 = vunpack.c.l.b16 %v49
  %v250 = vunpack.c.h.b16 %v49
  %v251 = vunpack.c.l.b16 %v50
  %v252 = vunpack.c.l.b16 %v51
  %v253 = vunpack.c.h.b16 %v51
  %v254 = vunpack.c.l.b16 %v52
  %v255 = vunpack.c.l.b16 %v53
  %v256 = vunpack.c.h.b16 %v53
  %v257 = vunpack.c.l.b16 %v54
  %v258 = vunpack.c.l.b16 %v55
  %v259 = vunpack.c.h.b16 %v55
  %v260 = vunpack.c.l.b16 %v56
  %v261 = vunpack.c.l.b16 %v57
  %v262 = vunpack.c.h.b16 %v57
  %v263 = vunpack.c.l.b16 %v58
  %v264 = vunpack.c.l.b16 %v59
  %v265 = vunpack.c.h.b16 %v59
  %v266 = vunpack.c.l.b16 %v60
  %v267 = vunpack.c.l.b16 %v61
  %v268 = vunpack.c.h.b16 %v61
  %v269 = vunpack.c.l.b16 %v62
  %v270 = vunpack.c.l.b16 %v63
  %v271 = vunpack.c.h.b16 %v63
  %v272 = vunpack.c.l.b16 %v64
  %v273 = vunpack.c.l.b16 %v65
  %v274 = vunpack.c.h.b16 %v65
  %v275 = vunpack.c.l.b16 %v66
  %v276 = vunpack.c.l.b16 %v67
  %v277 = vunpack.c.h.b16 %v67
  %v278 = vunpack.c.l.b16 %v68
  %v279 = vunpack.c.l.b16 %v69
  %v280 = vunpack.c.h.b16 %v69
  %v281 = vunpack.c.l.b16 %v70
  %v282 = vunpack.c.l.b16 %v71
  %v283 = vunpack.c.h.b16 %v71
  %v284 = vunpack.c.l.b16 %v72
  %v285 = vunpack.c.l.b16 %v73
  %v286 = vunpack.c.h.b16 %v73
  %v287 = vunpack.c.l.b16 %v74
  %v288 = vunpack.c.l.b16 %v75
  %v289 = vunpack.c.h.b16 %v75
  %v290 = vunpack.c.l.b16 %v76
  %v291 = vunpack.c.l.b16 %v77
  %v292 = vunpack.c.h.b16 %v77
  %v293 = vunpack.c.l.b16 %v78
  %v294 = vpack.c.b16 %v201, %v198
  %v295 = vpack.c.b16 %v202, %v199
  %v296 = vpack.c.b16 %v203, %v200
  %v297 = vpack.c.b16 %v207, %v204
  %v298 = vpack.c.b16 %v208, %v205
  %v299 = vpack.c.b16 %v209, %v206
  %v300 = vpack.c.b16 %v213, %v210
  %v301 = vpack.c.b16 %v214, %v211
  %v302 = vpack.c.b16 %v215, %v212
  %v303 = vpack.c.b16 %v219, %v216
  %v304 = vpack.c.b16 %v220, %v217
  %v305 = vpack.c.b16 %v221, %v218
  %v306 = vpack.c.b16 %v225, %v222
  %v307 = vpack.c.b16 %v226, %v223
  %v308 = vpack.c.b16 %v227, %v224
  %v309 = vpack.c.b16 %v231, %v228
  %v310 = vpack.c.b16 %v232, %v229
  %v311 = vpack.c.b16 %v233, %v230
  %v312 = vpack.c.b16 %v237, %v234
  %v313 = vpack.c.b16 %v238, %v235
  %v314 = vpack.c.b16 %v239, %v236
  %v315 = vpack.c.b16 %v243, %v240
  %v316 = vpack.c.b16 %v244, %v241
  %v317 = vpack.c.b16 %v245, %v242
  %v318 = vpack.c.b16 %v249, %v246
  %v319 = vpack.c.b16 %v250, %v247
  %v320 = vpack.c.b16 %v251, %v248
  %v321 = vpack.c.b16 %v255, %v252
  %v322 = vpack.c.b16 %v256, %v253
  %v323 = vpack.c.b16 %v257, %v254
  %v324 = vpack.c.b16 %v261, %v258
  %v325 = vpack.c.b16 %v262, %v259
  %v326 = vpack.c.b16 %v263, %v260
  %v327 = vpack.c.b16 %v267, %v264
  %v328 = vpack.c.b16 %v268, %v265
  %v329 = vpack.c.b16 %v269, %v266
  %v330 = vpack.c.b16 %v273, %v270
  %v331 = vpack.c.b16 %v274, %v271
  %v332 = vpack.c.b16 %v275, %v272
  %v333 = vpack.c.b16 %v279, %v276
  %v334 = vpack.c.b16 %v280, %v277
  %v335 = vpack.c.b16 %v281, %v278
  %v336 = vpack.c.b16 %v285, %v282
  %v337 = vpack.c.b16 %v286, %v283
  %v338 = vpack.c.b16 %v287, %v284
  %v339 = vpack.c.b16 %v291, %v288
  %v340 = vpack.c.b16 %v292, %v289
  %v341 = vpack.c.b16 %v293, %v290
  %v438 = vunpack.c.l.b16 %v79
  %v439 = vunpack.c.l.b16 %v80
  %v440 = vunpack.c.l.b16 %v81
  %v441 = vunpack.c.l.b16 %v82
  %v442 = vunpack.c.l.b16 %v83
  %v443 = vunpack.c.l.b16 %v84
  %v444 = vunpack.c.l.b16 %v85
  %v445 = vunpack.c.l.b16 %v86
  %v446 = vunpack.c.l.b16 %v87
  %v447 = vunpack.c.l.b16 %v88
  %v448 = vunpack.c.l.b16 %v89
  %v449 = vunpack.c.l.b16 %v90
  %v450 = vunpack.c.l.b16 %v91
  %v451 = vunpack.c.l.b16 %v92
  %v452 = vunpack.c.l.b16 %v93
  %v453 = vunpack.c.l.b16 %v94
  %v454 = vunpack.c.l.b16 %v95
  %v455 = vunpack.c.l.b16 %v96
  %v456 = vunpack.c.l.b16 %v97
  %v457 = vunpack.c.l.b16 %v98
  %v458 = vunpack.c.l.b16 %v99
  %v459 = vunpack.c.l.b16 %v100
  %v460 = vunpack.c.l.b16 %v101
  %v461 = vunpack.c.l.b16 %v102
  %v462 = vunpack.c.l.b16 %v103
  %v463 = vunpack.c.l.b16 %v104
  %v464 = vunpack.c.l.b16 %v105
  %v465 = vunpack.c.l.b16 %v106
  %v466 = vunpack.c.l.b16 %v107
  %v467 = vunpack.c.l.b16 %v108
  %v468 = vunpack.c.l.b16 %v109
  %v469 = vunpack.c.l.b16 %v110
  %v470 = vunpack.c.l.b16 %v111
  %v471 = vunpack.c.l.b16 %v112
  %v472 = vunpack.c.l.b16 %v113
  %v473 = vunpack.c.l.b16 %v114
  %v474 = vunpack.c.l.b16 %v115
  %v475 = vunpack.c.l.b16 %v116
  %v476 = vunpack.c.l.b16 %v117
  %v477 = vunpack.c.l.b16 %v118
  %v478 = vunpack.c.l.b16 %v119
  %v479 = vunpack.c.l.b16 %v120
  %v480 = vunpack.c.l.b16 %v121
  %v481 = vunpack.c.l.b16 %v122
  %v482 = vunpack.c.l.b16 %v123
  %v483 = vunpack.c.l.b16 %v124
  %v484 = vunpack.c.l.b16 %v125
  %v485 = vunpack.c.l.b16 %v126
  %v486 = vpack.c.b16 %v439, %v438
  %v487 = vpack.c.b16 %v441, %v440
  %v488 = vpack.c.b16 %v443, %v442
  %v489 = vpack.c.b16 %v445, %v444
  %v490 = vpack.c.b16 %v447, %v446
  %v491 = vpack.c.b16 %v449, %v448
  %v492 = vpack.c.b16 %v451, %v450
  %v493 = vpack.c.b16 %v453, %v452
  %v494 = vpack.c.b16 %v455, %v454
  %v495 = vpack.c.b16 %v457, %v456
  %v496 = vpack.c.b16 %v459, %v458
  %v497 = vpack.c.b16 %v461, %v460
  %v498 = vpack.c.b16 %v463, %v462
  %v499 = vpack.c.b16 %v465, %v464
  %v500 = vpack.c.b16 %v467, %v466
  %v501 = vpack.c.b16 %v469, %v468
  %v502 = vpack.c.b16 %v471, %v470
  %v503 = vpack.c.b16 %v473, %v472
  %v504 = vpack.c.b16 %v475, %v474
  %v505 = vpack.c.b16 %v477, %v476
  %v506 = vpack.c.b16 %v479, %v478
  %v507 = vpack.c.b16 %v481, %v480
  %v508 = vpack.c.b16 %v483, %v482
  %v509 = vpack.c.b16 %v485, %v484
  %534 = vmatprep.subr.bf16.mxu0 0
  %535 = vmatpush1.bf16.msra.mxu0 %v486
  %536 = vmatprep.subr.bf16.mxu0 0
  %537 = vmatpush1.bf16.msra.mxu0 %v487
  %538 = vmatprep.subr.bf16.mxu0 0
  %539 = vmatpush1.bf16.msra.mxu0 %v488
  %540 = vmatprep.subr.bf16.mxu0 0
  %541 = vmatpush1.bf16.msra.mxu0 %v489
  %542 = vmatprep.subr.bf16.mxu0 0
  %543 = vmatpush1.bf16.msra.mxu0 %v490
  %544 = vmatprep.subr.bf16.mxu0 0
  %545 = vmatpush1.bf16.msra.mxu0 %v491
  %546 = vmatprep.subr.bf16.mxu0 0
  %547 = vmatpush1.bf16.msra.mxu0 %v492
  %548 = vmatprep.subr.bf16.mxu0 0
  %549 = vmatpush1.bf16.msra.mxu0 %v493
  %550 = vmatprep.subr.bf16.mxu0 0
  %551 = vmatpush1.bf16.msra.mxu0 %v494
  %552 = vmatprep.subr.bf16.mxu0 0
  %553 = vmatpush1.bf16.msra.mxu0 %v495
  %554 = vmatprep.subr.bf16.mxu0 0
  %555 = vmatpush1.bf16.msra.mxu0 %v496
  %556 = vmatprep.subr.bf16.mxu0 0
  %557 = vmatpush1.bf16.msra.mxu0 %v497
  %558 = vmatprep.subr.bf16.mxu0 0
  %559 = vmatpush1.bf16.msra.mxu0 %v498
  %560 = vmatprep.subr.bf16.mxu0 0
  %561 = vmatpush1.bf16.msra.mxu0 %v499
  %562 = vmatprep.subr.bf16.mxu0 0
  %563 = vmatpush1.bf16.msra.mxu0 %v500
  %564 = vmatprep.subr.bf16.mxu0 0
  %565 = vmatpush1.bf16.msra.mxu0 %v501
  %566 = vmatprep.mubr.bf16.mxu0 %v295
  %567 = vmatmul.mubr.bf16.gmra.mrb[0].mxu0 %v294
  %v568 = vpop.f32.mrb[0].mxu0
  %v569 = vadd.f32 %v132, %v568
  %v570 = vpop.f32.mrb[0].mxu0
  %v571 = vpop.f32.mrb[0].mxu0
  %v572 = vadd.f32 %v132, %v571
  %v573 = vpop.f32.mrb[0].mxu0
  %574 = vmatprep.mubr.bf16.mxu0 %v298
  %575 = vmatmul.mubr.bf16.gmra.mrb[0].mxu0 %v297
  %v576 = vpop.f32.mrb[0].mxu0
  %v577 = vadd.f32 %v132, %v576
  %v578 = vpop.f32.mrb[0].mxu0
  %v579 = vpop.f32.mrb[0].mxu0
  %v580 = vadd.f32 %v132, %v579
  %v581 = vpop.f32.mrb[0].mxu0
  %582 = vmatprep.mubr.bf16.mxu0 %v301
  %583 = vmatmul.mubr.bf16.gmra.mrb[0].mxu0 %v300
  %v584 = vpop.f32.mrb[0].mxu0
  %v585 = vadd.f32 %v132, %v584
  %v586 = vpop.f32.mrb[0].mxu0
  %v587 = vpop.f32.mrb[0].mxu0
  %v588 = vadd.f32 %v132, %v587
  %v589 = vpop.f32.mrb[0].mxu0
  %590 = vmatprep.mubr.bf16.mxu0 %v304
  %591 = vmatmul.mubr.bf16.gmra.mrb[0].mxu0 %v303
  %v592 = vpop.f32.mrb[0].mxu0
  %v593 = vadd.f32 %v132, %v592
  %v594 = vpop.f32.mrb[0].mxu0
  %v595 = vpop.f32.mrb[0].mxu0
  %v596 = vadd.f32 %v132, %v595
  %v597 = vpop.f32.mrb[0].mxu0
  %598 = vmatprep.mubr.bf16.mxu0 %v307
  %599 = vmatmul.mubr.bf16.gmra.mrb[0].mxu0 %v306
  %v600 = vpop.f32.mrb[0].mxu0
  %v601 = vadd.f32 %v132, %v600
  %v602 = vpop.f32.mrb[0].mxu0
  %v603 = vpop.f32.mrb[0].mxu0
  %v604 = vadd.f32 %v132, %v603
  %v605 = vpop.f32.mrb[0].mxu0
  %606 = vmatprep.mubr.bf16.mxu0 %v310
  %607 = vmatmul.mubr.bf16.gmra.mrb[0].mxu0 %v309
  %v608 = vpop.f32.mrb[0].mxu0
  %v609 = vadd.f32 %v132, %v608
  %v610 = vpop.f32.mrb[0].mxu0
  %v611 = vpop.f32.mrb[0].mxu0
  %v612 = vadd.f32 %v132, %v611
  %v613 = vpop.f32.mrb[0].mxu0
  %614 = vmatprep.mubr.bf16.mxu0 %v313
  %615 = vmatmul.mubr.bf16.gmra.mrb[0].mxu0 %v312
  %v616 = vpop.f32.mrb[0].mxu0
  %v617 = vadd.f32 %v132, %v616
  %v618 = vpop.f32.mrb[0].mxu0
  %v619 = vpop.f32.mrb[0].mxu0
  %v620 = vadd.f32 %v132, %v619
  %v621 = vpop.f32.mrb[0].mxu0
  %622 = vmatprep.mubr.bf16.mxu0 %v316
  %623 = vmatmul.mubr.bf16.gmra.mrb[0].mxu0 %v315
  %v624 = vpop.f32.mrb[0].mxu0
  %v625 = vadd.f32 %v132, %v624
  %v626 = vpop.f32.mrb[0].mxu0
  %v627 = vpop.f32.mrb[0].mxu0
  %v628 = vadd.f32 %v132, %v627
  %v629 = vpop.f32.mrb[0].mxu0
  %630 = vmatprep.mubr.bf16.mxu0 %v319
  %631 = vmatmul.mubr.bf16.gmra.mrb[0].mxu0 %v318
  %v632 = vpop.f32.mrb[0].mxu0
  %v633 = vadd.f32 %v132, %v632
  %v634 = vpop.f32.mrb[0].mxu0
  %v635 = vpop.f32.mrb[0].mxu0
  %v636 = vadd.f32 %v132, %v635
  %v637 = vpop.f32.mrb[0].mxu0
  %638 = vmatprep.mubr.bf16.mxu0 %v322
  %639 = vmatmul.mubr.bf16.gmra.mrb[0].mxu0 %v321
  %v640 = vpop.f32.mrb[0].mxu0
  %v641 = vadd.f32 %v132, %v640
  %v642 = vpop.f32.mrb[0].mxu0
  %v643 = vpop.f32.mrb[0].mxu0
  %v644 = vadd.f32 %v132, %v643
  %v645 = vpop.f32.mrb[0].mxu0
  %646 = vmatprep.mubr.bf16.mxu0 %v325
  %647 = vmatmul.mubr.bf16.gmra.mrb[0].mxu0 %v324
  %v648 = vpop.f32.mrb[0].mxu0
  %v649 = vadd.f32 %v132, %v648
  %v650 = vpop.f32.mrb[0].mxu0
  %v651 = vpop.f32.mrb[0].mxu0
  %v652 = vadd.f32 %v132, %v651
  %v653 = vpop.f32.mrb[0].mxu0
  %654 = vmatprep.mubr.bf16.mxu0 %v328
  %655 = vmatmul.mubr.bf16.gmra.mrb[0].mxu0 %v327
  %v656 = vpop.f32.mrb[0].mxu0
  %v657 = vadd.f32 %v132, %v656
  %v658 = vpop.f32.mrb[0].mxu0
  %v659 = vpop.f32.mrb[0].mxu0
  %v660 = vadd.f32 %v132, %v659
  %v661 = vpop.f32.mrb[0].mxu0
  %662 = vmatprep.mubr.bf16.mxu0 %v331
  %663 = vmatmul.mubr.bf16.gmra.mrb[0].mxu0 %v330
  %v664 = vpop.f32.mrb[0].mxu0
  %v665 = vadd.f32 %v132, %v664
  %v666 = vpop.f32.mrb[0].mxu0
  %v667 = vpop.f32.mrb[0].mxu0
  %v668 = vadd.f32 %v132, %v667
  %v669 = vpop.f32.mrb[0].mxu0
  %670 = vmatprep.mubr.bf16.mxu0 %v334
  %671 = vmatmul.mubr.bf16.gmra.mrb[0].mxu0 %v333
  %v672 = vpop.f32.mrb[0].mxu0
  %v673 = vadd.f32 %v132, %v672
  %v674 = vpop.f32.mrb[0].mxu0
  %v675 = vpop.f32.mrb[0].mxu0
  %v676 = vadd.f32 %v132, %v675
  %v677 = vpop.f32.mrb[0].mxu0
  %678 = vmatprep.mubr.bf16.mxu0 %v337
  %679 = vmatmul.mubr.bf16.gmra.mrb[0].mxu0 %v336
  %v680 = vpop.f32.mrb[0].mxu0
  %v681 = vadd.f32 %v132, %v680
  %v682 = vpop.f32.mrb[0].mxu0
  %v683 = vpop.f32.mrb[0].mxu0
  %v684 = vadd.f32 %v132, %v683
  %v685 = vpop.f32.mrb[0].mxu0
  %686 = vmatprep.mubr.bf16.mxu0 %v340
  %687 = vmatmul.mubr.bf16.gmra.mrb[0].mxu0 %v339
  %v688 = vpop.f32.mrb[0].mxu0
  %v689 = vadd.f32 %v132, %v688
  %v690 = vpop.f32.mrb[0].mxu0
  %v691 = vpop.f32.mrb[0].mxu0
  %v692 = vadd.f32 %v132, %v691
  %v693 = vpop.f32.mrb[0].mxu0
  %694 = vdwg.mxu0
  %695 = vmatprep.subr.bf16.mxu0 0
  %696 = vmatpush1.bf16.msra.mxu0 %v502
  %697 = vmatprep.subr.bf16.mxu0 0
  %698 = vmatpush1.bf16.msra.mxu0 %v503
  %699 = vmatprep.subr.bf16.mxu0 0
  %700 = vmatpush1.bf16.msra.mxu0 %v504
  %701 = vmatprep.subr.bf16.mxu0 0
  %702 = vmatpush1.bf16.msra.mxu0 %v505
  %703 = vmatprep.subr.bf16.mxu0 0
  %704 = vmatpush1.bf16.msra.mxu0 %v506
  %705 = vmatprep.subr.bf16.mxu0 0
  %706 = vmatpush1.bf16.msra.mxu0 %v507
  %707 = vmatprep.subr.bf16.mxu0 0
  %708 = vmatpush1.bf16.msra.mxu0 %v508
  %709 = vmatprep.subr.bf16.mxu0 0
  %710 = vmatpush1.bf16.msra.mxu0 %v509
  %711 = vmatprep.subr.bf16.mxu0 0
  %712 = vmatpush1.bf16.msra.mxu0 0
  %713 = vmatprep.subr.bf16.mxu0 0
  %714 = vmatpush1.bf16.msra.mxu0 0
  %715 = vmatprep.subr.bf16.mxu0 0
  %716 = vmatpush1.bf16.msra.mxu0 0
  %717 = vmatprep.subr.bf16.mxu0 0
  %718 = vmatpush1.bf16.msra.mxu0 0
  %719 = vmatprep.subr.bf16.mxu0 0
  %720 = vmatpush1.bf16.msra.mxu0 0
  %721 = vmatprep.subr.bf16.mxu0 0
  %722 = vmatpush1.bf16.msra.mxu0 0
  %723 = vmatprep.subr.bf16.mxu0 0
  %724 = vmatpush1.bf16.msra.mxu0 0
  %725 = vmatprep.subr.bf16.mxu0 0
  %726 = vmatpush1.bf16.msra.mxu0 0
  %727 = vmatprep.mubr.bf16.mxu0 0
  %728 = vmatmul.mubr.bf16.gmra.mrb[0].mxu0 %v296
  %v729 = vpop.f32.mrb[0].mxu0
  %v730 = vadd.f32 %v569, %v729
  %v731 = vpop.f32.mrb[0].mxu0
  %v732 = vpop.f32.mrb[0].mxu0
  %v733 = vadd.f32 %v572, %v732
  %v734 = vpop.f32.mrb[0].mxu0
  %735 = vmatprep.mubr.bf16.mxu0 0
  %736 = vmatmul.mubr.bf16.gmra.mrb[0].mxu0 %v299
  %v737 = vpop.f32.mrb[0].mxu0
  %v738 = vadd.f32 %v577, %v737
  %v739 = vpop.f32.mrb[0].mxu0
  %v740 = vpop.f32.mrb[0].mxu0
  %v741 = vadd.f32 %v580, %v740
  %v742 = vpop.f32.mrb[0].mxu0
  %743 = vmatprep.mubr.bf16.mxu0 0
  %744 = vmatmul.mubr.bf16.gmra.mrb[0].mxu0 %v302
  %v745 = vpop.f32.mrb[0].mxu0
  %v746 = vadd.f32 %v585, %v745
  %v747 = vpop.f32.mrb[0].mxu0
  %v748 = vpop.f32.mrb[0].mxu0
  %v749 = vadd.f32 %v588, %v748
  %v750 = vpop.f32.mrb[0].mxu0
  %751 = vmatprep.mubr.bf16.mxu0 0
  %752 = vmatmul.mubr.bf16.gmra.mrb[0].mxu0 %v305
  %v753 = vpop.f32.mrb[0].mxu0
  %v754 = vadd.f32 %v593, %v753
  %v755 = vpop.f32.mrb[0].mxu0
  %v756 = vpop.f32.mrb[0].mxu0
  %v757 = vadd.f32 %v596, %v756
  %v758 = vpop.f32.mrb[0].mxu0
  %759 = vmatprep.mubr.bf16.mxu0 0
  %760 = vmatmul.mubr.bf16.gmra.mrb[0].mxu0 %v308
  %v761 = vpop.f32.mrb[0].mxu0
  %v762 = vadd.f32 %v601, %v761
  %v763 = vpop.f32.mrb[0].mxu0
  %v764 = vpop.f32.mrb[0].mxu0
  %v765 = vadd.f32 %v604, %v764
  %v766 = vpop.f32.mrb[0].mxu0
  %767 = vmatprep.mubr.bf16.mxu0 0
  %768 = vmatmul.mubr.bf16.gmra.mrb[0].mxu0 %v311
  %v769 = vpop.f32.mrb[0].mxu0
  %v770 = vadd.f32 %v609, %v769
  %v771 = vpop.f32.mrb[0].mxu0
  %v772 = vpop.f32.mrb[0].mxu0
  %v773 = vadd.f32 %v612, %v772
  %v774 = vpop.f32.mrb[0].mxu0
  %775 = vmatprep.mubr.bf16.mxu0 0
  %776 = vmatmul.mubr.bf16.gmra.mrb[0].mxu0 %v314
  %v777 = vpop.f32.mrb[0].mxu0
  %v778 = vadd.f32 %v617, %v777
  %v779 = vpop.f32.mrb[0].mxu0
  %v780 = vpop.f32.mrb[0].mxu0
  %v781 = vadd.f32 %v620, %v780
  %v782 = vpop.f32.mrb[0].mxu0
  %783 = vmatprep.mubr.bf16.mxu0 0
  %784 = vmatmul.mubr.bf16.gmra.mrb[0].mxu0 %v317
  %v785 = vpop.f32.mrb[0].mxu0
  %v786 = vadd.f32 %v625, %v785
  %v787 = vpop.f32.mrb[0].mxu0
  %v788 = vpop.f32.mrb[0].mxu0
  %v789 = vadd.f32 %v628, %v788
  %v790 = vpop.f32.mrb[0].mxu0
  %791 = vmatprep.mubr.bf16.mxu0 0
  %792 = vmatmul.mubr.bf16.gmra.mrb[0].mxu0 %v320
  %v793 = vpop.f32.mrb[0].mxu0
  %v794 = vadd.f32 %v633, %v793
  %v795 = vpop.f32.mrb[0].mxu0
  %v796 = vpop.f32.mrb[0].mxu0
  %v797 = vadd.f32 %v636, %v796
  %v798 = vpop.f32.mrb[0].mxu0
  %799 = vmatprep.mubr.bf16.mxu0 0
  %800 = vmatmul.mubr.bf16.gmra.mrb[0].mxu0 %v323
  %v801 = vpop.f32.mrb[0].mxu0
  %v802 = vadd.f32 %v641, %v801
  %v803 = vpop.f32.mrb[0].mxu0
  %v804 = vpop.f32.mrb[0].mxu0
  %v805 = vadd.f32 %v644, %v804
  %v806 = vpop.f32.mrb[0].mxu0
  %807 = vmatprep.mubr.bf16.mxu0 0
  %808 = vmatmul.mubr.bf16.gmra.mrb[0].mxu0 %v326
  %v809 = vpop.f32.mrb[0].mxu0
  %v810 = vadd.f32 %v649, %v809
  %v811 = vpop.f32.mrb[0].mxu0
  %v812 = vpop.f32.mrb[0].mxu0
  %v813 = vadd.f32 %v652, %v812
  %v814 = vpop.f32.mrb[0].mxu0
  %815 = vmatprep.mubr.bf16.mxu0 0
  %816 = vmatmul.mubr.bf16.gmra.mrb[0].mxu0 %v329
  %v817 = vpop.f32.mrb[0].mxu0
  %v818 = vadd.f32 %v657, %v817
  %v819 = vpop.f32.mrb[0].mxu0
  %v820 = vpop.f32.mrb[0].mxu0
  %v821 = vadd.f32 %v660, %v820
  %v822 = vpop.f32.mrb[0].mxu0
  %823 = vmatprep.mubr.bf16.mxu0 0
  %824 = vmatmul.mubr.bf16.gmra.mrb[0].mxu0 %v332
  %v825 = vpop.f32.mrb[0].mxu0
  %v826 = vadd.f32 %v665, %v825
  %v827 = vpop.f32.mrb[0].mxu0
  %v828 = vpop.f32.mrb[0].mxu0
  %v829 = vadd.f32 %v668, %v828
  %v830 = vpop.f32.mrb[0].mxu0
  %831 = vmatprep.mubr.bf16.mxu0 0
  %832 = vmatmul.mubr.bf16.gmra.mrb[0].mxu0 %v335
  %v833 = vpop.f32.mrb[0].mxu0
  %v834 = vadd.f32 %v673, %v833
  %v835 = vpop.f32.mrb[0].mxu0
  %v836 = vpop.f32.mrb[0].mxu0
  %v837 = vadd.f32 %v676, %v836
  %v838 = vpop.f32.mrb[0].mxu0
  %839 = vmatprep.mubr.bf16.mxu0 0
  %840 = vmatmul.mubr.bf16.gmra.mrb[0].mxu0 %v338
  %v841 = vpop.f32.mrb[0].mxu0
  %v842 = vadd.f32 %v681, %v841
  %v843 = vpop.f32.mrb[0].mxu0
  %v844 = vpop.f32.mrb[0].mxu0
  %v845 = vadd.f32 %v684, %v844
  %v846 = vpop.f32.mrb[0].mxu0
  %847 = vmatprep.mubr.bf16.mxu0 0
  %848 = vmatmul.mubr.bf16.gmra.mrb[0].mxu0 %v341
  %v849 = vpop.f32.mrb[0].mxu0
  %v850 = vadd.f32 %v689, %v849
  %v851 = vpop.f32.mrb[0].mxu0
  %v852 = vpop.f32.mrb[0].mxu0
  %v853 = vadd.f32 %v692, %v852
  %v854 = vpop.f32.mrb[0].mxu0
  %855 = vdwg.mxu0
  %856 = vst [vmem:[%s3] sm:$0xff] %v730
  %857 = vst [vmem:[%s3 + $0x8] sm:$0xff] %v733
  %858 = vst [vmem:[%s3 + $0x10] sm:$0xff] %v738
  %859 = vst [vmem:[%s3 + $0x18] sm:$0xff] %v741
  %860 = vst [vmem:[%s3 + $0x20] sm:$0xff] %v746
  %861 = vst [vmem:[%s3 + $0x28] sm:$0xff] %v749
  %862 = vst [vmem:[%s3 + $0x30] sm:$0xff] %v754
  %863 = vst [vmem:[%s3 + $0x38] sm:$0xff] %v757
  %864 = vst [vmem:[%s3 + $0x40] sm:$0xff] %v762
  %865 = vst [vmem:[%s3 + $0x48] sm:$0xff] %v765
  %866 = vst [vmem:[%s3 + $0x50] sm:$0xff] %v770
  %867 = vst [vmem:[%s3 + $0x58] sm:$0xff] %v773
  %868 = vst [vmem:[%s3 + $0x60] sm:$0xff] %v778
  %869 = vst [vmem:[%s3 + $0x68] sm:$0xff] %v781
  %870 = vst [vmem:[%s3 + $0x70] sm:$0xff] %v786
  %871 = vst [vmem:[%s3 + $0x78] sm:$0xff] %v789
  %872 = vst [vmem:[%s3 + $0x80] sm:$0xff] %v794
  %873 = vst [vmem:[%s3 + $0x88] sm:$0xff] %v797
  %874 = vst [vmem:[%s3 + $0x90] sm:$0xff] %v802
  %875 = vst [vmem:[%s3 + $0x98] sm:$0xff] %v805
  %876 = vst [vmem:[%s3 + $0xa0] sm:$0xff] %v810
  %877 = vst [vmem:[%s3 + $0xa8] sm:$0xff] %v813
  %878 = vst [vmem:[%s3 + $0xb0] sm:$0xff] %v818
  %879 = vst [vmem:[%s3 + $0xb8] sm:$0xff] %v821
  %880 = vst [vmem:[%s3 + $0xc0] sm:$0xff] %v826
  %881 = vst [vmem:[%s3 + $0xc8] sm:$0xff] %v829
  %882 = vst [vmem:[%s3 + $0xd0] sm:$0xff] %v834
  %883 = vst [vmem:[%s3 + $0xd8] sm:$0xff] %v837
  %884 = vst [vmem:[%s3 + $0xe0] sm:$0xff] %v842
  %885 = vst [vmem:[%s3 + $0xe8] sm:$0xff] %v845
  %886 = vst [vmem:[%s3 + $0xf0] sm:$0xff] %v850
  %887 = vst [vmem:[%s3 + $0xf8] sm:$0xff] %v853
  // Predicated region
  $region14: #{forward.5} parent=0 // pred_check
    _
  $region15: #{forward.5} parent=0 // pred_check_branch
    %889 = sbr.rel (0) target = $region17
  $region16: #{forward.5} parent=0 // pred_region
    _
  $region17: #{forward.5} parent=0 // pred_fallthru
    _
  // Predicated region
  $region18: #{forward.5} parent=0 // pred_check
    _
  $region19: #{forward.5} parent=0 // pred_check_branch
    %891 = sbr.rel (0) target = $region21
  $region20: #{forward.5} parent=0 // pred_region
    _
  $region21: #{forward.5} parent=0 // pred_fallthru
    _

</llo_original>
